<compile_context>
chip_gen: v7x
topology: tpu7x:2x2x1
jax: 0.10.0
libtpu: 0.0.40
codegen_flags: <defaults>
</compile_context>

<pallas_src>
import functools

import jax
import jax.numpy as jnp
from jax.experimental import pallas as pl
from jax.experimental.pallas import tpu as pltpu


def _round_up(x: int, m: int) -> int:
    return (x + m - 1) // m * m


# ----------------------------------------------------------------------------
# Fused Pallas kernel: all GCN layers + final linear in one invocation.
# ----------------------------------------------------------------------------
def _fused_gcn_kernel(a_ref, x_ref, w_ref, b_ref, g_ref, bt_ref,
                      fw_ref, fb_ref, o_ref, *, n_real: int):
    num_layers = w_ref.shape[0]
    n_pad = x_ref.shape[0]

    a = a_ref[...]                                  # bf16 [Np, Np], resident across layers
    x = x_ref[...]                                  # f32  [Np, C]

    # Row mask: only the first n_real rows are real nodes (padding must not affect BN stats).
    row = jax.lax.broadcasted_iota(jnp.int32, (n_pad, 1), 0)
    mask = (row < n_real).astype(jnp.float32)       # [Np, 1]
    inv_n = jnp.float32(1.0 / n_real)

    for li in range(num_layers):                    # static unroll (num_layers = 5)
        w = w_ref[li]                               # bf16 [C, C]
        # GCNConv: H = X @ W (MXU, bf16 in / f32 acc), then Y = A_hat @ H + b.
        h = jnp.dot(x.astype(jnp.bfloat16), w,
                    preferred_element_type=jnp.float32)
        y = jnp.dot(a, h.astype(jnp.bfloat16),
                    preferred_element_type=jnp.float32)
        y = y + b_ref[li]                           # bias after aggregation (PyG GCNConv)

        if li < num_layers - 1:
            y = jnp.where(y >= 0.0, y, 0.2 * y)     # LeakyReLU(0.2)

        # BatchNorm1d over the real nodes (training-mode batch stats, biased var), f32.
        y = y * mask                                # zero padded rows before stats
        mean = jnp.sum(y, axis=0, keepdims=True) * inv_n
        d = (y - mean) * mask
        var = jnp.sum(d * d, axis=0, keepdims=True) * inv_n
        y = (y - mean) * jax.lax.rsqrt(var + 1e-5)
        x = y * g_ref[li] + bt_ref[li]

    # Final Linear.
    out = jnp.dot(x.astype(jnp.bfloat16), fw_ref[...],
                  preferred_element_type=jnp.float32) + fb_ref[...]
    o_ref[...] = out.astype(o_ref.dtype)


# ----------------------------------------------------------------------------
# Graph preprocessing (plain-JAX glue): dense symmetric-normalized adjacency
# with self loops, matching PyG gcn_norm with edge_weight = 1.
# ----------------------------------------------------------------------------
def build_norm_adj(edge_index, num_nodes):
    src = edge_index[0]
    dst = edge_index[1]
    loop = jnp.arange(num_nodes, dtype=edge_index.dtype)
    src = jnp.concatenate([src, loop])
    dst = jnp.concatenate([dst, loop])
    ew = jnp.ones(src.shape[0], dtype=jnp.float32)

    deg = jnp.zeros((num_nodes,), jnp.float32).at[dst].add(ew)
    dinv = jnp.where(deg > 0, jax.lax.rsqrt(deg), 0.0)
    norm = dinv[src] * ew * dinv[dst]

    # A_hat[i, j]: normalized weight of edge (j -> i): out[i] = sum_j A_hat[i,j] x[j]
    return jnp.zeros((num_nodes, num_nodes), jnp.float32).at[dst, src].add(norm)


# ----------------------------------------------------------------------------
# Forward wrapper: pad to lane-dense shapes, stack per-layer params, one pallas_call.
# ----------------------------------------------------------------------------
def gcn_forward(params, x, edge_index):
    n, in_dim = x.shape
    convs, bns = params["convs"], params["bns"]
    final_w, final_b = params["final_w"], params["final_b"]
    out_dim = final_w.shape[1]
    num_layers = len(convs)

    cpad = _round_up(max([in_dim, out_dim] + [w.shape[1] for w, _ in convs]), 128)
    npad = _round_up(n, 128)

    a_hat = build_norm_adj(edge_index, n)
    a_hat = jnp.pad(a_hat, ((0, npad - n), (0, npad - n))).astype(jnp.bfloat16)
    xp = jnp.pad(x.astype(jnp.float32), ((0, npad - n), (0, cpad - in_dim)))

    def pad_w(w):
        return jnp.pad(w, ((0, cpad - w.shape[0]), (0, cpad - w.shape[1])))

    def pad_v(v):
        return jnp.pad(v, (0, cpad - v.shape[0])).reshape(1, cpad)

    w_stack = jnp.stack([pad_w(w) for w, _ in convs]).astype(jnp.bfloat16)   # [L, C, C]
    b_stack = jnp.stack([pad_v(b) for _, b in convs])                        # [L, 1, C]
    g_stack = jnp.stack([pad_v(g) for g, _ in bns])                          # [L, 1, C]
    bt_stack = jnp.stack([pad_v(bt) for _, bt in bns])                       # [L, 1, C]
    fw = pad_w(final_w).astype(jnp.bfloat16)                                 # [C, C]
    fb = pad_v(final_b)                                                      # [1, C]

    kernel = functools.partial(_fused_gcn_kernel, n_real=n)

    out = pl.pallas_call(
        kernel,
        out_shape=jax.ShapeDtypeStruct((npad, cpad), jnp.float32),
        grid=(1,),
        in_specs=[
            pl.BlockSpec((npad, npad), lambda i: (0, 0)),              # A_hat (bf16)
            pl.BlockSpec((npad, cpad), lambda i: (0, 0)),              # X
            pl.BlockSpec((num_layers, cpad, cpad), lambda i: (0, 0, 0)),  # stacked conv W
            pl.BlockSpec((num_layers, 1, cpad), lambda i: (0, 0, 0)),     # stacked conv b
            pl.BlockSpec((num_layers, 1, cpad), lambda i: (0, 0, 0)),     # stacked BN gamma
            pl.BlockSpec((num_layers, 1, cpad), lambda i: (0, 0, 0)),     # stacked BN beta
            pl.BlockSpec((cpad, cpad), lambda i: (0, 0)),              # final W
            pl.BlockSpec((1, cpad), lambda i: (0, 0)),                 # final b
        ],
        out_specs=pl.BlockSpec((npad, cpad), lambda i: (0, 0)),
        compiler_params=pltpu.CompilerParams(
            dimension_semantics=("arbitrary",),
            vmem_limit_bytes=32 * 1024 * 1024,
        ),
    )(a_hat, xp, w_stack, b_stack, g_stack, bt_stack, fw, fb)

    return out[:n, :out_dim]


# ----------------------------------------------------------------------------
# Pure-JAX reference (f32, un-padded) for correctness checking.
# ----------------------------------------------------------------------------
def gcn_reference(params, x, edge_index):
    a_hat = build_norm_adj(edge_index, x.shape[0])
    convs, bns = params["convs"], params["bns"]
    num_layers = len(convs)
    h = x.astype(jnp.float32)
    for li, ((w, b), (g, bt)) in enumerate(zip(convs, bns)):
        y = a_hat @ (h @ w) + b
        if li < num_layers - 1:
            y = jnp.where(y >= 0.0, y, 0.2 * y)
        mean = jnp.mean(y, axis=0, keepdims=True)
        var = jnp.mean((y - mean) ** 2, axis=0, keepdims=True)
        h = (y - mean) * jax.lax.rsqrt(var + 1e-5) * g + bt
    return h @ params["final_w"] + params["final_b"]


# ----------------------------------------------------------------------------
# Parameter init (glorot for convs, like PyG GCNConv; BN affine identity).
# ----------------------------------------------------------------------------
def init_params(key, input_dim, hidden_dim, output_dim, num_layers=5):
    dims = [input_dim] + [hidden_dim] * (num_layers - 1) + [output_dim]
    convs, bns = [], []
    for li in range(num_layers):
        key, k1 = jax.random.split(key)
        c_in, c_out = dims[li], dims[li + 1]
        scale = (6.0 / (c_in + c_out)) ** 0.5
        w = jax.random.uniform(k1, (c_in, c_out), jnp.float32, -scale, scale)
        convs.append((w, jnp.zeros((c_out,), jnp.float32)))
        bns.append((jnp.ones((c_out,), jnp.float32), jnp.zeros((c_out,), jnp.float32)))
    key, k1, k2 = jax.random.split(key, 3)
    bound = 1.0 / (output_dim ** 0.5)
    final_w = jax.random.uniform(k1, (output_dim, output_dim), jnp.float32, -bound, bound)
    final_b = jax.random.uniform(k2, (output_dim,), jnp.float32, -bound, bound)
    return {"convs": convs, "bns": bns, "final_w": final_w, "final_b": final_b}


if __name__ == "__main__":
    # Small shapes consistent with the module (hidden/output dims shrunk from 512).
    NUM_NODES = 64
    NUM_EDGES = 256
    INPUT_DIM = 16
    HIDDEN_DIM = 32
    OUTPUT_DIM = 64
    NUM_LAYERS = 5

    key = jax.random.PRNGKey(0)
    key, kx, ke = jax.random.split(key, 3)
    x = jax.random.normal(kx, (NUM_NODES, INPUT_DIM), jnp.float32)
    edge_index = jax.random.randint(ke, (2, NUM_EDGES), 0, NUM_NODES, jnp.int32)

    params = init_params(key, INPUT_DIM, HIDDEN_DIM, OUTPUT_DIM, NUM_LAYERS)

    out = gcn_forward(params, x, edge_index)
    out = jax.block_until_ready(out)
    assert out.shape == (NUM_NODES, OUTPUT_DIM)
    assert bool(jnp.all(jnp.isfinite(out)))

    # Correctness vs f32 reference (loose tolerance: MXU operands are bf16).
    ref = gcn_reference(params, x, edge_index)
    assert bool(jnp.allclose(out, ref, atol=2e-1, rtol=1e-1))

    print("KERNEL_OK")
</pallas_src>

<mosaic_0001>
module attributes {stable_mosaic.version = 11 : i64} {
  func.func @_fused_gcn_kernel(%arg0: i32, %arg1: memref<128x128xbf16, #tpu.memory_space<vmem>>, %arg2: memref<128x128xf32, #tpu.memory_space<vmem>>, %arg3: memref<5x128x128xbf16, #tpu.memory_space<vmem>>, %arg4: memref<5x1x128xf32, #tpu.memory_space<vmem>>, %arg5: memref<5x1x128xf32, #tpu.memory_space<vmem>>, %arg6: memref<5x1x128xf32, #tpu.memory_space<vmem>>, %arg7: memref<128x128xbf16, #tpu.memory_space<vmem>>, %arg8: memref<1x128xf32, #tpu.memory_space<vmem>>, %arg9: memref<128x128xf32, #tpu.memory_space<vmem>>) attributes {dimension_semantics = [#tpu.dimension_semantics<arbitrary>], iteration_bounds = array<i64: 1>, scalar_prefetch = 0 : i64, scratch_operands = 0 : i64, tpu.core_type = #tpu.core_type<tc>, window_params = [{pipeline_mode = #tpu.pipeline_mode<synchronous>, transform_indices = @transform_0, window_bounds = array<i64: 128, 128>}, {pipeline_mode = #tpu.pipeline_mode<synchronous>, transform_indices = @transform_1, window_bounds = array<i64: 128, 128>}, {pipeline_mode = #tpu.pipeline_mode<synchronous>, transform_indices = @transform_2, window_bounds = array<i64: 5, 128, 128>}, {pipeline_mode = #tpu.pipeline_mode<synchronous>, transform_indices = @transform_3, window_bounds = array<i64: 5, 1, 128>}, {pipeline_mode = #tpu.pipeline_mode<synchronous>, transform_indices = @transform_4, window_bounds = array<i64: 5, 1, 128>}, {pipeline_mode = #tpu.pipeline_mode<synchronous>, transform_indices = @transform_5, window_bounds = array<i64: 5, 1, 128>}, {pipeline_mode = #tpu.pipeline_mode<synchronous>, transform_indices = @transform_6, window_bounds = array<i64: 128, 128>}, {pipeline_mode = #tpu.pipeline_mode<synchronous>, transform_indices = @transform_7, window_bounds = array<i64: 1, 128>}, {pipeline_mode = #tpu.pipeline_mode<synchronous>, transform_indices = @transform_8, window_bounds = array<i64: 128, 128>}]} {
    %c0 = arith.constant 0 : index
    %c0_0 = arith.constant 0 : index
    %0 = vector.load %arg1[%c0, %c0_0] : memref<128x128xbf16, #tpu.memory_space<vmem>>, vector<128x128xbf16>
    %c0_1 = arith.constant 0 : index
    %c0_2 = arith.constant 0 : index
    %1 = vector.load %arg2[%c0_1, %c0_2] : memref<128x128xf32, #tpu.memory_space<vmem>>, vector<128x128xf32>
    %2 = tpu.iota {dimensions = array<i32: 0>} : vector<128x1xi32>
    %c64_i32 = arith.constant 64 : i32
    %3 = vector.broadcast %c64_i32 : i32 to vector<128x1xi32>
    %4 = arith.cmpi slt, %2, %3 : vector<128x1xi32>
    %5 = arith.extui %4 : vector<128x1xi1> to vector<128x1xi32>
    %6 = arith.sitofp %5 : vector<128x1xi32> to vector<128x1xf32>
    %c0_3 = arith.constant 0 : index
    %c0_4 = arith.constant 0 : index
    %c0_5 = arith.constant 0 : index
    %7 = vector.load %arg3[%c0_3, %c0_4, %c0_5] : memref<5x128x128xbf16, #tpu.memory_space<vmem>>, vector<1x128x128xbf16>
    %8 = vector.shape_cast %7 : vector<1x128x128xbf16> to vector<128x128xbf16>
    %9 = arith.truncf %1 : vector<128x128xf32> to vector<128x128xbf16>
    %cst = arith.constant dense<0.000000e+00> : vector<128x128xf32>
    %10 = tpu.matmul %9, %8, %cst {dimension_numbers = #tpu.dot_dimension_numbers<[1], [0], [0], [1], [0, 0, 1, 1], [], []>} : vector<128x128xbf16>, vector<128x128xbf16>, vector<128x128xf32> -> vector<128x128xf32>
    %11 = arith.truncf %10 : vector<128x128xf32> to vector<128x128xbf16>
    %cst_6 = arith.constant dense<0.000000e+00> : vector<128x128xf32>
    %12 = tpu.matmul %0, %11, %cst_6 {dimension_numbers = #tpu.dot_dimension_numbers<[1], [0], [0], [1], [0, 0, 1, 1], [], []>} : vector<128x128xbf16>, vector<128x128xbf16>, vector<128x128xf32> -> vector<128x128xf32>
    %c0_7 = arith.constant 0 : index
    %c0_8 = arith.constant 0 : index
    %c0_9 = arith.constant 0 : index
    %13 = vector.load %arg4[%c0_7, %c0_8, %c0_9] : memref<5x1x128xf32, #tpu.memory_space<vmem>>, vector<1x1x128xf32>
    %14 = vector.shape_cast %13 : vector<1x1x128xf32> to vector<1x128xf32>
    %15 = vector.broadcast %14 : vector<1x128xf32> to vector<128x128xf32>
    %16 = arith.addf %12, %15 : vector<128x128xf32>
    %cst_10 = arith.constant 0.000000e+00 : f32
    %17 = vector.broadcast %cst_10 : f32 to vector<128x128xf32>
    %18 = arith.cmpf oge, %16, %17 : vector<128x128xf32>
    %cst_11 = arith.constant 2.000000e-01 : f32
    %19 = vector.broadcast %cst_11 : f32 to vector<128x128xf32>
    %20 = arith.mulf %19, %16 : vector<128x128xf32>
    %21 = arith.select %18, %16, %20 : vector<128x128xi1>, vector<128x128xf32>
    %22 = vector.broadcast %6 : vector<128x1xf32> to vector<128x128xf32>
    %23 = arith.mulf %21, %22 : vector<128x128xf32>
    %cst_12 = arith.constant dense<0.000000e+00> : vector<128xf32>
    %24 = vector.multi_reduction <add>, %23, %cst_12 [0] : vector<128x128xf32> to vector<128xf32>
    %25 = vector.shape_cast %24 : vector<128xf32> to vector<1x128xf32>
    %cst_13 = arith.constant 1.562500e-02 : f32
    %26 = vector.broadcast %cst_13 : f32 to vector<1x128xf32>
    %27 = arith.mulf %25, %26 : vector<1x128xf32>
    %28 = vector.broadcast %27 : vector<1x128xf32> to vector<128x128xf32>
    %29 = arith.subf %23, %28 : vector<128x128xf32>
    %30 = vector.broadcast %6 : vector<128x1xf32> to vector<128x128xf32>
    %31 = arith.mulf %29, %30 : vector<128x128xf32>
    %32 = arith.mulf %31, %31 : vector<128x128xf32>
    %cst_14 = arith.constant dense<0.000000e+00> : vector<128xf32>
    %33 = vector.multi_reduction <add>, %32, %cst_14 [0] : vector<128x128xf32> to vector<128xf32>
    %34 = vector.shape_cast %33 : vector<128xf32> to vector<1x128xf32>
    %cst_15 = arith.constant 1.562500e-02 : f32
    %35 = vector.broadcast %cst_15 : f32 to vector<1x128xf32>
    %36 = arith.mulf %34, %35 : vector<1x128xf32>
    %37 = vector.broadcast %27 : vector<1x128xf32> to vector<128x128xf32>
    %38 = arith.subf %23, %37 : vector<128x128xf32>
    %cst_16 = arith.constant 9.99999974E-6 : f32
    %39 = vector.broadcast %cst_16 : f32 to vector<1x128xf32>
    %40 = arith.addf %36, %39 : vector<1x128xf32>
    %41 = math.rsqrt %40 : vector<1x128xf32>
    %42 = vector.broadcast %41 : vector<1x128xf32> to vector<128x128xf32>
    %43 = arith.mulf %38, %42 : vector<128x128xf32>
    %c0_17 = arith.constant 0 : index
    %c0_18 = arith.constant 0 : index
    %c0_19 = arith.constant 0 : index
    %44 = vector.load %arg5[%c0_17, %c0_18, %c0_19] : memref<5x1x128xf32, #tpu.memory_space<vmem>>, vector<1x1x128xf32>
    %45 = vector.shape_cast %44 : vector<1x1x128xf32> to vector<1x128xf32>
    %46 = vector.broadcast %45 : vector<1x128xf32> to vector<128x128xf32>
    %47 = arith.mulf %43, %46 : vector<128x128xf32>
    %c0_20 = arith.constant 0 : index
    %c0_21 = arith.constant 0 : index
    %c0_22 = arith.constant 0 : index
    %48 = vector.load %arg6[%c0_20, %c0_21, %c0_22] : memref<5x1x128xf32, #tpu.memory_space<vmem>>, vector<1x1x128xf32>
    %49 = vector.shape_cast %48 : vector<1x1x128xf32> to vector<1x128xf32>
    %50 = vector.broadcast %49 : vector<1x128xf32> to vector<128x128xf32>
    %51 = arith.addf %47, %50 : vector<128x128xf32>
    %c1 = arith.constant 1 : index
    %c0_23 = arith.constant 0 : index
    %c0_24 = arith.constant 0 : index
    %52 = vector.load %arg3[%c1, %c0_23, %c0_24] : memref<5x128x128xbf16, #tpu.memory_space<vmem>>, vector<1x128x128xbf16>
    %53 = vector.shape_cast %52 : vector<1x128x128xbf16> to vector<128x128xbf16>
    %54 = arith.truncf %51 : vector<128x128xf32> to vector<128x128xbf16>
    %cst_25 = arith.constant dense<0.000000e+00> : vector<128x128xf32>
    %55 = tpu.matmul %54, %53, %cst_25 {dimension_numbers = #tpu.dot_dimension_numbers<[1], [0], [0], [1], [0, 0, 1, 1], [], []>} : vector<128x128xbf16>, vector<128x128xbf16>, vector<128x128xf32> -> vector<128x128xf32>
    %56 = arith.truncf %55 : vector<128x128xf32> to vector<128x128xbf16>
    %cst_26 = arith.constant dense<0.000000e+00> : vector<128x128xf32>
    %57 = tpu.matmul %0, %56, %cst_26 {dimension_numbers = #tpu.dot_dimension_numbers<[1], [0], [0], [1], [0, 0, 1, 1], [], []>} : vector<128x128xbf16>, vector<128x128xbf16>, vector<128x128xf32> -> vector<128x128xf32>
    %c1_27 = arith.constant 1 : index
    %c0_28 = arith.constant 0 : index
    %c0_29 = arith.constant 0 : index
    %58 = vector.load %arg4[%c1_27, %c0_28, %c0_29] : memref<5x1x128xf32, #tpu.memory_space<vmem>>, vector<1x1x128xf32>
    %59 = vector.shape_cast %58 : vector<1x1x128xf32> to vector<1x128xf32>
    %60 = vector.broadcast %59 : vector<1x128xf32> to vector<128x128xf32>
    %61 = arith.addf %57, %60 : vector<128x128xf32>
    %cst_30 = arith.constant 0.000000e+00 : f32
    %62 = vector.broadcast %cst_30 : f32 to vector<128x128xf32>
    %63 = arith.cmpf oge, %61, %62 : vector<128x128xf32>
    %cst_31 = arith.constant 2.000000e-01 : f32
    %64 = vector.broadcast %cst_31 : f32 to vector<128x128xf32>
    %65 = arith.mulf %64, %61 : vector<128x128xf32>
    %66 = arith.select %63, %61, %65 : vector<128x128xi1>, vector<128x128xf32>
    %67 = vector.broadcast %6 : vector<128x1xf32> to vector<128x128xf32>
    %68 = arith.mulf %66, %67 : vector<128x128xf32>
    %cst_32 = arith.constant dense<0.000000e+00> : vector<128xf32>
    %69 = vector.multi_reduction <add>, %68, %cst_32 [0] : vector<128x128xf32> to vector<128xf32>
    %70 = vector.shape_cast %69 : vector<128xf32> to vector<1x128xf32>
    %cst_33 = arith.constant 1.562500e-02 : f32
    %71 = vector.broadcast %cst_33 : f32 to vector<1x128xf32>
    %72 = arith.mulf %70, %71 : vector<1x128xf32>
    %73 = vector.broadcast %72 : vector<1x128xf32> to vector<128x128xf32>
    %74 = arith.subf %68, %73 : vector<128x128xf32>
    %75 = vector.broadcast %6 : vector<128x1xf32> to vector<128x128xf32>
    %76 = arith.mulf %74, %75 : vector<128x128xf32>
    %77 = arith.mulf %76, %76 : vector<128x128xf32>
    %cst_34 = arith.constant dense<0.000000e+00> : vector<128xf32>
    %78 = vector.multi_reduction <add>, %77, %cst_34 [0] : vector<128x128xf32> to vector<128xf32>
    %79 = vector.shape_cast %78 : vector<128xf32> to vector<1x128xf32>
    %cst_35 = arith.constant 1.562500e-02 : f32
    %80 = vector.broadcast %cst_35 : f32 to vector<1x128xf32>
    %81 = arith.mulf %79, %80 : vector<1x128xf32>
    %82 = vector.broadcast %72 : vector<1x128xf32> to vector<128x128xf32>
    %83 = arith.subf %68, %82 : vector<128x128xf32>
    %cst_36 = arith.constant 9.99999974E-6 : f32
    %84 = vector.broadcast %cst_36 : f32 to vector<1x128xf32>
    %85 = arith.addf %81, %84 : vector<1x128xf32>
    %86 = math.rsqrt %85 : vector<1x128xf32>
    %87 = vector.broadcast %86 : vector<1x128xf32> to vector<128x128xf32>
    %88 = arith.mulf %83, %87 : vector<128x128xf32>
    %c1_37 = arith.constant 1 : index
    %c0_38 = arith.constant 0 : index
    %c0_39 = arith.constant 0 : index
    %89 = vector.load %arg5[%c1_37, %c0_38, %c0_39] : memref<5x1x128xf32, #tpu.memory_space<vmem>>, vector<1x1x128xf32>
    %90 = vector.shape_cast %89 : vector<1x1x128xf32> to vector<1x128xf32>
    %91 = vector.broadcast %90 : vector<1x128xf32> to vector<128x128xf32>
    %92 = arith.mulf %88, %91 : vector<128x128xf32>
    %c1_40 = arith.constant 1 : index
    %c0_41 = arith.constant 0 : index
    %c0_42 = arith.constant 0 : index
    %93 = vector.load %arg6[%c1_40, %c0_41, %c0_42] : memref<5x1x128xf32, #tpu.memory_space<vmem>>, vector<1x1x128xf32>
    %94 = vector.shape_cast %93 : vector<1x1x128xf32> to vector<1x128xf32>
    %95 = vector.broadcast %94 : vector<1x128xf32> to vector<128x128xf32>
    %96 = arith.addf %92, %95 : vector<128x128xf32>
    %c2 = arith.constant 2 : index
    %c0_43 = arith.constant 0 : index
    %c0_44 = arith.constant 0 : index
    %97 = vector.load %arg3[%c2, %c0_43, %c0_44] : memref<5x128x128xbf16, #tpu.memory_space<vmem>>, vector<1x128x128xbf16>
    %98 = vector.shape_cast %97 : vector<1x128x128xbf16> to vector<128x128xbf16>
    %99 = arith.truncf %96 : vector<128x128xf32> to vector<128x128xbf16>
    %cst_45 = arith.constant dense<0.000000e+00> : vector<128x128xf32>
    %100 = tpu.matmul %99, %98, %cst_45 {dimension_numbers = #tpu.dot_dimension_numbers<[1], [0], [0], [1], [0, 0, 1, 1], [], []>} : vector<128x128xbf16>, vector<128x128xbf16>, vector<128x128xf32> -> vector<128x128xf32>
    %101 = arith.truncf %100 : vector<128x128xf32> to vector<128x128xbf16>
    %cst_46 = arith.constant dense<0.000000e+00> : vector<128x128xf32>
    %102 = tpu.matmul %0, %101, %cst_46 {dimension_numbers = #tpu.dot_dimension_numbers<[1], [0], [0], [1], [0, 0, 1, 1], [], []>} : vector<128x128xbf16>, vector<128x128xbf16>, vector<128x128xf32> -> vector<128x128xf32>
    %c2_47 = arith.constant 2 : index
    %c0_48 = arith.constant 0 : index
    %c0_49 = arith.constant 0 : index
    %103 = vector.load %arg4[%c2_47, %c0_48, %c0_49] : memref<5x1x128xf32, #tpu.memory_space<vmem>>, vector<1x1x128xf32>
    %104 = vector.shape_cast %103 : vector<1x1x128xf32> to vector<1x128xf32>
    %105 = vector.broadcast %104 : vector<1x128xf32> to vector<128x128xf32>
    %106 = arith.addf %102, %105 : vector<128x128xf32>
    %cst_50 = arith.constant 0.000000e+00 : f32
    %107 = vector.broadcast %cst_50 : f32 to vector<128x128xf32>
    %108 = arith.cmpf oge, %106, %107 : vector<128x128xf32>
    %cst_51 = arith.constant 2.000000e-01 : f32
    %109 = vector.broadcast %cst_51 : f32 to vector<128x128xf32>
    %110 = arith.mulf %109, %106 : vector<128x128xf32>
    %111 = arith.select %108, %106, %110 : vector<128x128xi1>, vector<128x128xf32>
    %112 = vector.broadcast %6 : vector<128x1xf32> to vector<128x128xf32>
    %113 = arith.mulf %111, %112 : vector<128x128xf32>
    %cst_52 = arith.constant dense<0.000000e+00> : vector<128xf32>
    %114 = vector.multi_reduction <add>, %113, %cst_52 [0] : vector<128x128xf32> to vector<128xf32>
    %115 = vector.shape_cast %114 : vector<128xf32> to vector<1x128xf32>
    %cst_53 = arith.constant 1.562500e-02 : f32
    %116 = vector.broadcast %cst_53 : f32 to vector<1x128xf32>
    %117 = arith.mulf %115, %116 : vector<1x128xf32>
    %118 = vector.broadcast %117 : vector<1x128xf32> to vector<128x128xf32>
    %119 = arith.subf %113, %118 : vector<128x128xf32>
    %120 = vector.broadcast %6 : vector<128x1xf32> to vector<128x128xf32>
    %121 = arith.mulf %119, %120 : vector<128x128xf32>
    %122 = arith.mulf %121, %121 : vector<128x128xf32>
    %cst_54 = arith.constant dense<0.000000e+00> : vector<128xf32>
    %123 = vector.multi_reduction <add>, %122, %cst_54 [0] : vector<128x128xf32> to vector<128xf32>
    %124 = vector.shape_cast %123 : vector<128xf32> to vector<1x128xf32>
    %cst_55 = arith.constant 1.562500e-02 : f32
    %125 = vector.broadcast %cst_55 : f32 to vector<1x128xf32>
    %126 = arith.mulf %124, %125 : vector<1x128xf32>
    %127 = vector.broadcast %117 : vector<1x128xf32> to vector<128x128xf32>
    %128 = arith.subf %113, %127 : vector<128x128xf32>
    %cst_56 = arith.constant 9.99999974E-6 : f32
    %129 = vector.broadcast %cst_56 : f32 to vector<1x128xf32>
    %130 = arith.addf %126, %129 : vector<1x128xf32>
    %131 = math.rsqrt %130 : vector<1x128xf32>
    %132 = vector.broadcast %131 : vector<1x128xf32> to vector<128x128xf32>
    %133 = arith.mulf %128, %132 : vector<128x128xf32>
    %c2_57 = arith.constant 2 : index
    %c0_58 = arith.constant 0 : index
    %c0_59 = arith.constant 0 : index
    %134 = vector.load %arg5[%c2_57, %c0_58, %c0_59] : memref<5x1x128xf32, #tpu.memory_space<vmem>>, vector<1x1x128xf32>
    %135 = vector.shape_cast %134 : vector<1x1x128xf32> to vector<1x128xf32>
    %136 = vector.broadcast %135 : vector<1x128xf32> to vector<128x128xf32>
    %137 = arith.mulf %133, %136 : vector<128x128xf32>
    %c2_60 = arith.constant 2 : index
    %c0_61 = arith.constant 0 : index
    %c0_62 = arith.constant 0 : index
    %138 = vector.load %arg6[%c2_60, %c0_61, %c0_62] : memref<5x1x128xf32, #tpu.memory_space<vmem>>, vector<1x1x128xf32>
    %139 = vector.shape_cast %138 : vector<1x1x128xf32> to vector<1x128xf32>
    %140 = vector.broadcast %139 : vector<1x128xf32> to vector<128x128xf32>
    %141 = arith.addf %137, %140 : vector<128x128xf32>
    %c3 = arith.constant 3 : index
    %c0_63 = arith.constant 0 : index
    %c0_64 = arith.constant 0 : index
    %142 = vector.load %arg3[%c3, %c0_63, %c0_64] : memref<5x128x128xbf16, #tpu.memory_space<vmem>>, vector<1x128x128xbf16>
    %143 = vector.shape_cast %142 : vector<1x128x128xbf16> to vector<128x128xbf16>
    %144 = arith.truncf %141 : vector<128x128xf32> to vector<128x128xbf16>
    %cst_65 = arith.constant dense<0.000000e+00> : vector<128x128xf32>
    %145 = tpu.matmul %144, %143, %cst_65 {dimension_numbers = #tpu.dot_dimension_numbers<[1], [0], [0], [1], [0, 0, 1, 1], [], []>} : vector<128x128xbf16>, vector<128x128xbf16>, vector<128x128xf32> -> vector<128x128xf32>
    %146 = arith.truncf %145 : vector<128x128xf32> to vector<128x128xbf16>
    %cst_66 = arith.constant dense<0.000000e+00> : vector<128x128xf32>
    %147 = tpu.matmul %0, %146, %cst_66 {dimension_numbers = #tpu.dot_dimension_numbers<[1], [0], [0], [1], [0, 0, 1, 1], [], []>} : vector<128x128xbf16>, vector<128x128xbf16>, vector<128x128xf32> -> vector<128x128xf32>
    %c3_67 = arith.constant 3 : index
    %c0_68 = arith.constant 0 : index
    %c0_69 = arith.constant 0 : index
    %148 = vector.load %arg4[%c3_67, %c0_68, %c0_69] : memref<5x1x128xf32, #tpu.memory_space<vmem>>, vector<1x1x128xf32>
    %149 = vector.shape_cast %148 : vector<1x1x128xf32> to vector<1x128xf32>
    %150 = vector.broadcast %149 : vector<1x128xf32> to vector<128x128xf32>
    %151 = arith.addf %147, %150 : vector<128x128xf32>
    %cst_70 = arith.constant 0.000000e+00 : f32
    %152 = vector.broadcast %cst_70 : f32 to vector<128x128xf32>
    %153 = arith.cmpf oge, %151, %152 : vector<128x128xf32>
    %cst_71 = arith.constant 2.000000e-01 : f32
    %154 = vector.broadcast %cst_71 : f32 to vector<128x128xf32>
    %155 = arith.mulf %154, %151 : vector<128x128xf32>
    %156 = arith.select %153, %151, %155 : vector<128x128xi1>, vector<128x128xf32>
    %157 = vector.broadcast %6 : vector<128x1xf32> to vector<128x128xf32>
    %158 = arith.mulf %156, %157 : vector<128x128xf32>
    %cst_72 = arith.constant dense<0.000000e+00> : vector<128xf32>
    %159 = vector.multi_reduction <add>, %158, %cst_72 [0] : vector<128x128xf32> to vector<128xf32>
    %160 = vector.shape_cast %159 : vector<128xf32> to vector<1x128xf32>
    %cst_73 = arith.constant 1.562500e-02 : f32
    %161 = vector.broadcast %cst_73 : f32 to vector<1x128xf32>
    %162 = arith.mulf %160, %161 : vector<1x128xf32>
    %163 = vector.broadcast %162 : vector<1x128xf32> to vector<128x128xf32>
    %164 = arith.subf %158, %163 : vector<128x128xf32>
    %165 = vector.broadcast %6 : vector<128x1xf32> to vector<128x128xf32>
    %166 = arith.mulf %164, %165 : vector<128x128xf32>
    %167 = arith.mulf %166, %166 : vector<128x128xf32>
    %cst_74 = arith.constant dense<0.000000e+00> : vector<128xf32>
    %168 = vector.multi_reduction <add>, %167, %cst_74 [0] : vector<128x128xf32> to vector<128xf32>
    %169 = vector.shape_cast %168 : vector<128xf32> to vector<1x128xf32>
    %cst_75 = arith.constant 1.562500e-02 : f32
    %170 = vector.broadcast %cst_75 : f32 to vector<1x128xf32>
    %171 = arith.mulf %169, %170 : vector<1x128xf32>
    %172 = vector.broadcast %162 : vector<1x128xf32> to vector<128x128xf32>
    %173 = arith.subf %158, %172 : vector<128x128xf32>
    %cst_76 = arith.constant 9.99999974E-6 : f32
    %174 = vector.broadcast %cst_76 : f32 to vector<1x128xf32>
    %175 = arith.addf %171, %174 : vector<1x128xf32>
    %176 = math.rsqrt %175 : vector<1x128xf32>
    %177 = vector.broadcast %176 : vector<1x128xf32> to vector<128x128xf32>
    %178 = arith.mulf %173, %177 : vector<128x128xf32>
    %c3_77 = arith.constant 3 : index
    %c0_78 = arith.constant 0 : index
    %c0_79 = arith.constant 0 : index
    %179 = vector.load %arg5[%c3_77, %c0_78, %c0_79] : memref<5x1x128xf32, #tpu.memory_space<vmem>>, vector<1x1x128xf32>
    %180 = vector.shape_cast %179 : vector<1x1x128xf32> to vector<1x128xf32>
    %181 = vector.broadcast %180 : vector<1x128xf32> to vector<128x128xf32>
    %182 = arith.mulf %178, %181 : vector<128x128xf32>
    %c3_80 = arith.constant 3 : index
    %c0_81 = arith.constant 0 : index
    %c0_82 = arith.constant 0 : index
    %183 = vector.load %arg6[%c3_80, %c0_81, %c0_82] : memref<5x1x128xf32, #tpu.memory_space<vmem>>, vector<1x1x128xf32>
    %184 = vector.shape_cast %183 : vector<1x1x128xf32> to vector<1x128xf32>
    %185 = vector.broadcast %184 : vector<1x128xf32> to vector<128x128xf32>
    %186 = arith.addf %182, %185 : vector<128x128xf32>
    %c4 = arith.constant 4 : index
    %c0_83 = arith.constant 0 : index
    %c0_84 = arith.constant 0 : index
    %187 = vector.load %arg3[%c4, %c0_83, %c0_84] : memref<5x128x128xbf16, #tpu.memory_space<vmem>>, vector<1x128x128xbf16>
    %188 = vector.shape_cast %187 : vector<1x128x128xbf16> to vector<128x128xbf16>
    %189 = arith.truncf %186 : vector<128x128xf32> to vector<128x128xbf16>
    %cst_85 = arith.constant dense<0.000000e+00> : vector<128x128xf32>
    %190 = tpu.matmul %189, %188, %cst_85 {dimension_numbers = #tpu.dot_dimension_numbers<[1], [0], [0], [1], [0, 0, 1, 1], [], []>} : vector<128x128xbf16>, vector<128x128xbf16>, vector<128x128xf32> -> vector<128x128xf32>
    %191 = arith.truncf %190 : vector<128x128xf32> to vector<128x128xbf16>
    %cst_86 = arith.constant dense<0.000000e+00> : vector<128x128xf32>
    %192 = tpu.matmul %0, %191, %cst_86 {dimension_numbers = #tpu.dot_dimension_numbers<[1], [0], [0], [1], [0, 0, 1, 1], [], []>} : vector<128x128xbf16>, vector<128x128xbf16>, vector<128x128xf32> -> vector<128x128xf32>
    %c4_87 = arith.constant 4 : index
    %c0_88 = arith.constant 0 : index
    %c0_89 = arith.constant 0 : index
    %193 = vector.load %arg4[%c4_87, %c0_88, %c0_89] : memref<5x1x128xf32, #tpu.memory_space<vmem>>, vector<1x1x128xf32>
    %194 = vector.shape_cast %193 : vector<1x1x128xf32> to vector<1x128xf32>
    %195 = vector.broadcast %194 : vector<1x128xf32> to vector<128x128xf32>
    %196 = arith.addf %192, %195 : vector<128x128xf32>
    %197 = vector.broadcast %6 : vector<128x1xf32> to vector<128x128xf32>
    %198 = arith.mulf %196, %197 : vector<128x128xf32>
    %cst_90 = arith.constant dense<0.000000e+00> : vector<128xf32>
    %199 = vector.multi_reduction <add>, %198, %cst_90 [0] : vector<128x128xf32> to vector<128xf32>
    %200 = vector.shape_cast %199 : vector<128xf32> to vector<1x128xf32>
    %cst_91 = arith.constant 1.562500e-02 : f32
    %201 = vector.broadcast %cst_91 : f32 to vector<1x128xf32>
    %202 = arith.mulf %200, %201 : vector<1x128xf32>
    %203 = vector.broadcast %202 : vector<1x128xf32> to vector<128x128xf32>
    %204 = arith.subf %198, %203 : vector<128x128xf32>
    %205 = vector.broadcast %6 : vector<128x1xf32> to vector<128x128xf32>
    %206 = arith.mulf %204, %205 : vector<128x128xf32>
    %207 = arith.mulf %206, %206 : vector<128x128xf32>
    %cst_92 = arith.constant dense<0.000000e+00> : vector<128xf32>
    %208 = vector.multi_reduction <add>, %207, %cst_92 [0] : vector<128x128xf32> to vector<128xf32>
    %209 = vector.shape_cast %208 : vector<128xf32> to vector<1x128xf32>
    %cst_93 = arith.constant 1.562500e-02 : f32
    %210 = vector.broadcast %cst_93 : f32 to vector<1x128xf32>
    %211 = arith.mulf %209, %210 : vector<1x128xf32>
    %212 = vector.broadcast %202 : vector<1x128xf32> to vector<128x128xf32>
    %213 = arith.subf %198, %212 : vector<128x128xf32>
    %cst_94 = arith.constant 9.99999974E-6 : f32
    %214 = vector.broadcast %cst_94 : f32 to vector<1x128xf32>
    %215 = arith.addf %211, %214 : vector<1x128xf32>
    %216 = math.rsqrt %215 : vector<1x128xf32>
    %217 = vector.broadcast %216 : vector<1x128xf32> to vector<128x128xf32>
    %218 = arith.mulf %213, %217 : vector<128x128xf32>
    %c4_95 = arith.constant 4 : index
    %c0_96 = arith.constant 0 : index
    %c0_97 = arith.constant 0 : index
    %219 = vector.load %arg5[%c4_95, %c0_96, %c0_97] : memref<5x1x128xf32, #tpu.memory_space<vmem>>, vector<1x1x128xf32>
    %220 = vector.shape_cast %219 : vector<1x1x128xf32> to vector<1x128xf32>
    %221 = vector.broadcast %220 : vector<1x128xf32> to vector<128x128xf32>
    %222 = arith.mulf %218, %221 : vector<128x128xf32>
    %c4_98 = arith.constant 4 : index
    %c0_99 = arith.constant 0 : index
    %c0_100 = arith.constant 0 : index
    %223 = vector.load %arg6[%c4_98, %c0_99, %c0_100] : memref<5x1x128xf32, #tpu.memory_space<vmem>>, vector<1x1x128xf32>
    %224 = vector.shape_cast %223 : vector<1x1x128xf32> to vector<1x128xf32>
    %225 = vector.broadcast %224 : vector<1x128xf32> to vector<128x128xf32>
    %226 = arith.addf %222, %225 : vector<128x128xf32>
    %227 = arith.truncf %226 : vector<128x128xf32> to vector<128x128xbf16>
    %c0_101 = arith.constant 0 : index
    %c0_102 = arith.constant 0 : index
    %228 = vector.load %arg7[%c0_101, %c0_102] : memref<128x128xbf16, #tpu.memory_space<vmem>>, vector<128x128xbf16>
    %cst_103 = arith.constant dense<0.000000e+00> : vector<128x128xf32>
    %229 = tpu.matmul %227, %228, %cst_103 {dimension_numbers = #tpu.dot_dimension_numbers<[1], [0], [0], [1], [0, 0, 1, 1], [], []>} : vector<128x128xbf16>, vector<128x128xbf16>, vector<128x128xf32> -> vector<128x128xf32>
    %c0_104 = arith.constant 0 : index
    %c0_105 = arith.constant 0 : index
    %230 = vector.load %arg8[%c0_104, %c0_105] : memref<1x128xf32, #tpu.memory_space<vmem>>, vector<1x128xf32>
    %231 = vector.broadcast %230 : vector<1x128xf32> to vector<128x128xf32>
    %232 = arith.addf %229, %231 : vector<128x128xf32>
    %c0_106 = arith.constant 0 : index
    %c0_107 = arith.constant 0 : index
    %233 = vector.load %arg9[%c0_106, %c0_107] : memref<128x128xf32, #tpu.memory_space<vmem>>, vector<128x128xf32>
    tpu.vector_store %arg9[%c0_106, %c0_107], %232 {strides = array<i32>} : memref<128x128xf32, #tpu.memory_space<vmem>>, vector<128x128xf32>,
    return
  }
  func.func @transform_0(%arg0: i32) -> (i32, i32) {
    %c0_i32 = arith.constant 0 : i32
    %c0_i32_0 = arith.constant 0 : i32
    %c0_i32_1 = arith.constant 0 : i32
    return %c0_i32, %c0_i32_0 : i32, i32
  }
  func.func @transform_1(%arg0: i32) -> (i32, i32) {
    %c0_i32 = arith.constant 0 : i32
    %c0_i32_0 = arith.constant 0 : i32
    %c0_i32_1 = arith.constant 0 : i32
    return %c0_i32, %c0_i32_0 : i32, i32
  }
  func.func @transform_2(%arg0: i32) -> (i32, i32, i32) {
    %c0_i32 = arith.constant 0 : i32
    %c0_i32_0 = arith.constant 0 : i32
    %c0_i32_1 = arith.constant 0 : i32
    %c0_i32_2 = arith.constant 0 : i32
    return %c0_i32, %c0_i32_0, %c0_i32_1 : i32, i32, i32
  }
  func.func @transform_3(%arg0: i32) -> (i32, i32, i32) {
    %c0_i32 = arith.constant 0 : i32
    %c0_i32_0 = arith.constant 0 : i32
    %c0_i32_1 = arith.constant 0 : i32
    %c0_i32_2 = arith.constant 0 : i32
    return %c0_i32, %c0_i32_0, %c0_i32_1 : i32, i32, i32
  }
  func.func @transform_4(%arg0: i32) -> (i32, i32, i32) {
    %c0_i32 = arith.constant 0 : i32
    %c0_i32_0 = arith.constant 0 : i32
    %c0_i32_1 = arith.constant 0 : i32
    %c0_i32_2 = arith.constant 0 : i32
    return %c0_i32, %c0_i32_0, %c0_i32_1 : i32, i32, i32
  }
  func.func @transform_5(%arg0: i32) -> (i32, i32, i32) {
    %c0_i32 = arith.constant 0 : i32
    %c0_i32_0 = arith.constant 0 : i32
    %c0_i32_1 = arith.constant 0 : i32
    %c0_i32_2 = arith.constant 0 : i32
    return %c0_i32, %c0_i32_0, %c0_i32_1 : i32, i32, i32
  }
  func.func @transform_6(%arg0: i32) -> (i32, i32) {
    %c0_i32 = arith.constant 0 : i32
    %c0_i32_0 = arith.constant 0 : i32
    %c0_i32_1 = arith.constant 0 : i32
    return %c0_i32, %c0_i32_0 : i32, i32
  }
  func.func @transform_7(%arg0: i32) -> (i32, i32) {
    %c0_i32 = arith.constant 0 : i32
    %c0_i32_0 = arith.constant 0 : i32
    %c0_i32_1 = arith.constant 0 : i32
    return %c0_i32, %c0_i32_0 : i32, i32
  }
  func.func @transform_8(%arg0: i32) -> (i32, i32) {
    %c0_i32 = arith.constant 0 : i32
    %c0_i32_0 = arith.constant 0 : i32
    %c0_i32_1 = arith.constant 0 : i32
    return %c0_i32, %c0_i32_0 : i32, i32
  }
}

</mosaic_0001>

<llo_original>
// kernel: tpu_custom_call.1
$region0: #{tpu_custom_call.1}
  #allocation0 [shape = 'u32[]', space=smem, size = 0x4, offset = 0x4, fixed_abs, tag = 'smem constant byte address 0x4 - core index']
  #allocation1 [shape = 'u32[144,128]{1,0:T(1,128)}', space=vmem, size = 0x12000, scoped, tag = 'internal scratch']
  %s0 = inlined_call_operand.hbm [shape: bf16[128,128], index: 0, kind: input, shape index: {}]
  %s1 = inlined_call_operand.hbm [shape: f32[128,128], index: 1, kind: input, shape index: {}]
  %s2 = inlined_call_operand.hbm [shape: bf16[5,128,128], index: 2, kind: input, shape index: {}]
  %s3 = inlined_call_operand.vmem [shape: f32[5,1,128], index: 3, kind: input, shape index: {}]
  %s4 = inlined_call_operand.vmem [shape: f32[5,1,128], index: 4, kind: input, shape index: {}]
  %s5 = inlined_call_operand.vmem [shape: f32[5,1,128], index: 5, kind: input, shape index: {}]
  %s6 = inlined_call_operand.hbm [shape: bf16[128,128], index: 6, kind: input, shape index: {}]
  %s7 = inlined_call_operand.vmem [shape: f32[1,128], index: 7, kind: input, shape index: {}]
  %s8 = inlined_call_operand.hbm [shape: f32[128,128], index: 8, kind: output, shape index: {}]
  %s9 = sld [smem:[#allocation0]]
  $region58: #{tpu_custom_call.1} parent=0
    _
  %s11 = ssub.s32 1, %s9
  %s12 = scalar_select 0, %s11, %s9
  $region1: #{tpu_custom_call.1} parent=0
    #allocation2 [shape = 'u8[32768]{0}', space=vmem, size = 0x8000, scoped, tag = 'input window, operand 0, single buffered']
    #allocation3 [shape = 's32[1]{0}', space=sflag, size = 0x4, scoped, tag = 'scoped memory for tpu_custom_call.1']
    #allocation4 [shape = 's32[1]{0}', space=sflag, size = 0x4, scoped, tag = 'scoped memory for tpu_custom_call.1']
    #allocation5 [shape = 'u8[65536]{0}', space=vmem, size = 0x10000, scoped, tag = 'input window, operand 1, single buffered']
    #allocation6 [shape = 's32[1]{0}', space=sflag, size = 0x4, scoped, tag = 'scoped memory for tpu_custom_call.1']
    #allocation7 [shape = 'u8[163840]{0}', space=vmem, size = 0x28000, scoped, tag = 'input window, operand 2, single buffered']
    #allocation8 [shape = 'u8[32768]{0}', space=vmem, size = 0x8000, scoped, tag = 'input window, operand 6, single buffered']
    #allocation9 [shape = 's32[1]{0}', space=sflag, size = 0x4, scoped, tag = 'scoped memory for tpu_custom_call.1']
    #allocation10 [shape = 'u8[65536]{0}', space=vmem, size = 0x10000, scoped, tag = 'output window, operand 0, single buffered']
    %13 = vsyncpa [#allocation3], 0
    %14 = vsyncpa [#allocation6], 0
    %15 = vsyncpa [#allocation9], 0
    %16 = vsyncpa [#allocation4], 0
    // Predicated region
    $region2: #{tpu_custom_call.1} parent=1 // pred_check
      _
    $region3: #{tpu_custom_call.1} parent=1 // pred_check_branch
      %18 = sbr.rel (0) target = $region5
    $region4: #{tpu_custom_call.1} parent=1 // pred_region
      %s20 = ssub.s32 1024, 1024
      %21 = vsyncadd [#allocation3], %s20
      %s22 = sshll.u32 [#allocation2], 4
      %s23 = int_to_ptr.vmem [resolvable:$true] %s22
      %28 = dma.hbm_to_vmem [thread:$0]  %s0, 1024, %s23, [#allocation3], 64, 64, 4
    $region5: #{tpu_custom_call.1} parent=1 // pred_fallthru
      _
    // Predicated region
    $region6: #{tpu_custom_call.1} parent=1 // pred_check
      _
    $region7: #{tpu_custom_call.1} parent=1 // pred_check_branch
      %30 = sbr.rel (0) target = $region9
    $region8: #{tpu_custom_call.1} parent=1 // pred_region
      %s32 = ssub.s32 2048, 2048
      %33 = vsyncadd [#allocation6], %s32
      %s34 = sshll.u32 [#allocation5], 4
      %s35 = int_to_ptr.vmem [resolvable:$true] %s34
      %40 = dma.hbm_to_vmem [thread:$0]  %s1, 2048, %s35, [#allocation6], 128, 128, 8
    $region9: #{tpu_custom_call.1} parent=1 // pred_fallthru
      _
    // Predicated region
    $region10: #{tpu_custom_call.1} parent=1 // pred_check
      _
    $region11: #{tpu_custom_call.1} parent=1 // pred_check_branch
      %42 = sbr.rel (0) target = $region13
    $region12: #{tpu_custom_call.1} parent=1 // pred_region
      %s44 = ssub.s32 5120, 5120
      %45 = vsyncadd [#allocation6], %s44
      %s46 = sshll.u32 [#allocation7], 4
      %s47 = int_to_ptr.vmem [resolvable:$true] %s46
      %52 = dma.hbm_to_vmem [thread:$0]  %s2, 5120, %s47, [#allocation6], 64, 64, 4
    $region13: #{tpu_custom_call.1} parent=1 // pred_fallthru
      _
    // Predicated region
    $region14: #{tpu_custom_call.1} parent=1 // pred_check
      _
    $region15: #{tpu_custom_call.1} parent=1 // pred_check_branch
      %54 = sbr.rel (0) target = $region17
    $region16: #{tpu_custom_call.1} parent=1 // pred_region
      _
    $region17: #{tpu_custom_call.1} parent=1 // pred_fallthru
      _
    // Predicated region
    $region18: #{tpu_custom_call.1} parent=1 // pred_check
      _
    $region19: #{tpu_custom_call.1} parent=1 // pred_check_branch
      %56 = sbr.rel (0) target = $region21
    $region20: #{tpu_custom_call.1} parent=1 // pred_region
      _
    $region21: #{tpu_custom_call.1} parent=1 // pred_fallthru
      _
    // Predicated region
    $region22: #{tpu_custom_call.1} parent=1 // pred_check
      _
    $region23: #{tpu_custom_call.1} parent=1 // pred_check_branch
      %58 = sbr.rel (0) target = $region25
    $region24: #{tpu_custom_call.1} parent=1 // pred_region
      _
    $region25: #{tpu_custom_call.1} parent=1 // pred_fallthru
      _
    // Predicated region
    $region26: #{tpu_custom_call.1} parent=1 // pred_check
      _
    $region27: #{tpu_custom_call.1} parent=1 // pred_check_branch
      %60 = sbr.rel (0) target = $region29
    $region28: #{tpu_custom_call.1} parent=1 // pred_region
      %s62 = ssub.s32 1024, 1024
      %63 = vsyncadd [#allocation9], %s62
      %s64 = sshll.u32 [#allocation8], 4
      %s65 = int_to_ptr.vmem [resolvable:$true] %s64
      %70 = dma.hbm_to_vmem [thread:$0]  %s6, 1024, %s65, [#allocation9], 64, 64, 4
    $region29: #{tpu_custom_call.1} parent=1 // pred_fallthru
      _
    // Predicated region
    $region30: #{tpu_custom_call.1} parent=1 // pred_check
      _
    $region31: #{tpu_custom_call.1} parent=1 // pred_check_branch
      %72 = sbr.rel (0) target = $region33
    $region32: #{tpu_custom_call.1} parent=1 // pred_region
      _
    $region33: #{tpu_custom_call.1} parent=1 // pred_fallthru
      _
    // Predicated region
    $region34: #{tpu_custom_call.1} parent=1 // pred_check
      _
    $region35: #{tpu_custom_call.1} parent=1 // pred_check_branch
      %74 = sbr.rel (0) target = $region37
    $region36: #{tpu_custom_call.1} parent=1 // pred_region
      %75 = dma.done [#allocation3], 1024
    $region37: #{tpu_custom_call.1} parent=1 // pred_fallthru
      _
    // Predicated region
    $region38: #{tpu_custom_call.1} parent=1 // pred_check
      _
    $region39: #{tpu_custom_call.1} parent=1 // pred_check_branch
      %77 = sbr.rel (0) target = $region41
    $region40: #{tpu_custom_call.1} parent=1 // pred_region
      %78 = dma.done [#allocation6], 2048
    $region41: #{tpu_custom_call.1} parent=1 // pred_fallthru
      _
    // Predicated region
    $region42: #{tpu_custom_call.1} parent=1 // pred_check
      _
    $region43: #{tpu_custom_call.1} parent=1 // pred_check_branch
      %80 = sbr.rel (0) target = $region45
    $region44: #{tpu_custom_call.1} parent=1 // pred_region
      %81 = dma.done [#allocation6], 5120
    $region45: #{tpu_custom_call.1} parent=1 // pred_fallthru
      _
    // Predicated region
    $region46: #{tpu_custom_call.1} parent=1 // pred_check
      _
    $region47: #{tpu_custom_call.1} parent=1 // pred_check_branch
      %83 = sbr.rel (0) target = $region49
    $region48: #{tpu_custom_call.1} parent=1 // pred_region
      %84 = dma.done [#allocation9], 1024
    $region49: #{tpu_custom_call.1} parent=1 // pred_fallthru
      _
    %v86 = vld [vmem:[#allocation2] sm:$0xf]
    %v87 = vld [vmem:[#allocation2 + $0x4] sm:$0xf]
    %v88 = vld [vmem:[#allocation2 + $0x8] sm:$0xf]
    %v89 = vld [vmem:[#allocation2 + $0xc] sm:$0xf]
    %v90 = vld [vmem:[#allocation2 + $0x10] sm:$0xf]
    %v91 = vld [vmem:[#allocation2 + $0x14] sm:$0xf]
    %v92 = vld [vmem:[#allocation2 + $0x18] sm:$0xf]
    %v93 = vld [vmem:[#allocation2 + $0x1c] sm:$0xf]
    %v94 = vld [vmem:[#allocation2 + $0x20] sm:$0xf]
    %v95 = vld [vmem:[#allocation2 + $0x24] sm:$0xf]
    %v96 = vld [vmem:[#allocation2 + $0x28] sm:$0xf]
    %v97 = vld [vmem:[#allocation2 + $0x2c] sm:$0xf]
    %v98 = vld [vmem:[#allocation2 + $0x30] sm:$0xf]
    %v99 = vld [vmem:[#allocation2 + $0x34] sm:$0xf]
    %v100 = vld [vmem:[#allocation2 + $0x38] sm:$0xf]
    %v101 = vld [vmem:[#allocation2 + $0x3c] sm:$0xf]
    %v102 = vld [vmem:[#allocation5] sm:$0xff]
    %v103 = vld [vmem:[#allocation5 + $0x8] sm:$0xff]
    %v104 = vld [vmem:[#allocation5 + $0x10] sm:$0xff]
    %v105 = vld [vmem:[#allocation5 + $0x18] sm:$0xff]
    %v106 = vld [vmem:[#allocation5 + $0x20] sm:$0xff]
    %v107 = vld [vmem:[#allocation5 + $0x28] sm:$0xff]
    %v108 = vld [vmem:[#allocation5 + $0x30] sm:$0xff]
    %v109 = vld [vmem:[#allocation5 + $0x38] sm:$0xff]
    %v110 = vld [vmem:[#allocation5 + $0x40] sm:$0xff]
    %v111 = vld [vmem:[#allocation5 + $0x48] sm:$0xff]
    %v112 = vld [vmem:[#allocation5 + $0x50] sm:$0xff]
    %v113 = vld [vmem:[#allocation5 + $0x58] sm:$0xff]
    %v114 = vld [vmem:[#allocation5 + $0x60] sm:$0xff]
    %v115 = vld [vmem:[#allocation5 + $0x68] sm:$0xff]
    %v116 = vld [vmem:[#allocation5 + $0x70] sm:$0xff]
    %v117 = vld [vmem:[#allocation5 + $0x78] sm:$0xff]
    %v118 = vlaneseq
    %v119 = vshrl.u32 %v118, 7
    %v120 = vadd.s32 %v119, 8
    %v121 = vadd.s32 %v119, 16
    %v122 = vadd.s32 %v119, 24
    %v123 = vadd.s32 %v119, 32
    %v124 = vadd.s32 %v119, 40
    %v125 = vadd.s32 %v119, 48
    %v126 = vadd.s32 %v119, 56
    %v127 = vadd.s32 %v119, 64
    %v128 = vadd.s32 %v119, 72
    %v129 = vadd.s32 %v119, 80
    %v130 = vadd.s32 %v119, 88
    %v131 = vadd.s32 %v119, 96
    %v132 = vadd.s32 %v119, 104
    %v133 = vadd.s32 %v119, 112
    %v134 = vadd.s32 %v119, 120
    %vm135 = vcmp.lt.s32.totalorder %v119, 64
    %vm136 = vcmp.lt.s32.totalorder %v120, 64
    %vm137 = vcmp.lt.s32.totalorder %v121, 64
    %vm138 = vcmp.lt.s32.totalorder %v122, 64
    %vm139 = vcmp.lt.s32.totalorder %v123, 64
    %vm140 = vcmp.lt.s32.totalorder %v124, 64
    %vm141 = vcmp.lt.s32.totalorder %v125, 64
    %vm142 = vcmp.lt.s32.totalorder %v126, 64
    %vm143 = vcmp.lt.s32.totalorder %v127, 64
    %vm144 = vcmp.lt.s32.totalorder %v128, 64
    %vm145 = vcmp.lt.s32.totalorder %v129, 64
    %vm146 = vcmp.lt.s32.totalorder %v130, 64
    %vm147 = vcmp.lt.s32.totalorder %v131, 64
    %vm148 = vcmp.lt.s32.totalorder %v132, 64
    %vm149 = vcmp.lt.s32.totalorder %v133, 64
    %vm150 = vcmp.lt.s32.totalorder %v134, 64
    %v151 = vsel %vm135, 1, 0
    %v152 = vsel %vm136, 1, 0
    %v153 = vsel %vm137, 1, 0
    %v154 = vsel %vm138, 1, 0
    %v155 = vsel %vm139, 1, 0
    %v156 = vsel %vm140, 1, 0
    %v157 = vsel %vm141, 1, 0
    %v158 = vsel %vm142, 1, 0
    %v159 = vsel %vm143, 1, 0
    %v160 = vsel %vm144, 1, 0
    %v161 = vsel %vm145, 1, 0
    %v162 = vsel %vm146, 1, 0
    %v163 = vsel %vm147, 1, 0
    %v164 = vsel %vm148, 1, 0
    %v165 = vsel %vm149, 1, 0
    %v166 = vsel %vm150, 1, 0
    %v167 = vcvt.s32.f32 %v151
    %v168 = vcvt.s32.f32 %v152
    %v169 = vcvt.s32.f32 %v153
    %v170 = vcvt.s32.f32 %v154
    %v171 = vcvt.s32.f32 %v155
    %v172 = vcvt.s32.f32 %v156
    %v173 = vcvt.s32.f32 %v157
    %v174 = vcvt.s32.f32 %v158
    %v175 = vcvt.s32.f32 %v159
    %v176 = vcvt.s32.f32 %v160
    %v177 = vcvt.s32.f32 %v161
    %v178 = vcvt.s32.f32 %v162
    %v179 = vcvt.s32.f32 %v163
    %v180 = vcvt.s32.f32 %v164
    %v181 = vcvt.s32.f32 %v165
    %v182 = vcvt.s32.f32 %v166
    %v183 = vld [vmem:[#allocation7] sm:$0xf]
    %v184 = vld [vmem:[#allocation7 + $0x4] sm:$0xf]
    %v185 = vld [vmem:[#allocation7 + $0x8] sm:$0xf]
    %v186 = vld [vmem:[#allocation7 + $0xc] sm:$0xf]
    %v187 = vld [vmem:[#allocation7 + $0x10] sm:$0xf]
    %v188 = vld [vmem:[#allocation7 + $0x14] sm:$0xf]
    %v189 = vld [vmem:[#allocation7 + $0x18] sm:$0xf]
    %v190 = vld [vmem:[#allocation7 + $0x1c] sm:$0xf]
    %v191 = vld [vmem:[#allocation7 + $0x20] sm:$0xf]
    %v192 = vld [vmem:[#allocation7 + $0x24] sm:$0xf]
    %v193 = vld [vmem:[#allocation7 + $0x28] sm:$0xf]
    %v194 = vld [vmem:[#allocation7 + $0x2c] sm:$0xf]
    %v195 = vld [vmem:[#allocation7 + $0x30] sm:$0xf]
    %v196 = vld [vmem:[#allocation7 + $0x34] sm:$0xf]
    %v197 = vld [vmem:[#allocation7 + $0x38] sm:$0xf]
    %v198 = vld [vmem:[#allocation7 + $0x3c] sm:$0xf]
    %v199 = vpack.c.bf16 %v103, %v102
    %v200 = vpack.c.bf16 %v105, %v104
    %v201 = vpack.c.bf16 %v107, %v106
    %v202 = vpack.c.bf16 %v109, %v108
    %v203 = vpack.c.bf16 %v111, %v110
    %v204 = vpack.c.bf16 %v113, %v112
    %v205 = vpack.c.bf16 %v115, %v114
    %v206 = vpack.c.bf16 %v117, %v116
    %v223 = vunpack.c.l.b16 %v183
    %v224 = vunpack.c.l.b16 %v184
    %v225 = vunpack.c.l.b16 %v185
    %v226 = vunpack.c.l.b16 %v186
    %v227 = vunpack.c.l.b16 %v187
    %v228 = vunpack.c.l.b16 %v188
    %v229 = vunpack.c.l.b16 %v189
    %v230 = vunpack.c.l.b16 %v190
    %v231 = vunpack.c.l.b16 %v191
    %v232 = vunpack.c.l.b16 %v192
    %v233 = vunpack.c.l.b16 %v193
    %v234 = vunpack.c.l.b16 %v194
    %v235 = vunpack.c.l.b16 %v195
    %v236 = vunpack.c.l.b16 %v196
    %v237 = vunpack.c.l.b16 %v197
    %v238 = vunpack.c.l.b16 %v198
    %v239 = vpack.c.b16 %v224, %v223
    %v240 = vpack.c.b16 %v226, %v225
    %v241 = vpack.c.b16 %v228, %v227
    %v242 = vpack.c.b16 %v230, %v229
    %v243 = vpack.c.b16 %v232, %v231
    %v244 = vpack.c.b16 %v234, %v233
    %v245 = vpack.c.b16 %v236, %v235
    %v246 = vpack.c.b16 %v238, %v237
    %255 = vmatprep.subr.bf16.mxu0 0
    %256 = vmatpush1.bf16.msra.mxu0 %v239
    %257 = vmatprep.subr.bf16.mxu0 0
    %258 = vmatpush1.bf16.msra.mxu0 %v240
    %259 = vmatprep.subr.bf16.mxu0 0
    %260 = vmatpush1.bf16.msra.mxu0 %v241
    %261 = vmatprep.subr.bf16.mxu0 0
    %262 = vmatpush1.bf16.msra.mxu0 %v242
    %263 = vmatprep.subr.bf16.mxu0 0
    %264 = vmatpush1.bf16.msra.mxu0 %v243
    %265 = vmatprep.subr.bf16.mxu0 0
    %266 = vmatpush1.bf16.msra.mxu0 %v244
    %267 = vmatprep.subr.bf16.mxu0 0
    %268 = vmatpush1.bf16.msra.mxu0 %v245
    %269 = vmatprep.subr.bf16.mxu0 0
    %270 = vmatpush1.bf16.msra.mxu0 %v246
    %271 = vmatprep.subr.bf16.mxu0 0
    %272 = vmatpush1.bf16.msra.mxu0 0
    %273 = vmatprep.subr.bf16.mxu0 0
    %274 = vmatpush1.bf16.msra.mxu0 0
    %275 = vmatprep.subr.bf16.mxu0 0
    %276 = vmatpush1.bf16.msra.mxu0 0
    %277 = vmatprep.subr.bf16.mxu0 0
    %278 = vmatpush1.bf16.msra.mxu0 0
    %279 = vmatprep.subr.bf16.mxu0 0
    %280 = vmatpush1.bf16.msra.mxu0 0
    %281 = vmatprep.subr.bf16.mxu0 0
    %282 = vmatpush1.bf16.msra.mxu0 0
    %283 = vmatprep.subr.bf16.mxu0 0
    %284 = vmatpush1.bf16.msra.mxu0 0
    %285 = vmatprep.subr.bf16.mxu0 0
    %286 = vmatpush1.bf16.msra.mxu0 0
    %287 = vmatprep.mubr.bf16.mxu0 0
    %288 = vmatmul.mubr.bf16.gmra.mrb[0].mxu0 %v199
    %v289 = vpop.f32.mrb[0].mxu0
    %v290 = vadd.f32 0.0, %v289
    %v291 = vpop.f32.mrb[0].mxu0
    %v292 = vpop.f32.mrb[0].mxu0
    %v293 = vadd.f32 0.0, %v292
    %v294 = vpop.f32.mrb[0].mxu0
    %295 = vmatprep.mubr.bf16.mxu0 0
    %296 = vmatmul.mubr.bf16.gmra.mrb[0].mxu0 %v200
    %v297 = vpop.f32.mrb[0].mxu0
    %v298 = vadd.f32 0.0, %v297
    %v299 = vpop.f32.mrb[0].mxu0
    %v300 = vpop.f32.mrb[0].mxu0
    %v301 = vadd.f32 0.0, %v300
    %v302 = vpop.f32.mrb[0].mxu0
    %303 = vmatprep.mubr.bf16.mxu0 0
    %304 = vmatmul.mubr.bf16.gmra.mrb[0].mxu0 %v201
    %v305 = vpop.f32.mrb[0].mxu0
    %v306 = vadd.f32 0.0, %v305
    %v307 = vpop.f32.mrb[0].mxu0
    %v308 = vpop.f32.mrb[0].mxu0
    %v309 = vadd.f32 0.0, %v308
    %v310 = vpop.f32.mrb[0].mxu0
    %311 = vmatprep.mubr.bf16.mxu0 0
    %312 = vmatmul.mubr.bf16.gmra.mrb[0].mxu0 %v202
    %v313 = vpop.f32.mrb[0].mxu0
    %v314 = vadd.f32 0.0, %v313
    %v315 = vpop.f32.mrb[0].mxu0
    %v316 = vpop.f32.mrb[0].mxu0
    %v317 = vadd.f32 0.0, %v316
    %v318 = vpop.f32.mrb[0].mxu0
    %319 = vmatprep.mubr.bf16.mxu0 0
    %320 = vmatmul.mubr.bf16.gmra.mrb[0].mxu0 %v203
    %v321 = vpop.f32.mrb[0].mxu0
    %v322 = vadd.f32 0.0, %v321
    %v323 = vpop.f32.mrb[0].mxu0
    %v324 = vpop.f32.mrb[0].mxu0
    %v325 = vadd.f32 0.0, %v324
    %v326 = vpop.f32.mrb[0].mxu0
    %327 = vmatprep.mubr.bf16.mxu0 0
    %328 = vmatmul.mubr.bf16.gmra.mrb[0].mxu0 %v204
    %v329 = vpop.f32.mrb[0].mxu0
    %v330 = vadd.f32 0.0, %v329
    %v331 = vpop.f32.mrb[0].mxu0
    %v332 = vpop.f32.mrb[0].mxu0
    %v333 = vadd.f32 0.0, %v332
    %v334 = vpop.f32.mrb[0].mxu0
    %335 = vmatprep.mubr.bf16.mxu0 0
    %336 = vmatmul.mubr.bf16.gmra.mrb[0].mxu0 %v205
    %v337 = vpop.f32.mrb[0].mxu0
    %v338 = vadd.f32 0.0, %v337
    %v339 = vpop.f32.mrb[0].mxu0
    %v340 = vpop.f32.mrb[0].mxu0
    %v341 = vadd.f32 0.0, %v340
    %v342 = vpop.f32.mrb[0].mxu0
    %343 = vmatprep.mubr.bf16.mxu0 0
    %344 = vmatmul.mubr.bf16.gmra.mrb[0].mxu0 %v206
    %v345 = vpop.f32.mrb[0].mxu0
    %v346 = vadd.f32 0.0, %v345
    %v347 = vpop.f32.mrb[0].mxu0
    %v348 = vpop.f32.mrb[0].mxu0
    %v349 = vadd.f32 0.0, %v348
    %v350 = vpop.f32.mrb[0].mxu0
    %351 = vdwg.mxu0
    %v352 = vpack.c.bf16 %v293, %v290
    %v353 = vpack.c.bf16 %v301, %v298
    %v354 = vpack.c.bf16 %v309, %v306
    %v355 = vpack.c.bf16 %v317, %v314
    %v356 = vpack.c.bf16 %v325, %v322
    %v357 = vpack.c.bf16 %v333, %v330
    %v358 = vpack.c.bf16 %v341, %v338
    %v359 = vpack.c.bf16 %v349, %v346
    %v360 = vld [vmem:[%s3] sm:$0x1]
    %v362 = vlaneseq
    %v363 = vshrl.u32 %v362, 7
    %v364 = vsub.s32 0, %v363
    %v365 = vrot.slane %v360, %v364
    %v383 = vunpack.c.l.b16 %v86
    %v384 = vunpack.c.l.b16 %v87
    %v385 = vunpack.c.l.b16 %v88
    %v386 = vunpack.c.l.b16 %v89
    %v387 = vunpack.c.l.b16 %v90
    %v388 = vunpack.c.l.b16 %v91
    %v389 = vunpack.c.l.b16 %v92
    %v390 = vunpack.c.l.b16 %v93
    %v391 = vunpack.c.l.b16 %v94
    %v392 = vunpack.c.l.b16 %v95
    %v393 = vunpack.c.l.b16 %v96
    %v394 = vunpack.c.l.b16 %v97
    %v395 = vunpack.c.l.b16 %v98
    %v396 = vunpack.c.l.b16 %v99
    %v397 = vunpack.c.l.b16 %v100
    %v398 = vunpack.c.l.b16 %v101
    %v399 = vpack.c.b16 %v384, %v383
    %v400 = vpack.c.b16 %v386, %v385
    %v401 = vpack.c.b16 %v388, %v387
    %v402 = vpack.c.b16 %v390, %v389
    %v403 = vpack.c.b16 %v392, %v391
    %v404 = vpack.c.b16 %v394, %v393
    %v405 = vpack.c.b16 %v396, %v395
    %v406 = vpack.c.b16 %v398, %v397
    %415 = vmatprep.subr.bf16.mxu0 0
    %416 = vmatpush1.bf16.msra.mxu0 %v352
    %417 = vmatprep.subr.bf16.mxu0 0
    %418 = vmatpush1.bf16.msra.mxu0 %v353
    %419 = vmatprep.subr.bf16.mxu0 0
    %420 = vmatpush1.bf16.msra.mxu0 %v354
    %421 = vmatprep.subr.bf16.mxu0 0
    %422 = vmatpush1.bf16.msra.mxu0 %v355
    %423 = vmatprep.subr.bf16.mxu0 0
    %424 = vmatpush1.bf16.msra.mxu0 %v356
    %425 = vmatprep.subr.bf16.mxu0 0
    %426 = vmatpush1.bf16.msra.mxu0 %v357
    %427 = vmatprep.subr.bf16.mxu0 0
    %428 = vmatpush1.bf16.msra.mxu0 %v358
    %429 = vmatprep.subr.bf16.mxu0 0
    %430 = vmatpush1.bf16.msra.mxu0 %v359
    %431 = vmatprep.subr.bf16.mxu0 0
    %432 = vmatpush1.bf16.msra.mxu0 0
    %433 = vmatprep.subr.bf16.mxu0 0
    %434 = vmatpush1.bf16.msra.mxu0 0
    %435 = vmatprep.subr.bf16.mxu0 0
    %436 = vmatpush1.bf16.msra.mxu0 0
    %437 = vmatprep.subr.bf16.mxu0 0
    %438 = vmatpush1.bf16.msra.mxu0 0
    %439 = vmatprep.subr.bf16.mxu0 0
    %440 = vmatpush1.bf16.msra.mxu0 0
    %441 = vmatprep.subr.bf16.mxu0 0
    %442 = vmatpush1.bf16.msra.mxu0 0
    %443 = vmatprep.subr.bf16.mxu0 0
    %444 = vmatpush1.bf16.msra.mxu0 0
    %445 = vmatprep.subr.bf16.mxu0 0
    %446 = vmatpush1.bf16.msra.mxu0 0
    %447 = vmatprep.mubr.bf16.mxu0 0
    %448 = vmatmul.mubr.bf16.gmra.mrb[0].mxu0 %v399
    %v449 = vpop.f32.mrb[0].mxu0
    %v450 = vadd.f32 %v365, %v449
    %v451 = vpop.f32.mrb[0].mxu0
    %v452 = vpop.f32.mrb[0].mxu0
    %v453 = vadd.f32 %v365, %v452
    %v454 = vpop.f32.mrb[0].mxu0
    %455 = vmatprep.mubr.bf16.mxu0 0
    %456 = vmatmul.mubr.bf16.gmra.mrb[0].mxu0 %v400
    %v457 = vpop.f32.mrb[0].mxu0
    %v458 = vadd.f32 %v365, %v457
    %v459 = vpop.f32.mrb[0].mxu0
    %v460 = vpop.f32.mrb[0].mxu0
    %v461 = vadd.f32 %v365, %v460
    %v462 = vpop.f32.mrb[0].mxu0
    %463 = vmatprep.mubr.bf16.mxu0 0
    %464 = vmatmul.mubr.bf16.gmra.mrb[0].mxu0 %v401
    %v465 = vpop.f32.mrb[0].mxu0
    %v466 = vadd.f32 %v365, %v465
    %v467 = vpop.f32.mrb[0].mxu0
    %v468 = vpop.f32.mrb[0].mxu0
    %v469 = vadd.f32 %v365, %v468
    %v470 = vpop.f32.mrb[0].mxu0
    %471 = vmatprep.mubr.bf16.mxu0 0
    %472 = vmatmul.mubr.bf16.gmra.mrb[0].mxu0 %v402
    %v473 = vpop.f32.mrb[0].mxu0
    %v474 = vadd.f32 %v365, %v473
    %v475 = vpop.f32.mrb[0].mxu0
    %v476 = vpop.f32.mrb[0].mxu0
    %v477 = vadd.f32 %v365, %v476
    %v478 = vpop.f32.mrb[0].mxu0
    %479 = vmatprep.mubr.bf16.mxu0 0
    %480 = vmatmul.mubr.bf16.gmra.mrb[0].mxu0 %v403
    %v481 = vpop.f32.mrb[0].mxu0
    %v482 = vadd.f32 %v365, %v481
    %v483 = vpop.f32.mrb[0].mxu0
    %v484 = vpop.f32.mrb[0].mxu0
    %v485 = vadd.f32 %v365, %v484
    %v486 = vpop.f32.mrb[0].mxu0
    %487 = vmatprep.mubr.bf16.mxu0 0
    %488 = vmatmul.mubr.bf16.gmra.mrb[0].mxu0 %v404
    %v489 = vpop.f32.mrb[0].mxu0
    %v490 = vadd.f32 %v365, %v489
    %v491 = vpop.f32.mrb[0].mxu0
    %v492 = vpop.f32.mrb[0].mxu0
    %v493 = vadd.f32 %v365, %v492
    %v494 = vpop.f32.mrb[0].mxu0
    %495 = vmatprep.mubr.bf16.mxu0 0
    %496 = vmatmul.mubr.bf16.gmra.mrb[0].mxu0 %v405
    %v497 = vpop.f32.mrb[0].mxu0
    %v498 = vadd.f32 %v365, %v497
    %v499 = vpop.f32.mrb[0].mxu0
    %v500 = vpop.f32.mrb[0].mxu0
    %v501 = vadd.f32 %v365, %v500
    %v502 = vpop.f32.mrb[0].mxu0
    %503 = vmatprep.mubr.bf16.mxu0 0
    %504 = vmatmul.mubr.bf16.gmra.mrb[0].mxu0 %v406
    %v505 = vpop.f32.mrb[0].mxu0
    %v506 = vadd.f32 %v365, %v505
    %v507 = vpop.f32.mrb[0].mxu0
    %v508 = vpop.f32.mrb[0].mxu0
    %v509 = vadd.f32 %v365, %v508
    %v510 = vpop.f32.mrb[0].mxu0
    %511 = vdwg.mxu0
    %vm512 = vcmp.ge.f32.partialorder %v450, 0.0
    %vm513 = vcmp.ge.f32.partialorder %v453, 0.0
    %vm514 = vcmp.ge.f32.partialorder %v458, 0.0
    %vm515 = vcmp.ge.f32.partialorder %v461, 0.0
    %vm516 = vcmp.ge.f32.partialorder %v466, 0.0
    %vm517 = vcmp.ge.f32.partialorder %v469, 0.0
    %vm518 = vcmp.ge.f32.partialorder %v474, 0.0
    %vm519 = vcmp.ge.f32.partialorder %v477, 0.0
    %vm520 = vcmp.ge.f32.partialorder %v482, 0.0
    %vm521 = vcmp.ge.f32.partialorder %v485, 0.0
    %vm522 = vcmp.ge.f32.partialorder %v490, 0.0
    %vm523 = vcmp.ge.f32.partialorder %v493, 0.0
    %vm524 = vcmp.ge.f32.partialorder %v498, 0.0
    %vm525 = vcmp.ge.f32.partialorder %v501, 0.0
    %vm526 = vcmp.ge.f32.partialorder %v506, 0.0
    %vm527 = vcmp.ge.f32.partialorder %v509, 0.0
    %v528 = vmul.f32 %v450, 0.2
    %v529 = vmul.f32 %v453, 0.2
    %v530 = vmul.f32 %v458, 0.2
    %v531 = vmul.f32 %v461, 0.2
    %v532 = vmul.f32 %v466, 0.2
    %v533 = vmul.f32 %v469, 0.2
    %v534 = vmul.f32 %v474, 0.2
    %v535 = vmul.f32 %v477, 0.2
    %v536 = vmul.f32 %v482, 0.2
    %v537 = vmul.f32 %v485, 0.2
    %v538 = vmul.f32 %v490, 0.2
    %v539 = vmul.f32 %v493, 0.2
    %v540 = vmul.f32 %v498, 0.2
    %v541 = vmul.f32 %v501, 0.2
    %v542 = vmul.f32 %v506, 0.2
    %v543 = vmul.f32 %v509, 0.2
    %v544 = vsel %vm512, %v450, %v528
    %v545 = vsel %vm513, %v453, %v529
    %v546 = vsel %vm514, %v458, %v530
    %v547 = vsel %vm515, %v461, %v531
    %v548 = vsel %vm516, %v466, %v532
    %v549 = vsel %vm517, %v469, %v533
    %v550 = vsel %vm518, %v474, %v534
    %v551 = vsel %vm519, %v477, %v535
    %v552 = vsel %vm520, %v482, %v536
    %v553 = vsel %vm521, %v485, %v537
    %v554 = vsel %vm522, %v490, %v538
    %v555 = vsel %vm523, %v493, %v539
    %v556 = vsel %vm524, %v498, %v540
    %v557 = vsel %vm525, %v501, %v541
    %v558 = vsel %vm526, %v506, %v542
    %v559 = vsel %vm527, %v509, %v543
    %v560 = vmul.f32 %v544, %v167
    %v561 = vmul.f32 %v545, %v168
    %v562 = vmul.f32 %v546, %v169
    %v563 = vmul.f32 %v547, %v170
    %v564 = vmul.f32 %v548, %v171
    %v565 = vmul.f32 %v549, %v172
    %v566 = vmul.f32 %v550, %v173
    %v567 = vmul.f32 %v551, %v174
    %v568 = vmul.f32 %v552, %v175
    %v569 = vmul.f32 %v553, %v176
    %v570 = vmul.f32 %v554, %v177
    %v571 = vmul.f32 %v555, %v178
    %v572 = vmul.f32 %v556, %v179
    %v573 = vmul.f32 %v557, %v180
    %v574 = vmul.f32 %v558, %v181
    %v575 = vmul.f32 %v559, %v182
    %v576 = vadd.f32 %v560, %v561
    %v577 = vadd.f32 %v576, %v562
    %v578 = vadd.f32 %v577, %v563
    %v579 = vadd.f32 %v578, %v564
    %v580 = vadd.f32 %v579, %v565
    %v581 = vadd.f32 %v580, %v566
    %v582 = vadd.f32 %v581, %v567
    %v583 = vadd.f32 %v582, %v568
    %v584 = vadd.f32 %v583, %v569
    %v585 = vadd.f32 %v584, %v570
    %v586 = vadd.f32 %v585, %v571
    %v587 = vadd.f32 %v586, %v572
    %v588 = vadd.f32 %v587, %v573
    %v589 = vadd.f32 %v588, %v574
    %v590 = vadd.f32 %v589, %v575
    %v591 = vrot.slane %v590, 4
    %v592 = vadd.f32 %v590, %v591
    %v593 = vrot.slane %v592, 2
    %v594 = vadd.f32 %v592, %v593
    %v595 = vrot.slane %v594, 1
    %v596 = vadd.f32 %v594, %v595
    %v597 = vmul.f32 %v596, 0.015625
    %v598 = vsub.f32 %v560, %v597
    %v599 = vsub.f32 %v561, %v597
    %v600 = vsub.f32 %v562, %v597
    %v601 = vsub.f32 %v563, %v597
    %v602 = vsub.f32 %v564, %v597
    %v603 = vsub.f32 %v565, %v597
    %v604 = vsub.f32 %v566, %v597
    %v605 = vsub.f32 %v567, %v597
    %v606 = vsub.f32 %v568, %v597
    %v607 = vsub.f32 %v569, %v597
    %v608 = vsub.f32 %v570, %v597
    %v609 = vsub.f32 %v571, %v597
    %v610 = vsub.f32 %v572, %v597
    %v611 = vsub.f32 %v573, %v597
    %v612 = vsub.f32 %v574, %v597
    %v613 = vsub.f32 %v575, %v597
    %v614 = vmul.f32 %v598, %v167
    %v615 = vmul.f32 %v599, %v168
    %v616 = vmul.f32 %v600, %v169
    %v617 = vmul.f32 %v601, %v170
    %v618 = vmul.f32 %v602, %v171
    %v619 = vmul.f32 %v603, %v172
    %v620 = vmul.f32 %v604, %v173
    %v621 = vmul.f32 %v605, %v174
    %v622 = vmul.f32 %v606, %v175
    %v623 = vmul.f32 %v607, %v176
    %v624 = vmul.f32 %v608, %v177
    %v625 = vmul.f32 %v609, %v178
    %v626 = vmul.f32 %v610, %v179
    %v627 = vmul.f32 %v611, %v180
    %v628 = vmul.f32 %v612, %v181
    %v629 = vmul.f32 %v613, %v182
    %v630 = vmul.f32 %v614, %v614
    %v631 = vmul.f32 %v615, %v615
    %v632 = vmul.f32 %v616, %v616
    %v633 = vmul.f32 %v617, %v617
    %v634 = vmul.f32 %v618, %v618
    %v635 = vmul.f32 %v619, %v619
    %v636 = vmul.f32 %v620, %v620
    %v637 = vmul.f32 %v621, %v621
    %v638 = vmul.f32 %v622, %v622
    %v639 = vmul.f32 %v623, %v623
    %v640 = vmul.f32 %v624, %v624
    %v641 = vmul.f32 %v625, %v625
    %v642 = vmul.f32 %v626, %v626
    %v643 = vmul.f32 %v627, %v627
    %v644 = vmul.f32 %v628, %v628
    %v645 = vmul.f32 %v629, %v629
    %v646 = vadd.f32 %v630, %v631
    %v647 = vadd.f32 %v646, %v632
    %v648 = vadd.f32 %v647, %v633
    %v649 = vadd.f32 %v648, %v634
    %v650 = vadd.f32 %v649, %v635
    %v651 = vadd.f32 %v650, %v636
    %v652 = vadd.f32 %v651, %v637
    %v653 = vadd.f32 %v652, %v638
    %v654 = vadd.f32 %v653, %v639
    %v655 = vadd.f32 %v654, %v640
    %v656 = vadd.f32 %v655, %v641
    %v657 = vadd.f32 %v656, %v642
    %v658 = vadd.f32 %v657, %v643
    %v659 = vadd.f32 %v658, %v644
    %v660 = vadd.f32 %v659, %v645
    %v661 = vrot.slane %v660, 4
    %v662 = vadd.f32 %v660, %v661
    %v663 = vrot.slane %v662, 2
    %v664 = vadd.f32 %v662, %v663
    %v665 = vrot.slane %v664, 1
    %v666 = vadd.f32 %v664, %v665
    %v667 = vmul.f32 %v666, 0.015625
    %v668 = vadd.f32 %v667, 1e-05
    %v669 = vrsqrt.pop %v668
    %v670 = vmul.f32 %v598, %v669
    %v671 = vmul.f32 %v599, %v669
    %v672 = vmul.f32 %v600, %v669
    %v673 = vmul.f32 %v601, %v669
    %v674 = vmul.f32 %v602, %v669
    %v675 = vmul.f32 %v603, %v669
    %v676 = vmul.f32 %v604, %v669
    %v677 = vmul.f32 %v605, %v669
    %v678 = vmul.f32 %v606, %v669
    %v679 = vmul.f32 %v607, %v669
    %v680 = vmul.f32 %v608, %v669
    %v681 = vmul.f32 %v609, %v669
    %v682 = vmul.f32 %v610, %v669
    %v683 = vmul.f32 %v611, %v669
    %v684 = vmul.f32 %v612, %v669
    %v685 = vmul.f32 %v613, %v669
    %v686 = vld [vmem:[%s4] sm:$0x1]
    %v688 = vlaneseq
    %v689 = vshrl.u32 %v688, 7
    %v690 = vsub.s32 0, %v689
    %v691 = vrot.slane %v686, %v690
    %v693 = vmul.f32 %v670, %v691
    %v694 = vmul.f32 %v671, %v691
    %v695 = vmul.f32 %v672, %v691
    %v696 = vmul.f32 %v673, %v691
    %v697 = vmul.f32 %v674, %v691
    %v698 = vmul.f32 %v675, %v691
    %v699 = vmul.f32 %v676, %v691
    %v700 = vmul.f32 %v677, %v691
    %v701 = vmul.f32 %v678, %v691
    %v702 = vmul.f32 %v679, %v691
    %v703 = vmul.f32 %v680, %v691
    %v704 = vmul.f32 %v681, %v691
    %v705 = vmul.f32 %v682, %v691
    %v706 = vmul.f32 %v683, %v691
    %v707 = vmul.f32 %v684, %v691
    %v708 = vmul.f32 %v685, %v691
    %v709 = vld [vmem:[%s5] sm:$0x1]
    %v711 = vlaneseq
    %v712 = vshrl.u32 %v711, 7
    %v713 = vsub.s32 0, %v712
    %v714 = vrot.slane %v709, %v713
    %v716 = vadd.f32 %v693, %v714
    %v717 = vadd.f32 %v694, %v714
    %v718 = vadd.f32 %v695, %v714
    %v719 = vadd.f32 %v696, %v714
    %v720 = vadd.f32 %v697, %v714
    %v721 = vadd.f32 %v698, %v714
    %v722 = vadd.f32 %v699, %v714
    %v723 = vadd.f32 %v700, %v714
    %v724 = vadd.f32 %v701, %v714
    %v725 = vadd.f32 %v702, %v714
    %v726 = vadd.f32 %v703, %v714
    %v727 = vadd.f32 %v704, %v714
    %v728 = vadd.f32 %v705, %v714
    %v729 = vadd.f32 %v706, %v714
    %v730 = vadd.f32 %v707, %v714
    %v731 = vadd.f32 %v708, %v714
    %s732 = scalar_lea.vmem [#allocation7], 64
    %v733 = vld [vmem:[%s732] sm:$0xf]
    %v734 = vld [vmem:[%s732 + $0x4] sm:$0xf]
    %v735 = vld [vmem:[%s732 + $0x8] sm:$0xf]
    %v736 = vld [vmem:[%s732 + $0xc] sm:$0xf]
    %v737 = vld [vmem:[%s732 + $0x10] sm:$0xf]
    %v738 = vld [vmem:[%s732 + $0x14] sm:$0xf]
    %v739 = vld [vmem:[%s732 + $0x18] sm:$0xf]
    %v740 = vld [vmem:[%s732 + $0x1c] sm:$0xf]
    %v741 = vld [vmem:[%s732 + $0x20] sm:$0xf]
    %v742 = vld [vmem:[%s732 + $0x24] sm:$0xf]
    %v743 = vld [vmem:[%s732 + $0x28] sm:$0xf]
    %v744 = vld [vmem:[%s732 + $0x2c] sm:$0xf]
    %v745 = vld [vmem:[%s732 + $0x30] sm:$0xf]
    %v746 = vld [vmem:[%s732 + $0x34] sm:$0xf]
    %v747 = vld [vmem:[%s732 + $0x38] sm:$0xf]
    %v748 = vld [vmem:[%s732 + $0x3c] sm:$0xf]
    %v749 = vpack.c.bf16 %v717, %v716
    %v750 = vpack.c.bf16 %v719, %v718
    %v751 = vpack.c.bf16 %v721, %v720
    %v752 = vpack.c.bf16 %v723, %v722
    %v753 = vpack.c.bf16 %v725, %v724
    %v754 = vpack.c.bf16 %v727, %v726
    %v755 = vpack.c.bf16 %v729, %v728
    %v756 = vpack.c.bf16 %v731, %v730
    %v773 = vunpack.c.l.b16 %v733
    %v774 = vunpack.c.l.b16 %v734
    %v775 = vunpack.c.l.b16 %v735
    %v776 = vunpack.c.l.b16 %v736
    %v777 = vunpack.c.l.b16 %v737
    %v778 = vunpack.c.l.b16 %v738
    %v779 = vunpack.c.l.b16 %v739
    %v780 = vunpack.c.l.b16 %v740
    %v781 = vunpack.c.l.b16 %v741
    %v782 = vunpack.c.l.b16 %v742
    %v783 = vunpack.c.l.b16 %v743
    %v784 = vunpack.c.l.b16 %v744
    %v785 = vunpack.c.l.b16 %v745
    %v786 = vunpack.c.l.b16 %v746
    %v787 = vunpack.c.l.b16 %v747
    %v788 = vunpack.c.l.b16 %v748
    %v789 = vpack.c.b16 %v774, %v773
    %v790 = vpack.c.b16 %v776, %v775
    %v791 = vpack.c.b16 %v778, %v777
    %v792 = vpack.c.b16 %v780, %v779
    %v793 = vpack.c.b16 %v782, %v781
    %v794 = vpack.c.b16 %v784, %v783
    %v795 = vpack.c.b16 %v786, %v785
    %v796 = vpack.c.b16 %v788, %v787
    %805 = vmatprep.subr.bf16.mxu0 0
    %806 = vmatpush1.bf16.msra.mxu0 %v789
    %807 = vmatprep.subr.bf16.mxu0 0
    %808 = vmatpush1.bf16.msra.mxu0 %v790
    %809 = vmatprep.subr.bf16.mxu0 0
    %810 = vmatpush1.bf16.msra.mxu0 %v791
    %811 = vmatprep.subr.bf16.mxu0 0
    %812 = vmatpush1.bf16.msra.mxu0 %v792
    %813 = vmatprep.subr.bf16.mxu0 0
    %814 = vmatpush1.bf16.msra.mxu0 %v793
    %815 = vmatprep.subr.bf16.mxu0 0
    %816 = vmatpush1.bf16.msra.mxu0 %v794
    %817 = vmatprep.subr.bf16.mxu0 0
    %818 = vmatpush1.bf16.msra.mxu0 %v795
    %819 = vmatprep.subr.bf16.mxu0 0
    %820 = vmatpush1.bf16.msra.mxu0 %v796
    %821 = vmatprep.subr.bf16.mxu0 0
    %822 = vmatpush1.bf16.msra.mxu0 0
    %823 = vmatprep.subr.bf16.mxu0 0
    %824 = vmatpush1.bf16.msra.mxu0 0
    %825 = vmatprep.subr.bf16.mxu0 0
    %826 = vmatpush1.bf16.msra.mxu0 0
    %827 = vmatprep.subr.bf16.mxu0 0
    %828 = vmatpush1.bf16.msra.mxu0 0
    %829 = vmatprep.subr.bf16.mxu0 0
    %830 = vmatpush1.bf16.msra.mxu0 0
    %831 = vmatprep.subr.bf16.mxu0 0
    %832 = vmatpush1.bf16.msra.mxu0 0
    %833 = vmatprep.subr.bf16.mxu0 0
    %834 = vmatpush1.bf16.msra.mxu0 0
    %835 = vmatprep.subr.bf16.mxu0 0
    %836 = vmatpush1.bf16.msra.mxu0 0
    %837 = vmatprep.mubr.bf16.mxu0 0
    %838 = vmatmul.mubr.bf16.gmra.mrb[0].mxu0 %v749
    %v839 = vpop.f32.mrb[0].mxu0
    %v840 = vadd.f32 0.0, %v839
    %v841 = vpop.f32.mrb[0].mxu0
    %v842 = vpop.f32.mrb[0].mxu0
    %v843 = vadd.f32 0.0, %v842
    %v844 = vpop.f32.mrb[0].mxu0
    %845 = vmatprep.mubr.bf16.mxu0 0
    %846 = vmatmul.mubr.bf16.gmra.mrb[0].mxu0 %v750
    %v847 = vpop.f32.mrb[0].mxu0
    %v848 = vadd.f32 0.0, %v847
    %v849 = vpop.f32.mrb[0].mxu0
    %v850 = vpop.f32.mrb[0].mxu0
    %v851 = vadd.f32 0.0, %v850
    %v852 = vpop.f32.mrb[0].mxu0
    %853 = vmatprep.mubr.bf16.mxu0 0
    %854 = vmatmul.mubr.bf16.gmra.mrb[0].mxu0 %v751
    %v855 = vpop.f32.mrb[0].mxu0
    %v856 = vadd.f32 0.0, %v855
    %v857 = vpop.f32.mrb[0].mxu0
    %v858 = vpop.f32.mrb[0].mxu0
    %v859 = vadd.f32 0.0, %v858
    %v860 = vpop.f32.mrb[0].mxu0
    %861 = vmatprep.mubr.bf16.mxu0 0
    %862 = vmatmul.mubr.bf16.gmra.mrb[0].mxu0 %v752
    %v863 = vpop.f32.mrb[0].mxu0
    %v864 = vadd.f32 0.0, %v863
    %v865 = vpop.f32.mrb[0].mxu0
    %v866 = vpop.f32.mrb[0].mxu0
    %v867 = vadd.f32 0.0, %v866
    %v868 = vpop.f32.mrb[0].mxu0
    %869 = vmatprep.mubr.bf16.mxu0 0
    %870 = vmatmul.mubr.bf16.gmra.mrb[0].mxu0 %v753
    %v871 = vpop.f32.mrb[0].mxu0
    %v872 = vadd.f32 0.0, %v871
    %v873 = vpop.f32.mrb[0].mxu0
    %v874 = vpop.f32.mrb[0].mxu0
    %v875 = vadd.f32 0.0, %v874
    %v876 = vpop.f32.mrb[0].mxu0
    %877 = vmatprep.mubr.bf16.mxu0 0
    %878 = vmatmul.mubr.bf16.gmra.mrb[0].mxu0 %v754
    %v879 = vpop.f32.mrb[0].mxu0
    %v880 = vadd.f32 0.0, %v879
    %v881 = vpop.f32.mrb[0].mxu0
    %v882 = vpop.f32.mrb[0].mxu0
    %v883 = vadd.f32 0.0, %v882
    %v884 = vpop.f32.mrb[0].mxu0
    %885 = vmatprep.mubr.bf16.mxu0 0
    %886 = vmatmul.mubr.bf16.gmra.mrb[0].mxu0 %v755
    %v887 = vpop.f32.mrb[0].mxu0
    %v888 = vadd.f32 0.0, %v887
    %v889 = vpop.f32.mrb[0].mxu0
    %v890 = vpop.f32.mrb[0].mxu0
    %v891 = vadd.f32 0.0, %v890
    %v892 = vpop.f32.mrb[0].mxu0
    %893 = vmatprep.mubr.bf16.mxu0 0
    %894 = vmatmul.mubr.bf16.gmra.mrb[0].mxu0 %v756
    %v895 = vpop.f32.mrb[0].mxu0
    %v896 = vadd.f32 0.0, %v895
    %v897 = vpop.f32.mrb[0].mxu0
    %v898 = vpop.f32.mrb[0].mxu0
    %v899 = vadd.f32 0.0, %v898
    %v900 = vpop.f32.mrb[0].mxu0
    %901 = vdwg.mxu0
    %v902 = vpack.c.bf16 %v843, %v840
    %v903 = vpack.c.bf16 %v851, %v848
    %v904 = vpack.c.bf16 %v859, %v856
    %v905 = vpack.c.bf16 %v867, %v864
    %v906 = vpack.c.bf16 %v875, %v872
    %v907 = vpack.c.bf16 %v883, %v880
    %v908 = vpack.c.bf16 %v891, %v888
    %v909 = vpack.c.bf16 %v899, %v896
    %s910 = scalar_lea.vmem %s3, 1
    %v911 = vld [vmem:[%s910] sm:$0x1]
    %v913 = vlaneseq
    %v914 = vshrl.u32 %v913, 7
    %v915 = vsub.s32 0, %v914
    %v916 = vrot.slane %v911, %v915
    %918 = vmatprep.subr.bf16.mxu0 0
    %919 = vmatpush1.bf16.msra.mxu0 %v902
    %920 = vmatprep.subr.bf16.mxu0 0
    %921 = vmatpush1.bf16.msra.mxu0 %v903
    %922 = vmatprep.subr.bf16.mxu0 0
    %923 = vmatpush1.bf16.msra.mxu0 %v904
    %924 = vmatprep.subr.bf16.mxu0 0
    %925 = vmatpush1.bf16.msra.mxu0 %v905
    %926 = vmatprep.subr.bf16.mxu0 0
    %927 = vmatpush1.bf16.msra.mxu0 %v906
    %928 = vmatprep.subr.bf16.mxu0 0
    %929 = vmatpush1.bf16.msra.mxu0 %v907
    %930 = vmatprep.subr.bf16.mxu0 0
    %931 = vmatpush1.bf16.msra.mxu0 %v908
    %932 = vmatprep.subr.bf16.mxu0 0
    %933 = vmatpush1.bf16.msra.mxu0 %v909
    %934 = vmatprep.subr.bf16.mxu0 0
    %935 = vmatpush1.bf16.msra.mxu0 0
    %936 = vmatprep.subr.bf16.mxu0 0
    %937 = vmatpush1.bf16.msra.mxu0 0
    %938 = vmatprep.subr.bf16.mxu0 0
    %939 = vmatpush1.bf16.msra.mxu0 0
    %940 = vmatprep.subr.bf16.mxu0 0
    %941 = vmatpush1.bf16.msra.mxu0 0
    %942 = vmatprep.subr.bf16.mxu0 0
    %943 = vmatpush1.bf16.msra.mxu0 0
    %944 = vmatprep.subr.bf16.mxu0 0
    %945 = vmatpush1.bf16.msra.mxu0 0
    %946 = vmatprep.subr.bf16.mxu0 0
    %947 = vmatpush1.bf16.msra.mxu0 0
    %948 = vmatprep.subr.bf16.mxu0 0
    %949 = vmatpush1.bf16.msra.mxu0 0
    %950 = vmatprep.mubr.bf16.mxu0 0
    %951 = vmatmul.mubr.bf16.gmra.mrb[0].mxu0 %v399
    %v952 = vpop.f32.mrb[0].mxu0
    %v953 = vadd.f32 %v916, %v952
    %v954 = vpop.f32.mrb[0].mxu0
    %v955 = vpop.f32.mrb[0].mxu0
    %v956 = vadd.f32 %v916, %v955
    %v957 = vpop.f32.mrb[0].mxu0
    %958 = vmatprep.mubr.bf16.mxu0 0
    %959 = vmatmul.mubr.bf16.gmra.mrb[0].mxu0 %v400
    %v960 = vpop.f32.mrb[0].mxu0
    %v961 = vadd.f32 %v916, %v960
    %v962 = vpop.f32.mrb[0].mxu0
    %v963 = vpop.f32.mrb[0].mxu0
    %v964 = vadd.f32 %v916, %v963
    %v965 = vpop.f32.mrb[0].mxu0
    %966 = vmatprep.mubr.bf16.mxu0 0
    %967 = vmatmul.mubr.bf16.gmra.mrb[0].mxu0 %v401
    %v968 = vpop.f32.mrb[0].mxu0
    %v969 = vadd.f32 %v916, %v968
    %v970 = vpop.f32.mrb[0].mxu0
    %v971 = vpop.f32.mrb[0].mxu0
    %v972 = vadd.f32 %v916, %v971
    %v973 = vpop.f32.mrb[0].mxu0
    %974 = vmatprep.mubr.bf16.mxu0 0
    %975 = vmatmul.mubr.bf16.gmra.mrb[0].mxu0 %v402
    %v976 = vpop.f32.mrb[0].mxu0
    %v977 = vadd.f32 %v916, %v976
    %v978 = vpop.f32.mrb[0].mxu0
    %v979 = vpop.f32.mrb[0].mxu0
    %v980 = vadd.f32 %v916, %v979
    %v981 = vpop.f32.mrb[0].mxu0
    %982 = vmatprep.mubr.bf16.mxu0 0
    %983 = vmatmul.mubr.bf16.gmra.mrb[0].mxu0 %v403
    %v984 = vpop.f32.mrb[0].mxu0
    %v985 = vadd.f32 %v916, %v984
    %v986 = vpop.f32.mrb[0].mxu0
    %v987 = vpop.f32.mrb[0].mxu0
    %v988 = vadd.f32 %v916, %v987
    %v989 = vpop.f32.mrb[0].mxu0
    %990 = vmatprep.mubr.bf16.mxu0 0
    %991 = vmatmul.mubr.bf16.gmra.mrb[0].mxu0 %v404
    %v992 = vpop.f32.mrb[0].mxu0
    %v993 = vadd.f32 %v916, %v992
    %v994 = vpop.f32.mrb[0].mxu0
    %v995 = vpop.f32.mrb[0].mxu0
    %v996 = vadd.f32 %v916, %v995
    %v997 = vpop.f32.mrb[0].mxu0
    %998 = vmatprep.mubr.bf16.mxu0 0
    %999 = vmatmul.mubr.bf16.gmra.mrb[0].mxu0 %v405
    %v1000 = vpop.f32.mrb[0].mxu0
    %v1001 = vadd.f32 %v916, %v1000
    %v1002 = vpop.f32.mrb[0].mxu0
    %v1003 = vpop.f32.mrb[0].mxu0
    %v1004 = vadd.f32 %v916, %v1003
    %v1005 = vpop.f32.mrb[0].mxu0
    %1006 = vmatprep.mubr.bf16.mxu0 0
    %1007 = vmatmul.mubr.bf16.gmra.mrb[0].mxu0 %v406
    %v1008 = vpop.f32.mrb[0].mxu0
    %v1009 = vadd.f32 %v916, %v1008
    %v1010 = vpop.f32.mrb[0].mxu0
    %v1011 = vpop.f32.mrb[0].mxu0
    %v1012 = vadd.f32 %v916, %v1011
    %v1013 = vpop.f32.mrb[0].mxu0
    %1014 = vdwg.mxu0
    %vm1015 = vcmp.ge.f32.partialorder %v953, 0.0
    %vm1016 = vcmp.ge.f32.partialorder %v956, 0.0
    %vm1017 = vcmp.ge.f32.partialorder %v961, 0.0
    %vm1018 = vcmp.ge.f32.partialorder %v964, 0.0
    %vm1019 = vcmp.ge.f32.partialorder %v969, 0.0
    %vm1020 = vcmp.ge.f32.partialorder %v972, 0.0
    %vm1021 = vcmp.ge.f32.partialorder %v977, 0.0
    %vm1022 = vcmp.ge.f32.partialorder %v980, 0.0
    %vm1023 = vcmp.ge.f32.partialorder %v985, 0.0
    %vm1024 = vcmp.ge.f32.partialorder %v988, 0.0
    %vm1025 = vcmp.ge.f32.partialorder %v993, 0.0
    %vm1026 = vcmp.ge.f32.partialorder %v996, 0.0
    %vm1027 = vcmp.ge.f32.partialorder %v1001, 0.0
    %vm1028 = vcmp.ge.f32.partialorder %v1004, 0.0
    %vm1029 = vcmp.ge.f32.partialorder %v1009, 0.0
    %vm1030 = vcmp.ge.f32.partialorder %v1012, 0.0
    %v1031 = vmul.f32 %v953, 0.2
    %v1032 = vmul.f32 %v956, 0.2
    %v1033 = vmul.f32 %v961, 0.2
    %v1034 = vmul.f32 %v964, 0.2
    %v1035 = vmul.f32 %v969, 0.2
    %v1036 = vmul.f32 %v972, 0.2
    %v1037 = vmul.f32 %v977, 0.2
    %v1038 = vmul.f32 %v980, 0.2
    %v1039 = vmul.f32 %v985, 0.2
    %v1040 = vmul.f32 %v988, 0.2
    %v1041 = vmul.f32 %v993, 0.2
    %v1042 = vmul.f32 %v996, 0.2
    %v1043 = vmul.f32 %v1001, 0.2
    %v1044 = vmul.f32 %v1004, 0.2
    %v1045 = vmul.f32 %v1009, 0.2
    %v1046 = vmul.f32 %v1012, 0.2
    %v1047 = vsel %vm1015, %v953, %v1031
    %v1048 = vsel %vm1016, %v956, %v1032
    %v1049 = vsel %vm1017, %v961, %v1033
    %v1050 = vsel %vm1018, %v964, %v1034
    %v1051 = vsel %vm1019, %v969, %v1035
    %v1052 = vsel %vm1020, %v972, %v1036
    %v1053 = vsel %vm1021, %v977, %v1037
    %v1054 = vsel %vm1022, %v980, %v1038
    %v1055 = vsel %vm1023, %v985, %v1039
    %v1056 = vsel %vm1024, %v988, %v1040
    %v1057 = vsel %vm1025, %v993, %v1041
    %v1058 = vsel %vm1026, %v996, %v1042
    %v1059 = vsel %vm1027, %v1001, %v1043
    %v1060 = vsel %vm1028, %v1004, %v1044
    %v1061 = vsel %vm1029, %v1009, %v1045
    %v1062 = vsel %vm1030, %v1012, %v1046
    %v1063 = vmul.f32 %v1047, %v167
    %v1064 = vmul.f32 %v1048, %v168
    %v1065 = vmul.f32 %v1049, %v169
    %v1066 = vmul.f32 %v1050, %v170
    %v1067 = vmul.f32 %v1051, %v171
    %v1068 = vmul.f32 %v1052, %v172
    %v1069 = vmul.f32 %v1053, %v173
    %v1070 = vmul.f32 %v1054, %v174
    %v1071 = vmul.f32 %v1055, %v175
    %v1072 = vmul.f32 %v1056, %v176
    %v1073 = vmul.f32 %v1057, %v177
    %v1074 = vmul.f32 %v1058, %v178
    %v1075 = vmul.f32 %v1059, %v179
    %v1076 = vmul.f32 %v1060, %v180
    %v1077 = vmul.f32 %v1061, %v181
    %v1078 = vmul.f32 %v1062, %v182
    %v1079 = vadd.f32 %v1063, %v1064
    %v1080 = vadd.f32 %v1079, %v1065
    %v1081 = vadd.f32 %v1080, %v1066
    %v1082 = vadd.f32 %v1081, %v1067
    %v1083 = vadd.f32 %v1082, %v1068
    %v1084 = vadd.f32 %v1083, %v1069
    %v1085 = vadd.f32 %v1084, %v1070
    %v1086 = vadd.f32 %v1085, %v1071
    %v1087 = vadd.f32 %v1086, %v1072
    %v1088 = vadd.f32 %v1087, %v1073
    %v1089 = vadd.f32 %v1088, %v1074
    %v1090 = vadd.f32 %v1089, %v1075
    %v1091 = vadd.f32 %v1090, %v1076
    %v1092 = vadd.f32 %v1091, %v1077
    %v1093 = vadd.f32 %v1092, %v1078
    %v1094 = vrot.slane %v1093, 4
    %v1095 = vadd.f32 %v1093, %v1094
    %v1096 = vrot.slane %v1095, 2
    %v1097 = vadd.f32 %v1095, %v1096
    %v1098 = vrot.slane %v1097, 1
    %v1099 = vadd.f32 %v1097, %v1098
    %v1100 = vmul.f32 %v1099, 0.015625
    %v1101 = vsub.f32 %v1063, %v1100
    %v1102 = vsub.f32 %v1064, %v1100
    %v1103 = vsub.f32 %v1065, %v1100
    %v1104 = vsub.f32 %v1066, %v1100
    %v1105 = vsub.f32 %v1067, %v1100
    %v1106 = vsub.f32 %v1068, %v1100
    %v1107 = vsub.f32 %v1069, %v1100
    %v1108 = vsub.f32 %v1070, %v1100
    %v1109 = vsub.f32 %v1071, %v1100
    %v1110 = vsub.f32 %v1072, %v1100
    %v1111 = vsub.f32 %v1073, %v1100
    %v1112 = vsub.f32 %v1074, %v1100
    %v1113 = vsub.f32 %v1075, %v1100
    %v1114 = vsub.f32 %v1076, %v1100
    %v1115 = vsub.f32 %v1077, %v1100
    %v1116 = vsub.f32 %v1078, %v1100
    %v1117 = vmul.f32 %v1101, %v167
    %v1118 = vmul.f32 %v1102, %v168
    %v1119 = vmul.f32 %v1103, %v169
    %v1120 = vmul.f32 %v1104, %v170
    %v1121 = vmul.f32 %v1105, %v171
    %v1122 = vmul.f32 %v1106, %v172
    %v1123 = vmul.f32 %v1107, %v173
    %v1124 = vmul.f32 %v1108, %v174
    %v1125 = vmul.f32 %v1109, %v175
    %v1126 = vmul.f32 %v1110, %v176
    %v1127 = vmul.f32 %v1111, %v177
    %v1128 = vmul.f32 %v1112, %v178
    %v1129 = vmul.f32 %v1113, %v179
    %v1130 = vmul.f32 %v1114, %v180
    %v1131 = vmul.f32 %v1115, %v181
    %v1132 = vmul.f32 %v1116, %v182
    %v1133 = vmul.f32 %v1117, %v1117
    %v1134 = vmul.f32 %v1118, %v1118
    %v1135 = vmul.f32 %v1119, %v1119
    %v1136 = vmul.f32 %v1120, %v1120
    %v1137 = vmul.f32 %v1121, %v1121
    %v1138 = vmul.f32 %v1122, %v1122
    %v1139 = vmul.f32 %v1123, %v1123
    %v1140 = vmul.f32 %v1124, %v1124
    %v1141 = vmul.f32 %v1125, %v1125
    %v1142 = vmul.f32 %v1126, %v1126
    %v1143 = vmul.f32 %v1127, %v1127
    %v1144 = vmul.f32 %v1128, %v1128
    %v1145 = vmul.f32 %v1129, %v1129
    %v1146 = vmul.f32 %v1130, %v1130
    %v1147 = vmul.f32 %v1131, %v1131
    %v1148 = vmul.f32 %v1132, %v1132
    %v1149 = vadd.f32 %v1133, %v1134
    %v1150 = vadd.f32 %v1149, %v1135
    %v1151 = vadd.f32 %v1150, %v1136
    %v1152 = vadd.f32 %v1151, %v1137
    %v1153 = vadd.f32 %v1152, %v1138
    %v1154 = vadd.f32 %v1153, %v1139
    %v1155 = vadd.f32 %v1154, %v1140
    %v1156 = vadd.f32 %v1155, %v1141
    %v1157 = vadd.f32 %v1156, %v1142
    %v1158 = vadd.f32 %v1157, %v1143
    %v1159 = vadd.f32 %v1158, %v1144
    %v1160 = vadd.f32 %v1159, %v1145
    %v1161 = vadd.f32 %v1160, %v1146
    %v1162 = vadd.f32 %v1161, %v1147
    %v1163 = vadd.f32 %v1162, %v1148
    %v1164 = vrot.slane %v1163, 4
    %v1165 = vadd.f32 %v1163, %v1164
    %v1166 = vrot.slane %v1165, 2
    %v1167 = vadd.f32 %v1165, %v1166
    %v1168 = vrot.slane %v1167, 1
    %v1169 = vadd.f32 %v1167, %v1168
    %v1170 = vmul.f32 %v1169, 0.015625
    %v1171 = vadd.f32 %v1170, 1e-05
    %v1172 = vrsqrt.pop %v1171
    %v1173 = vmul.f32 %v1101, %v1172
    %v1174 = vmul.f32 %v1102, %v1172
    %v1175 = vmul.f32 %v1103, %v1172
    %v1176 = vmul.f32 %v1104, %v1172
    %v1177 = vmul.f32 %v1105, %v1172
    %v1178 = vmul.f32 %v1106, %v1172
    %v1179 = vmul.f32 %v1107, %v1172
    %v1180 = vmul.f32 %v1108, %v1172
    %v1181 = vmul.f32 %v1109, %v1172
    %v1182 = vmul.f32 %v1110, %v1172
    %v1183 = vmul.f32 %v1111, %v1172
    %v1184 = vmul.f32 %v1112, %v1172
    %v1185 = vmul.f32 %v1113, %v1172
    %v1186 = vmul.f32 %v1114, %v1172
    %v1187 = vmul.f32 %v1115, %v1172
    %v1188 = vmul.f32 %v1116, %v1172
    %s1189 = scalar_lea.vmem %s4, 1
    %v1190 = vld [vmem:[%s1189] sm:$0x1]
    %v1192 = vlaneseq
    %v1193 = vshrl.u32 %v1192, 7
    %v1194 = vsub.s32 0, %v1193
    %v1195 = vrot.slane %v1190, %v1194
    %v1197 = vmul.f32 %v1173, %v1195
    %v1198 = vmul.f32 %v1174, %v1195
    %v1199 = vmul.f32 %v1175, %v1195
    %v1200 = vmul.f32 %v1176, %v1195
    %v1201 = vmul.f32 %v1177, %v1195
    %v1202 = vmul.f32 %v1178, %v1195
    %v1203 = vmul.f32 %v1179, %v1195
    %v1204 = vmul.f32 %v1180, %v1195
    %v1205 = vmul.f32 %v1181, %v1195
    %v1206 = vmul.f32 %v1182, %v1195
    %v1207 = vmul.f32 %v1183, %v1195
    %v1208 = vmul.f32 %v1184, %v1195
    %v1209 = vmul.f32 %v1185, %v1195
    %v1210 = vmul.f32 %v1186, %v1195
    %v1211 = vmul.f32 %v1187, %v1195
    %v1212 = vmul.f32 %v1188, %v1195
    %s1213 = scalar_lea.vmem %s5, 1
    %v1214 = vld [vmem:[%s1213] sm:$0x1]
    %v1216 = vlaneseq
    %v1217 = vshrl.u32 %v1216, 7
    %v1218 = vsub.s32 0, %v1217
    %v1219 = vrot.slane %v1214, %v1218
    %v1221 = vadd.f32 %v1197, %v1219
    %v1222 = vadd.f32 %v1198, %v1219
    %v1223 = vadd.f32 %v1199, %v1219
    %v1224 = vadd.f32 %v1200, %v1219
    %v1225 = vadd.f32 %v1201, %v1219
    %v1226 = vadd.f32 %v1202, %v1219
    %v1227 = vadd.f32 %v1203, %v1219
    %v1228 = vadd.f32 %v1204, %v1219
    %v1229 = vadd.f32 %v1205, %v1219
    %v1230 = vadd.f32 %v1206, %v1219
    %v1231 = vadd.f32 %v1207, %v1219
    %v1232 = vadd.f32 %v1208, %v1219
    %v1233 = vadd.f32 %v1209, %v1219
    %v1234 = vadd.f32 %v1210, %v1219
    %v1235 = vadd.f32 %v1211, %v1219
    %v1236 = vadd.f32 %v1212, %v1219
    %s1237 = scalar_lea.vmem [#allocation7], 128
    %v1238 = vld [vmem:[%s1237] sm:$0xf]
    %v1239 = vld [vmem:[%s1237 + $0x4] sm:$0xf]
    %v1240 = vld [vmem:[%s1237 + $0x8] sm:$0xf]
    %v1241 = vld [vmem:[%s1237 + $0xc] sm:$0xf]
    %v1242 = vld [vmem:[%s1237 + $0x10] sm:$0xf]
    %v1243 = vld [vmem:[%s1237 + $0x14] sm:$0xf]
    %v1244 = vld [vmem:[%s1237 + $0x18] sm:$0xf]
    %v1245 = vld [vmem:[%s1237 + $0x1c] sm:$0xf]
    %v1246 = vld [vmem:[%s1237 + $0x20] sm:$0xf]
    %v1247 = vld [vmem:[%s1237 + $0x24] sm:$0xf]
    %v1248 = vld [vmem:[%s1237 + $0x28] sm:$0xf]
    %v1249 = vld [vmem:[%s1237 + $0x2c] sm:$0xf]
    %v1250 = vld [vmem:[%s1237 + $0x30] sm:$0xf]
    %v1251 = vld [vmem:[%s1237 + $0x34] sm:$0xf]
    %v1252 = vld [vmem:[%s1237 + $0x38] sm:$0xf]
    %v1253 = vld [vmem:[%s1237 + $0x3c] sm:$0xf]
    %v1254 = vpack.c.bf16 %v1222, %v1221
    %v1255 = vpack.c.bf16 %v1224, %v1223
    %v1256 = vpack.c.bf16 %v1226, %v1225
    %v1257 = vpack.c.bf16 %v1228, %v1227
    %v1258 = vpack.c.bf16 %v1230, %v1229
    %v1259 = vpack.c.bf16 %v1232, %v1231
    %v1260 = vpack.c.bf16 %v1234, %v1233
    %v1261 = vpack.c.bf16 %v1236, %v1235
    %v1278 = vunpack.c.l.b16 %v1238
    %v1279 = vunpack.c.l.b16 %v1239
    %v1280 = vunpack.c.l.b16 %v1240
    %v1281 = vunpack.c.l.b16 %v1241
    %v1282 = vunpack.c.l.b16 %v1242
    %v1283 = vunpack.c.l.b16 %v1243
    %v1284 = vunpack.c.l.b16 %v1244
    %v1285 = vunpack.c.l.b16 %v1245
    %v1286 = vunpack.c.l.b16 %v1246
    %v1287 = vunpack.c.l.b16 %v1247
    %v1288 = vunpack.c.l.b16 %v1248
    %v1289 = vunpack.c.l.b16 %v1249
    %v1290 = vunpack.c.l.b16 %v1250
    %v1291 = vunpack.c.l.b16 %v1251
    %v1292 = vunpack.c.l.b16 %v1252
    %v1293 = vunpack.c.l.b16 %v1253
    %v1294 = vpack.c.b16 %v1279, %v1278
    %v1295 = vpack.c.b16 %v1281, %v1280
    %v1296 = vpack.c.b16 %v1283, %v1282
    %v1297 = vpack.c.b16 %v1285, %v1284
    %v1298 = vpack.c.b16 %v1287, %v1286
    %v1299 = vpack.c.b16 %v1289, %v1288
    %v1300 = vpack.c.b16 %v1291, %v1290
    %v1301 = vpack.c.b16 %v1293, %v1292
    %1310 = vmatprep.subr.bf16.mxu0 0
    %1311 = vmatpush1.bf16.msra.mxu0 %v1294
    %1312 = vmatprep.subr.bf16.mxu0 0
    %1313 = vmatpush1.bf16.msra.mxu0 %v1295
    %1314 = vmatprep.subr.bf16.mxu0 0
    %1315 = vmatpush1.bf16.msra.mxu0 %v1296
    %1316 = vmatprep.subr.bf16.mxu0 0
    %1317 = vmatpush1.bf16.msra.mxu0 %v1297
    %1318 = vmatprep.subr.bf16.mxu0 0
    %1319 = vmatpush1.bf16.msra.mxu0 %v1298
    %1320 = vmatprep.subr.bf16.mxu0 0
    %1321 = vmatpush1.bf16.msra.mxu0 %v1299
    %1322 = vmatprep.subr.bf16.mxu0 0
    %1323 = vmatpush1.bf16.msra.mxu0 %v1300
    %1324 = vmatprep.subr.bf16.mxu0 0
    %1325 = vmatpush1.bf16.msra.mxu0 %v1301
    %1326 = vmatprep.subr.bf16.mxu0 0
    %1327 = vmatpush1.bf16.msra.mxu0 0
    %1328 = vmatprep.subr.bf16.mxu0 0
    %1329 = vmatpush1.bf16.msra.mxu0 0
    %1330 = vmatprep.subr.bf16.mxu0 0
    %1331 = vmatpush1.bf16.msra.mxu0 0
    %1332 = vmatprep.subr.bf16.mxu0 0
    %1333 = vmatpush1.bf16.msra.mxu0 0
    %1334 = vmatprep.subr.bf16.mxu0 0
    %1335 = vmatpush1.bf16.msra.mxu0 0
    %1336 = vmatprep.subr.bf16.mxu0 0
    %1337 = vmatpush1.bf16.msra.mxu0 0
    %1338 = vmatprep.subr.bf16.mxu0 0
    %1339 = vmatpush1.bf16.msra.mxu0 0
    %1340 = vmatprep.subr.bf16.mxu0 0
    %1341 = vmatpush1.bf16.msra.mxu0 0
    %1342 = vmatprep.mubr.bf16.mxu0 0
    %1343 = vmatmul.mubr.bf16.gmra.mrb[0].mxu0 %v1254
    %v1344 = vpop.f32.mrb[0].mxu0
    %v1345 = vadd.f32 0.0, %v1344
    %v1346 = vpop.f32.mrb[0].mxu0
    %v1347 = vpop.f32.mrb[0].mxu0
    %v1348 = vadd.f32 0.0, %v1347
    %v1349 = vpop.f32.mrb[0].mxu0
    %1350 = vmatprep.mubr.bf16.mxu0 0
    %1351 = vmatmul.mubr.bf16.gmra.mrb[0].mxu0 %v1255
    %v1352 = vpop.f32.mrb[0].mxu0
    %v1353 = vadd.f32 0.0, %v1352
    %v1354 = vpop.f32.mrb[0].mxu0
    %v1355 = vpop.f32.mrb[0].mxu0
    %v1356 = vadd.f32 0.0, %v1355
    %v1357 = vpop.f32.mrb[0].mxu0
    %1358 = vmatprep.mubr.bf16.mxu0 0
    %1359 = vmatmul.mubr.bf16.gmra.mrb[0].mxu0 %v1256
    %v1360 = vpop.f32.mrb[0].mxu0
    %v1361 = vadd.f32 0.0, %v1360
    %v1362 = vpop.f32.mrb[0].mxu0
    %v1363 = vpop.f32.mrb[0].mxu0
    %v1364 = vadd.f32 0.0, %v1363
    %v1365 = vpop.f32.mrb[0].mxu0
    %1366 = vmatprep.mubr.bf16.mxu0 0
    %1367 = vmatmul.mubr.bf16.gmra.mrb[0].mxu0 %v1257
    %v1368 = vpop.f32.mrb[0].mxu0
    %v1369 = vadd.f32 0.0, %v1368
    %v1370 = vpop.f32.mrb[0].mxu0
    %v1371 = vpop.f32.mrb[0].mxu0
    %v1372 = vadd.f32 0.0, %v1371
    %v1373 = vpop.f32.mrb[0].mxu0
    %1374 = vmatprep.mubr.bf16.mxu0 0
    %1375 = vmatmul.mubr.bf16.gmra.mrb[0].mxu0 %v1258
    %v1376 = vpop.f32.mrb[0].mxu0
    %v1377 = vadd.f32 0.0, %v1376
    %v1378 = vpop.f32.mrb[0].mxu0
    %v1379 = vpop.f32.mrb[0].mxu0
    %v1380 = vadd.f32 0.0, %v1379
    %v1381 = vpop.f32.mrb[0].mxu0
    %1382 = vmatprep.mubr.bf16.mxu0 0
    %1383 = vmatmul.mubr.bf16.gmra.mrb[0].mxu0 %v1259
    %v1384 = vpop.f32.mrb[0].mxu0
    %v1385 = vadd.f32 0.0, %v1384
    %v1386 = vpop.f32.mrb[0].mxu0
    %v1387 = vpop.f32.mrb[0].mxu0
    %v1388 = vadd.f32 0.0, %v1387
    %v1389 = vpop.f32.mrb[0].mxu0
    %1390 = vmatprep.mubr.bf16.mxu0 0
    %1391 = vmatmul.mubr.bf16.gmra.mrb[0].mxu0 %v1260
    %v1392 = vpop.f32.mrb[0].mxu0
    %v1393 = vadd.f32 0.0, %v1392
    %v1394 = vpop.f32.mrb[0].mxu0
    %v1395 = vpop.f32.mrb[0].mxu0
    %v1396 = vadd.f32 0.0, %v1395
    %v1397 = vpop.f32.mrb[0].mxu0
    %1398 = vmatprep.mubr.bf16.mxu0 0
    %1399 = vmatmul.mubr.bf16.gmra.mrb[0].mxu0 %v1261
    %v1400 = vpop.f32.mrb[0].mxu0
    %v1401 = vadd.f32 0.0, %v1400
    %v1402 = vpop.f32.mrb[0].mxu0
    %v1403 = vpop.f32.mrb[0].mxu0
    %v1404 = vadd.f32 0.0, %v1403
    %v1405 = vpop.f32.mrb[0].mxu0
    %1406 = vdwg.mxu0
    %v1407 = vpack.c.bf16 %v1348, %v1345
    %v1408 = vpack.c.bf16 %v1356, %v1353
    %v1409 = vpack.c.bf16 %v1364, %v1361
    %v1410 = vpack.c.bf16 %v1372, %v1369
    %v1411 = vpack.c.bf16 %v1380, %v1377
    %v1412 = vpack.c.bf16 %v1388, %v1385
    %v1413 = vpack.c.bf16 %v1396, %v1393
    %v1414 = vpack.c.bf16 %v1404, %v1401
    %s1415 = scalar_lea.vmem %s3, 2
    %v1416 = vld [vmem:[%s1415] sm:$0x1]
    %v1418 = vlaneseq
    %v1419 = vshrl.u32 %v1418, 7
    %v1420 = vsub.s32 0, %v1419
    %v1421 = vrot.slane %v1416, %v1420
    %1423 = vmatprep.subr.bf16.mxu0 0
    %1424 = vmatpush1.bf16.msra.mxu0 %v1407
    %1425 = vmatprep.subr.bf16.mxu0 0
    %1426 = vmatpush1.bf16.msra.mxu0 %v1408
    %1427 = vmatprep.subr.bf16.mxu0 0
    %1428 = vmatpush1.bf16.msra.mxu0 %v1409
    %1429 = vmatprep.subr.bf16.mxu0 0
    %1430 = vmatpush1.bf16.msra.mxu0 %v1410
    %1431 = vmatprep.subr.bf16.mxu0 0
    %1432 = vmatpush1.bf16.msra.mxu0 %v1411
    %1433 = vmatprep.subr.bf16.mxu0 0
    %1434 = vmatpush1.bf16.msra.mxu0 %v1412
    %1435 = vmatprep.subr.bf16.mxu0 0
    %1436 = vmatpush1.bf16.msra.mxu0 %v1413
    %1437 = vmatprep.subr.bf16.mxu0 0
    %1438 = vmatpush1.bf16.msra.mxu0 %v1414
    %1439 = vmatprep.subr.bf16.mxu0 0
    %1440 = vmatpush1.bf16.msra.mxu0 0
    %1441 = vmatprep.subr.bf16.mxu0 0
    %1442 = vmatpush1.bf16.msra.mxu0 0
    %1443 = vmatprep.subr.bf16.mxu0 0
    %1444 = vmatpush1.bf16.msra.mxu0 0
    %1445 = vmatprep.subr.bf16.mxu0 0
    %1446 = vmatpush1.bf16.msra.mxu0 0
    %1447 = vmatprep.subr.bf16.mxu0 0
    %1448 = vmatpush1.bf16.msra.mxu0 0
    %1449 = vmatprep.subr.bf16.mxu0 0
    %1450 = vmatpush1.bf16.msra.mxu0 0
    %1451 = vmatprep.subr.bf16.mxu0 0
    %1452 = vmatpush1.bf16.msra.mxu0 0
    %1453 = vmatprep.subr.bf16.mxu0 0
    %1454 = vmatpush1.bf16.msra.mxu0 0
    %1455 = vmatprep.mubr.bf16.mxu0 0
    %1456 = vmatmul.mubr.bf16.gmra.mrb[0].mxu0 %v399
    %v1457 = vpop.f32.mrb[0].mxu0
    %v1458 = vadd.f32 %v1421, %v1457
    %v1459 = vpop.f32.mrb[0].mxu0
    %v1460 = vpop.f32.mrb[0].mxu0
    %v1461 = vadd.f32 %v1421, %v1460
    %v1462 = vpop.f32.mrb[0].mxu0
    %1463 = vmatprep.mubr.bf16.mxu0 0
    %1464 = vmatmul.mubr.bf16.gmra.mrb[0].mxu0 %v400
    %v1465 = vpop.f32.mrb[0].mxu0
    %v1466 = vadd.f32 %v1421, %v1465
    %v1467 = vpop.f32.mrb[0].mxu0
    %v1468 = vpop.f32.mrb[0].mxu0
    %v1469 = vadd.f32 %v1421, %v1468
    %v1470 = vpop.f32.mrb[0].mxu0
    %1471 = vmatprep.mubr.bf16.mxu0 0
    %1472 = vmatmul.mubr.bf16.gmra.mrb[0].mxu0 %v401
    %v1473 = vpop.f32.mrb[0].mxu0
    %v1474 = vadd.f32 %v1421, %v1473
    %v1475 = vpop.f32.mrb[0].mxu0
    %v1476 = vpop.f32.mrb[0].mxu0
    %v1477 = vadd.f32 %v1421, %v1476
    %v1478 = vpop.f32.mrb[0].mxu0
    %1479 = vmatprep.mubr.bf16.mxu0 0
    %1480 = vmatmul.mubr.bf16.gmra.mrb[0].mxu0 %v402
    %v1481 = vpop.f32.mrb[0].mxu0
    %v1482 = vadd.f32 %v1421, %v1481
    %v1483 = vpop.f32.mrb[0].mxu0
    %v1484 = vpop.f32.mrb[0].mxu0
    %v1485 = vadd.f32 %v1421, %v1484
    %v1486 = vpop.f32.mrb[0].mxu0
    %1487 = vmatprep.mubr.bf16.mxu0 0
    %1488 = vmatmul.mubr.bf16.gmra.mrb[0].mxu0 %v403
    %v1489 = vpop.f32.mrb[0].mxu0
    %v1490 = vadd.f32 %v1421, %v1489
    %v1491 = vpop.f32.mrb[0].mxu0
    %v1492 = vpop.f32.mrb[0].mxu0
    %v1493 = vadd.f32 %v1421, %v1492
    %v1494 = vpop.f32.mrb[0].mxu0
    %1495 = vmatprep.mubr.bf16.mxu0 0
    %1496 = vmatmul.mubr.bf16.gmra.mrb[0].mxu0 %v404
    %v1497 = vpop.f32.mrb[0].mxu0
    %v1498 = vadd.f32 %v1421, %v1497
    %v1499 = vpop.f32.mrb[0].mxu0
    %v1500 = vpop.f32.mrb[0].mxu0
    %v1501 = vadd.f32 %v1421, %v1500
    %v1502 = vpop.f32.mrb[0].mxu0
    %1503 = vmatprep.mubr.bf16.mxu0 0
    %1504 = vmatmul.mubr.bf16.gmra.mrb[0].mxu0 %v405
    %v1505 = vpop.f32.mrb[0].mxu0
    %v1506 = vadd.f32 %v1421, %v1505
    %v1507 = vpop.f32.mrb[0].mxu0
    %v1508 = vpop.f32.mrb[0].mxu0
    %v1509 = vadd.f32 %v1421, %v1508
    %v1510 = vpop.f32.mrb[0].mxu0
    %1511 = vmatprep.mubr.bf16.mxu0 0
    %1512 = vmatmul.mubr.bf16.gmra.mrb[0].mxu0 %v406
    %v1513 = vpop.f32.mrb[0].mxu0
    %v1514 = vadd.f32 %v1421, %v1513
    %v1515 = vpop.f32.mrb[0].mxu0
    %v1516 = vpop.f32.mrb[0].mxu0
    %v1517 = vadd.f32 %v1421, %v1516
    %v1518 = vpop.f32.mrb[0].mxu0
    %1519 = vdwg.mxu0
    %vm1520 = vcmp.ge.f32.partialorder %v1458, 0.0
    %vm1521 = vcmp.ge.f32.partialorder %v1461, 0.0
    %vm1522 = vcmp.ge.f32.partialorder %v1466, 0.0
    %vm1523 = vcmp.ge.f32.partialorder %v1469, 0.0
    %vm1524 = vcmp.ge.f32.partialorder %v1474, 0.0
    %vm1525 = vcmp.ge.f32.partialorder %v1477, 0.0
    %vm1526 = vcmp.ge.f32.partialorder %v1482, 0.0
    %vm1527 = vcmp.ge.f32.partialorder %v1485, 0.0
    %vm1528 = vcmp.ge.f32.partialorder %v1490, 0.0
    %vm1529 = vcmp.ge.f32.partialorder %v1493, 0.0
    %vm1530 = vcmp.ge.f32.partialorder %v1498, 0.0
    %vm1531 = vcmp.ge.f32.partialorder %v1501, 0.0
    %vm1532 = vcmp.ge.f32.partialorder %v1506, 0.0
    %vm1533 = vcmp.ge.f32.partialorder %v1509, 0.0
    %vm1534 = vcmp.ge.f32.partialorder %v1514, 0.0
    %vm1535 = vcmp.ge.f32.partialorder %v1517, 0.0
    %v1536 = vmul.f32 %v1458, 0.2
    %v1537 = vmul.f32 %v1461, 0.2
    %v1538 = vmul.f32 %v1466, 0.2
    %v1539 = vmul.f32 %v1469, 0.2
    %v1540 = vmul.f32 %v1474, 0.2
    %v1541 = vmul.f32 %v1477, 0.2
    %v1542 = vmul.f32 %v1482, 0.2
    %v1543 = vmul.f32 %v1485, 0.2
    %v1544 = vmul.f32 %v1490, 0.2
    %v1545 = vmul.f32 %v1493, 0.2
    %v1546 = vmul.f32 %v1498, 0.2
    %v1547 = vmul.f32 %v1501, 0.2
    %v1548 = vmul.f32 %v1506, 0.2
    %v1549 = vmul.f32 %v1509, 0.2
    %v1550 = vmul.f32 %v1514, 0.2
    %v1551 = vmul.f32 %v1517, 0.2
    %v1552 = vsel %vm1520, %v1458, %v1536
    %v1553 = vsel %vm1521, %v1461, %v1537
    %v1554 = vsel %vm1522, %v1466, %v1538
    %v1555 = vsel %vm1523, %v1469, %v1539
    %v1556 = vsel %vm1524, %v1474, %v1540
    %v1557 = vsel %vm1525, %v1477, %v1541
    %v1558 = vsel %vm1526, %v1482, %v1542
    %v1559 = vsel %vm1527, %v1485, %v1543
    %v1560 = vsel %vm1528, %v1490, %v1544
    %v1561 = vsel %vm1529, %v1493, %v1545
    %v1562 = vsel %vm1530, %v1498, %v1546
    %v1563 = vsel %vm1531, %v1501, %v1547
    %v1564 = vsel %vm1532, %v1506, %v1548
    %v1565 = vsel %vm1533, %v1509, %v1549
    %v1566 = vsel %vm1534, %v1514, %v1550
    %v1567 = vsel %vm1535, %v1517, %v1551
    %v1568 = vmul.f32 %v1552, %v167
    %v1569 = vmul.f32 %v1553, %v168
    %v1570 = vmul.f32 %v1554, %v169
    %v1571 = vmul.f32 %v1555, %v170
    %v1572 = vmul.f32 %v1556, %v171
    %v1573 = vmul.f32 %v1557, %v172
    %v1574 = vmul.f32 %v1558, %v173
    %v1575 = vmul.f32 %v1559, %v174
    %v1576 = vmul.f32 %v1560, %v175
    %v1577 = vmul.f32 %v1561, %v176
    %v1578 = vmul.f32 %v1562, %v177
    %v1579 = vmul.f32 %v1563, %v178
    %v1580 = vmul.f32 %v1564, %v179
    %v1581 = vmul.f32 %v1565, %v180
    %v1582 = vmul.f32 %v1566, %v181
    %v1583 = vmul.f32 %v1567, %v182
    %v1584 = vadd.f32 %v1568, %v1569
    %v1585 = vadd.f32 %v1584, %v1570
    %v1586 = vadd.f32 %v1585, %v1571
    %v1587 = vadd.f32 %v1586, %v1572
    %v1588 = vadd.f32 %v1587, %v1573
    %v1589 = vadd.f32 %v1588, %v1574
    %v1590 = vadd.f32 %v1589, %v1575
    %v1591 = vadd.f32 %v1590, %v1576
    %v1592 = vadd.f32 %v1591, %v1577
    %v1593 = vadd.f32 %v1592, %v1578
    %v1594 = vadd.f32 %v1593, %v1579
    %v1595 = vadd.f32 %v1594, %v1580
    %v1596 = vadd.f32 %v1595, %v1581
    %v1597 = vadd.f32 %v1596, %v1582
    %v1598 = vadd.f32 %v1597, %v1583
    %v1599 = vrot.slane %v1598, 4
    %v1600 = vadd.f32 %v1598, %v1599
    %v1601 = vrot.slane %v1600, 2
    %v1602 = vadd.f32 %v1600, %v1601
    %v1603 = vrot.slane %v1602, 1
    %v1604 = vadd.f32 %v1602, %v1603
    %v1605 = vmul.f32 %v1604, 0.015625
    %v1606 = vsub.f32 %v1568, %v1605
    %v1607 = vsub.f32 %v1569, %v1605
    %v1608 = vsub.f32 %v1570, %v1605
    %v1609 = vsub.f32 %v1571, %v1605
    %v1610 = vsub.f32 %v1572, %v1605
    %v1611 = vsub.f32 %v1573, %v1605
    %v1612 = vsub.f32 %v1574, %v1605
    %v1613 = vsub.f32 %v1575, %v1605
    %v1614 = vsub.f32 %v1576, %v1605
    %v1615 = vsub.f32 %v1577, %v1605
    %v1616 = vsub.f32 %v1578, %v1605
    %v1617 = vsub.f32 %v1579, %v1605
    %v1618 = vsub.f32 %v1580, %v1605
    %v1619 = vsub.f32 %v1581, %v1605
    %v1620 = vsub.f32 %v1582, %v1605
    %v1621 = vsub.f32 %v1583, %v1605
    %v1622 = vmul.f32 %v1606, %v167
    %v1623 = vmul.f32 %v1607, %v168
    %v1624 = vmul.f32 %v1608, %v169
    %v1625 = vmul.f32 %v1609, %v170
    %v1626 = vmul.f32 %v1610, %v171
    %v1627 = vmul.f32 %v1611, %v172
    %v1628 = vmul.f32 %v1612, %v173
    %v1629 = vmul.f32 %v1613, %v174
    %v1630 = vmul.f32 %v1614, %v175
    %v1631 = vmul.f32 %v1615, %v176
    %v1632 = vmul.f32 %v1616, %v177
    %v1633 = vmul.f32 %v1617, %v178
    %v1634 = vmul.f32 %v1618, %v179
    %v1635 = vmul.f32 %v1619, %v180
    %v1636 = vmul.f32 %v1620, %v181
    %v1637 = vmul.f32 %v1621, %v182
    %v1638 = vmul.f32 %v1622, %v1622
    %v1639 = vmul.f32 %v1623, %v1623
    %v1640 = vmul.f32 %v1624, %v1624
    %v1641 = vmul.f32 %v1625, %v1625
    %v1642 = vmul.f32 %v1626, %v1626
    %v1643 = vmul.f32 %v1627, %v1627
    %v1644 = vmul.f32 %v1628, %v1628
    %v1645 = vmul.f32 %v1629, %v1629
    %v1646 = vmul.f32 %v1630, %v1630
    %v1647 = vmul.f32 %v1631, %v1631
    %v1648 = vmul.f32 %v1632, %v1632
    %v1649 = vmul.f32 %v1633, %v1633
    %v1650 = vmul.f32 %v1634, %v1634
    %v1651 = vmul.f32 %v1635, %v1635
    %v1652 = vmul.f32 %v1636, %v1636
    %v1653 = vmul.f32 %v1637, %v1637
    %v1654 = vadd.f32 %v1638, %v1639
    %v1655 = vadd.f32 %v1654, %v1640
    %v1656 = vadd.f32 %v1655, %v1641
    %v1657 = vadd.f32 %v1656, %v1642
    %v1658 = vadd.f32 %v1657, %v1643
    %v1659 = vadd.f32 %v1658, %v1644
    %v1660 = vadd.f32 %v1659, %v1645
    %v1661 = vadd.f32 %v1660, %v1646
    %v1662 = vadd.f32 %v1661, %v1647
    %v1663 = vadd.f32 %v1662, %v1648
    %v1664 = vadd.f32 %v1663, %v1649
    %v1665 = vadd.f32 %v1664, %v1650
    %v1666 = vadd.f32 %v1665, %v1651
    %v1667 = vadd.f32 %v1666, %v1652
    %v1668 = vadd.f32 %v1667, %v1653
    %v1669 = vrot.slane %v1668, 4
    %v1670 = vadd.f32 %v1668, %v1669
    %v1671 = vrot.slane %v1670, 2
    %v1672 = vadd.f32 %v1670, %v1671
    %v1673 = vrot.slane %v1672, 1
    %v1674 = vadd.f32 %v1672, %v1673
    %v1675 = vmul.f32 %v1674, 0.015625
    %v1676 = vadd.f32 %v1675, 1e-05
    %v1677 = vrsqrt.pop %v1676
    %v1678 = vmul.f32 %v1606, %v1677
    %v1679 = vmul.f32 %v1607, %v1677
    %v1680 = vmul.f32 %v1608, %v1677
    %v1681 = vmul.f32 %v1609, %v1677
    %v1682 = vmul.f32 %v1610, %v1677
    %v1683 = vmul.f32 %v1611, %v1677
    %v1684 = vmul.f32 %v1612, %v1677
    %v1685 = vmul.f32 %v1613, %v1677
    %v1686 = vmul.f32 %v1614, %v1677
    %v1687 = vmul.f32 %v1615, %v1677
    %v1688 = vmul.f32 %v1616, %v1677
    %v1689 = vmul.f32 %v1617, %v1677
    %v1690 = vmul.f32 %v1618, %v1677
    %v1691 = vmul.f32 %v1619, %v1677
    %v1692 = vmul.f32 %v1620, %v1677
    %v1693 = vmul.f32 %v1621, %v1677
    %s1694 = scalar_lea.vmem %s4, 2
    %v1695 = vld [vmem:[%s1694] sm:$0x1]
    %v1697 = vlaneseq
    %v1698 = vshrl.u32 %v1697, 7
    %v1699 = vsub.s32 0, %v1698
    %v1700 = vrot.slane %v1695, %v1699
    %v1702 = vmul.f32 %v1678, %v1700
    %v1703 = vmul.f32 %v1679, %v1700
    %v1704 = vmul.f32 %v1680, %v1700
    %v1705 = vmul.f32 %v1681, %v1700
    %v1706 = vmul.f32 %v1682, %v1700
    %v1707 = vmul.f32 %v1683, %v1700
    %v1708 = vmul.f32 %v1684, %v1700
    %v1709 = vmul.f32 %v1685, %v1700
    %v1710 = vmul.f32 %v1686, %v1700
    %v1711 = vmul.f32 %v1687, %v1700
    %v1712 = vmul.f32 %v1688, %v1700
    %v1713 = vmul.f32 %v1689, %v1700
    %v1714 = vmul.f32 %v1690, %v1700
    %v1715 = vmul.f32 %v1691, %v1700
    %v1716 = vmul.f32 %v1692, %v1700
    %v1717 = vmul.f32 %v1693, %v1700
    %s1718 = scalar_lea.vmem %s5, 2
    %v1719 = vld [vmem:[%s1718] sm:$0x1]
    %v1721 = vlaneseq
    %v1722 = vshrl.u32 %v1721, 7
    %v1723 = vsub.s32 0, %v1722
    %v1724 = vrot.slane %v1719, %v1723
    %v1726 = vadd.f32 %v1702, %v1724
    %v1727 = vadd.f32 %v1703, %v1724
    %v1728 = vadd.f32 %v1704, %v1724
    %v1729 = vadd.f32 %v1705, %v1724
    %v1730 = vadd.f32 %v1706, %v1724
    %v1731 = vadd.f32 %v1707, %v1724
    %v1732 = vadd.f32 %v1708, %v1724
    %v1733 = vadd.f32 %v1709, %v1724
    %v1734 = vadd.f32 %v1710, %v1724
    %v1735 = vadd.f32 %v1711, %v1724
    %v1736 = vadd.f32 %v1712, %v1724
    %v1737 = vadd.f32 %v1713, %v1724
    %v1738 = vadd.f32 %v1714, %v1724
    %v1739 = vadd.f32 %v1715, %v1724
    %v1740 = vadd.f32 %v1716, %v1724
    %v1741 = vadd.f32 %v1717, %v1724
    %s1742 = scalar_lea.vmem [#allocation7], 192
    %v1743 = vld [vmem:[%s1742] sm:$0xf]
    %v1744 = vld [vmem:[%s1742 + $0x4] sm:$0xf]
    %v1745 = vld [vmem:[%s1742 + $0x8] sm:$0xf]
    %v1746 = vld [vmem:[%s1742 + $0xc] sm:$0xf]
    %v1747 = vld [vmem:[%s1742 + $0x10] sm:$0xf]
    %v1748 = vld [vmem:[%s1742 + $0x14] sm:$0xf]
    %v1749 = vld [vmem:[%s1742 + $0x18] sm:$0xf]
    %v1750 = vld [vmem:[%s1742 + $0x1c] sm:$0xf]
    %v1751 = vld [vmem:[%s1742 + $0x20] sm:$0xf]
    %v1752 = vld [vmem:[%s1742 + $0x24] sm:$0xf]
    %v1753 = vld [vmem:[%s1742 + $0x28] sm:$0xf]
    %v1754 = vld [vmem:[%s1742 + $0x2c] sm:$0xf]
    %v1755 = vld [vmem:[%s1742 + $0x30] sm:$0xf]
    %v1756 = vld [vmem:[%s1742 + $0x34] sm:$0xf]
    %v1757 = vld [vmem:[%s1742 + $0x38] sm:$0xf]
    %v1758 = vld [vmem:[%s1742 + $0x3c] sm:$0xf]
    %v1759 = vpack.c.bf16 %v1727, %v1726
    %v1760 = vpack.c.bf16 %v1729, %v1728
    %v1761 = vpack.c.bf16 %v1731, %v1730
    %v1762 = vpack.c.bf16 %v1733, %v1732
    %v1763 = vpack.c.bf16 %v1735, %v1734
    %v1764 = vpack.c.bf16 %v1737, %v1736
    %v1765 = vpack.c.bf16 %v1739, %v1738
    %v1766 = vpack.c.bf16 %v1741, %v1740
    %v1783 = vunpack.c.l.b16 %v1743
    %v1784 = vunpack.c.l.b16 %v1744
    %v1785 = vunpack.c.l.b16 %v1745
    %v1786 = vunpack.c.l.b16 %v1746
    %v1787 = vunpack.c.l.b16 %v1747
    %v1788 = vunpack.c.l.b16 %v1748
    %v1789 = vunpack.c.l.b16 %v1749
    %v1790 = vunpack.c.l.b16 %v1750
    %v1791 = vunpack.c.l.b16 %v1751
    %v1792 = vunpack.c.l.b16 %v1752
    %v1793 = vunpack.c.l.b16 %v1753
    %v1794 = vunpack.c.l.b16 %v1754
    %v1795 = vunpack.c.l.b16 %v1755
    %v1796 = vunpack.c.l.b16 %v1756
    %v1797 = vunpack.c.l.b16 %v1757
    %v1798 = vunpack.c.l.b16 %v1758
    %v1799 = vpack.c.b16 %v1784, %v1783
    %v1800 = vpack.c.b16 %v1786, %v1785
    %v1801 = vpack.c.b16 %v1788, %v1787
    %v1802 = vpack.c.b16 %v1790, %v1789
    %v1803 = vpack.c.b16 %v1792, %v1791
    %v1804 = vpack.c.b16 %v1794, %v1793
    %v1805 = vpack.c.b16 %v1796, %v1795
    %v1806 = vpack.c.b16 %v1798, %v1797
    %1815 = vmatprep.subr.bf16.mxu0 0
    %1816 = vmatpush1.bf16.msra.mxu0 %v1799
    %1817 = vmatprep.subr.bf16.mxu0 0
    %1818 = vmatpush1.bf16.msra.mxu0 %v1800
    %1819 = vmatprep.subr.bf16.mxu0 0
    %1820 = vmatpush1.bf16.msra.mxu0 %v1801
    %1821 = vmatprep.subr.bf16.mxu0 0
    %1822 = vmatpush1.bf16.msra.mxu0 %v1802
    %1823 = vmatprep.subr.bf16.mxu0 0
    %1824 = vmatpush1.bf16.msra.mxu0 %v1803
    %1825 = vmatprep.subr.bf16.mxu0 0
    %1826 = vmatpush1.bf16.msra.mxu0 %v1804
    %1827 = vmatprep.subr.bf16.mxu0 0
    %1828 = vmatpush1.bf16.msra.mxu0 %v1805
    %1829 = vmatprep.subr.bf16.mxu0 0
    %1830 = vmatpush1.bf16.msra.mxu0 %v1806
    %1831 = vmatprep.subr.bf16.mxu0 0
    %1832 = vmatpush1.bf16.msra.mxu0 0
    %1833 = vmatprep.subr.bf16.mxu0 0
    %1834 = vmatpush1.bf16.msra.mxu0 0
    %1835 = vmatprep.subr.bf16.mxu0 0
    %1836 = vmatpush1.bf16.msra.mxu0 0
    %1837 = vmatprep.subr.bf16.mxu0 0
    %1838 = vmatpush1.bf16.msra.mxu0 0
    %1839 = vmatprep.subr.bf16.mxu0 0
    %1840 = vmatpush1.bf16.msra.mxu0 0
    %1841 = vmatprep.subr.bf16.mxu0 0
    %1842 = vmatpush1.bf16.msra.mxu0 0
    %1843 = vmatprep.subr.bf16.mxu0 0
    %1844 = vmatpush1.bf16.msra.mxu0 0
    %1845 = vmatprep.subr.bf16.mxu0 0
    %1846 = vmatpush1.bf16.msra.mxu0 0
    %1847 = vmatprep.mubr.bf16.mxu0 0
    %1848 = vmatmul.mubr.bf16.gmra.mrb[0].mxu0 %v1759
    %v1849 = vpop.f32.mrb[0].mxu0
    %v1850 = vadd.f32 0.0, %v1849
    %v1851 = vpop.f32.mrb[0].mxu0
    %v1852 = vpop.f32.mrb[0].mxu0
    %v1853 = vadd.f32 0.0, %v1852
    %v1854 = vpop.f32.mrb[0].mxu0
    %1855 = vmatprep.mubr.bf16.mxu0 0
    %1856 = vmatmul.mubr.bf16.gmra.mrb[0].mxu0 %v1760
    %v1857 = vpop.f32.mrb[0].mxu0
    %v1858 = vadd.f32 0.0, %v1857
    %v1859 = vpop.f32.mrb[0].mxu0
    %v1860 = vpop.f32.mrb[0].mxu0
    %v1861 = vadd.f32 0.0, %v1860
    %v1862 = vpop.f32.mrb[0].mxu0
    %1863 = vmatprep.mubr.bf16.mxu0 0
    %1864 = vmatmul.mubr.bf16.gmra.mrb[0].mxu0 %v1761
    %v1865 = vpop.f32.mrb[0].mxu0
    %v1866 = vadd.f32 0.0, %v1865
    %v1867 = vpop.f32.mrb[0].mxu0
    %v1868 = vpop.f32.mrb[0].mxu0
    %v1869 = vadd.f32 0.0, %v1868
    %v1870 = vpop.f32.mrb[0].mxu0
    %1871 = vmatprep.mubr.bf16.mxu0 0
    %1872 = vmatmul.mubr.bf16.gmra.mrb[0].mxu0 %v1762
    %v1873 = vpop.f32.mrb[0].mxu0
    %v1874 = vadd.f32 0.0, %v1873
    %v1875 = vpop.f32.mrb[0].mxu0
    %v1876 = vpop.f32.mrb[0].mxu0
    %v1877 = vadd.f32 0.0, %v1876
    %v1878 = vpop.f32.mrb[0].mxu0
    %1879 = vmatprep.mubr.bf16.mxu0 0
    %1880 = vmatmul.mubr.bf16.gmra.mrb[0].mxu0 %v1763
    %v1881 = vpop.f32.mrb[0].mxu0
    %v1882 = vadd.f32 0.0, %v1881
    %v1883 = vpop.f32.mrb[0].mxu0
    %v1884 = vpop.f32.mrb[0].mxu0
    %v1885 = vadd.f32 0.0, %v1884
    %v1886 = vpop.f32.mrb[0].mxu0
    %1887 = vmatprep.mubr.bf16.mxu0 0
    %1888 = vmatmul.mubr.bf16.gmra.mrb[0].mxu0 %v1764
    %v1889 = vpop.f32.mrb[0].mxu0
    %v1890 = vadd.f32 0.0, %v1889
    %v1891 = vpop.f32.mrb[0].mxu0
    %v1892 = vpop.f32.mrb[0].mxu0
    %v1893 = vadd.f32 0.0, %v1892
    %v1894 = vpop.f32.mrb[0].mxu0
    %1895 = vmatprep.mubr.bf16.mxu0 0
    %1896 = vmatmul.mubr.bf16.gmra.mrb[0].mxu0 %v1765
    %v1897 = vpop.f32.mrb[0].mxu0
    %v1898 = vadd.f32 0.0, %v1897
    %v1899 = vpop.f32.mrb[0].mxu0
    %v1900 = vpop.f32.mrb[0].mxu0
    %v1901 = vadd.f32 0.0, %v1900
    %v1902 = vpop.f32.mrb[0].mxu0
    %1903 = vmatprep.mubr.bf16.mxu0 0
    %1904 = vmatmul.mubr.bf16.gmra.mrb[0].mxu0 %v1766
    %v1905 = vpop.f32.mrb[0].mxu0
    %v1906 = vadd.f32 0.0, %v1905
    %v1907 = vpop.f32.mrb[0].mxu0
    %v1908 = vpop.f32.mrb[0].mxu0
    %v1909 = vadd.f32 0.0, %v1908
    %v1910 = vpop.f32.mrb[0].mxu0
    %1911 = vdwg.mxu0
    %v1912 = vpack.c.bf16 %v1853, %v1850
    %v1913 = vpack.c.bf16 %v1861, %v1858
    %v1914 = vpack.c.bf16 %v1869, %v1866
    %v1915 = vpack.c.bf16 %v1877, %v1874
    %v1916 = vpack.c.bf16 %v1885, %v1882
    %v1917 = vpack.c.bf16 %v1893, %v1890
    %v1918 = vpack.c.bf16 %v1901, %v1898
    %v1919 = vpack.c.bf16 %v1909, %v1906
    %s1920 = scalar_lea.vmem %s3, 3
    %v1921 = vld [vmem:[%s1920] sm:$0x1]
    %v1923 = vlaneseq
    %v1924 = vshrl.u32 %v1923, 7
    %v1925 = vsub.s32 0, %v1924
    %v1926 = vrot.slane %v1921, %v1925
    %1928 = vmatprep.subr.bf16.mxu0 0
    %1929 = vmatpush1.bf16.msra.mxu0 %v1912
    %1930 = vmatprep.subr.bf16.mxu0 0
    %1931 = vmatpush1.bf16.msra.mxu0 %v1913
    %1932 = vmatprep.subr.bf16.mxu0 0
    %1933 = vmatpush1.bf16.msra.mxu0 %v1914
    %1934 = vmatprep.subr.bf16.mxu0 0
    %1935 = vmatpush1.bf16.msra.mxu0 %v1915
    %1936 = vmatprep.subr.bf16.mxu0 0
    %1937 = vmatpush1.bf16.msra.mxu0 %v1916
    %1938 = vmatprep.subr.bf16.mxu0 0
    %1939 = vmatpush1.bf16.msra.mxu0 %v1917
    %1940 = vmatprep.subr.bf16.mxu0 0
    %1941 = vmatpush1.bf16.msra.mxu0 %v1918
    %1942 = vmatprep.subr.bf16.mxu0 0
    %1943 = vmatpush1.bf16.msra.mxu0 %v1919
    %1944 = vmatprep.subr.bf16.mxu0 0
    %1945 = vmatpush1.bf16.msra.mxu0 0
    %1946 = vmatprep.subr.bf16.mxu0 0
    %1947 = vmatpush1.bf16.msra.mxu0 0
    %1948 = vmatprep.subr.bf16.mxu0 0
    %1949 = vmatpush1.bf16.msra.mxu0 0
    %1950 = vmatprep.subr.bf16.mxu0 0
    %1951 = vmatpush1.bf16.msra.mxu0 0
    %1952 = vmatprep.subr.bf16.mxu0 0
    %1953 = vmatpush1.bf16.msra.mxu0 0
    %1954 = vmatprep.subr.bf16.mxu0 0
    %1955 = vmatpush1.bf16.msra.mxu0 0
    %1956 = vmatprep.subr.bf16.mxu0 0
    %1957 = vmatpush1.bf16.msra.mxu0 0
    %1958 = vmatprep.subr.bf16.mxu0 0
    %1959 = vmatpush1.bf16.msra.mxu0 0
    %1960 = vmatprep.mubr.bf16.mxu0 0
    %1961 = vmatmul.mubr.bf16.gmra.mrb[0].mxu0 %v399
    %v1962 = vpop.f32.mrb[0].mxu0
    %v1963 = vadd.f32 %v1926, %v1962
    %v1964 = vpop.f32.mrb[0].mxu0
    %v1965 = vpop.f32.mrb[0].mxu0
    %v1966 = vadd.f32 %v1926, %v1965
    %v1967 = vpop.f32.mrb[0].mxu0
    %1968 = vmatprep.mubr.bf16.mxu0 0
    %1969 = vmatmul.mubr.bf16.gmra.mrb[0].mxu0 %v400
    %v1970 = vpop.f32.mrb[0].mxu0
    %v1971 = vadd.f32 %v1926, %v1970
    %v1972 = vpop.f32.mrb[0].mxu0
    %v1973 = vpop.f32.mrb[0].mxu0
    %v1974 = vadd.f32 %v1926, %v1973
    %v1975 = vpop.f32.mrb[0].mxu0
    %1976 = vmatprep.mubr.bf16.mxu0 0
    %1977 = vmatmul.mubr.bf16.gmra.mrb[0].mxu0 %v401
    %v1978 = vpop.f32.mrb[0].mxu0
    %v1979 = vadd.f32 %v1926, %v1978
    %v1980 = vpop.f32.mrb[0].mxu0
    %v1981 = vpop.f32.mrb[0].mxu0
    %v1982 = vadd.f32 %v1926, %v1981
    %v1983 = vpop.f32.mrb[0].mxu0
    %1984 = vmatprep.mubr.bf16.mxu0 0
    %1985 = vmatmul.mubr.bf16.gmra.mrb[0].mxu0 %v402
    %v1986 = vpop.f32.mrb[0].mxu0
    %v1987 = vadd.f32 %v1926, %v1986
    %v1988 = vpop.f32.mrb[0].mxu0
    %v1989 = vpop.f32.mrb[0].mxu0
    %v1990 = vadd.f32 %v1926, %v1989
    %v1991 = vpop.f32.mrb[0].mxu0
    %1992 = vmatprep.mubr.bf16.mxu0 0
    %1993 = vmatmul.mubr.bf16.gmra.mrb[0].mxu0 %v403
    %v1994 = vpop.f32.mrb[0].mxu0
    %v1995 = vadd.f32 %v1926, %v1994
    %v1996 = vpop.f32.mrb[0].mxu0
    %v1997 = vpop.f32.mrb[0].mxu0
    %v1998 = vadd.f32 %v1926, %v1997
    %v1999 = vpop.f32.mrb[0].mxu0
    %2000 = vmatprep.mubr.bf16.mxu0 0
    %2001 = vmatmul.mubr.bf16.gmra.mrb[0].mxu0 %v404
    %v2002 = vpop.f32.mrb[0].mxu0
    %v2003 = vadd.f32 %v1926, %v2002
    %v2004 = vpop.f32.mrb[0].mxu0
    %v2005 = vpop.f32.mrb[0].mxu0
    %v2006 = vadd.f32 %v1926, %v2005
    %v2007 = vpop.f32.mrb[0].mxu0
    %2008 = vmatprep.mubr.bf16.mxu0 0
    %2009 = vmatmul.mubr.bf16.gmra.mrb[0].mxu0 %v405
    %v2010 = vpop.f32.mrb[0].mxu0
    %v2011 = vadd.f32 %v1926, %v2010
    %v2012 = vpop.f32.mrb[0].mxu0
    %v2013 = vpop.f32.mrb[0].mxu0
    %v2014 = vadd.f32 %v1926, %v2013
    %v2015 = vpop.f32.mrb[0].mxu0
    %2016 = vmatprep.mubr.bf16.mxu0 0
    %2017 = vmatmul.mubr.bf16.gmra.mrb[0].mxu0 %v406
    %v2018 = vpop.f32.mrb[0].mxu0
    %v2019 = vadd.f32 %v1926, %v2018
    %v2020 = vpop.f32.mrb[0].mxu0
    %v2021 = vpop.f32.mrb[0].mxu0
    %v2022 = vadd.f32 %v1926, %v2021
    %v2023 = vpop.f32.mrb[0].mxu0
    %2024 = vdwg.mxu0
    %vm2025 = vcmp.ge.f32.partialorder %v1963, 0.0
    %vm2026 = vcmp.ge.f32.partialorder %v1966, 0.0
    %vm2027 = vcmp.ge.f32.partialorder %v1971, 0.0
    %vm2028 = vcmp.ge.f32.partialorder %v1974, 0.0
    %vm2029 = vcmp.ge.f32.partialorder %v1979, 0.0
    %vm2030 = vcmp.ge.f32.partialorder %v1982, 0.0
    %vm2031 = vcmp.ge.f32.partialorder %v1987, 0.0
    %vm2032 = vcmp.ge.f32.partialorder %v1990, 0.0
    %vm2033 = vcmp.ge.f32.partialorder %v1995, 0.0
    %vm2034 = vcmp.ge.f32.partialorder %v1998, 0.0
    %vm2035 = vcmp.ge.f32.partialorder %v2003, 0.0
    %vm2036 = vcmp.ge.f32.partialorder %v2006, 0.0
    %vm2037 = vcmp.ge.f32.partialorder %v2011, 0.0
    %vm2038 = vcmp.ge.f32.partialorder %v2014, 0.0
    %vm2039 = vcmp.ge.f32.partialorder %v2019, 0.0
    %vm2040 = vcmp.ge.f32.partialorder %v2022, 0.0
    %v2041 = vmul.f32 %v1963, 0.2
    %v2042 = vmul.f32 %v1966, 0.2
    %v2043 = vmul.f32 %v1971, 0.2
    %v2044 = vmul.f32 %v1974, 0.2
    %v2045 = vmul.f32 %v1979, 0.2
    %v2046 = vmul.f32 %v1982, 0.2
    %v2047 = vmul.f32 %v1987, 0.2
    %v2048 = vmul.f32 %v1990, 0.2
    %v2049 = vmul.f32 %v1995, 0.2
    %v2050 = vmul.f32 %v1998, 0.2
    %v2051 = vmul.f32 %v2003, 0.2
    %v2052 = vmul.f32 %v2006, 0.2
    %v2053 = vmul.f32 %v2011, 0.2
    %v2054 = vmul.f32 %v2014, 0.2
    %v2055 = vmul.f32 %v2019, 0.2
    %v2056 = vmul.f32 %v2022, 0.2
    %v2057 = vsel %vm2025, %v1963, %v2041
    %v2058 = vsel %vm2026, %v1966, %v2042
    %v2059 = vsel %vm2027, %v1971, %v2043
    %v2060 = vsel %vm2028, %v1974, %v2044
    %v2061 = vsel %vm2029, %v1979, %v2045
    %v2062 = vsel %vm2030, %v1982, %v2046
    %v2063 = vsel %vm2031, %v1987, %v2047
    %v2064 = vsel %vm2032, %v1990, %v2048
    %v2065 = vsel %vm2033, %v1995, %v2049
    %v2066 = vsel %vm2034, %v1998, %v2050
    %v2067 = vsel %vm2035, %v2003, %v2051
    %v2068 = vsel %vm2036, %v2006, %v2052
    %v2069 = vsel %vm2037, %v2011, %v2053
    %v2070 = vsel %vm2038, %v2014, %v2054
    %v2071 = vsel %vm2039, %v2019, %v2055
    %v2072 = vsel %vm2040, %v2022, %v2056
    %v2073 = vmul.f32 %v2057, %v167
    %v2074 = vmul.f32 %v2058, %v168
    %v2075 = vmul.f32 %v2059, %v169
    %v2076 = vmul.f32 %v2060, %v170
    %v2077 = vmul.f32 %v2061, %v171
    %v2078 = vmul.f32 %v2062, %v172
    %v2079 = vmul.f32 %v2063, %v173
    %v2080 = vmul.f32 %v2064, %v174
    %v2081 = vmul.f32 %v2065, %v175
    %v2082 = vmul.f32 %v2066, %v176
    %v2083 = vmul.f32 %v2067, %v177
    %v2084 = vmul.f32 %v2068, %v178
    %v2085 = vmul.f32 %v2069, %v179
    %v2086 = vmul.f32 %v2070, %v180
    %v2087 = vmul.f32 %v2071, %v181
    %v2088 = vmul.f32 %v2072, %v182
    %v2089 = vadd.f32 %v2073, %v2074
    %v2090 = vadd.f32 %v2089, %v2075
    %v2091 = vadd.f32 %v2090, %v2076
    %v2092 = vadd.f32 %v2091, %v2077
    %v2093 = vadd.f32 %v2092, %v2078
    %v2094 = vadd.f32 %v2093, %v2079
    %v2095 = vadd.f32 %v2094, %v2080
    %v2096 = vadd.f32 %v2095, %v2081
    %v2097 = vadd.f32 %v2096, %v2082
    %v2098 = vadd.f32 %v2097, %v2083
    %v2099 = vadd.f32 %v2098, %v2084
    %v2100 = vadd.f32 %v2099, %v2085
    %v2101 = vadd.f32 %v2100, %v2086
    %v2102 = vadd.f32 %v2101, %v2087
    %v2103 = vadd.f32 %v2102, %v2088
    %v2104 = vrot.slane %v2103, 4
    %v2105 = vadd.f32 %v2103, %v2104
    %v2106 = vrot.slane %v2105, 2
    %v2107 = vadd.f32 %v2105, %v2106
    %v2108 = vrot.slane %v2107, 1
    %v2109 = vadd.f32 %v2107, %v2108
    %v2110 = vmul.f32 %v2109, 0.015625
    %v2111 = vsub.f32 %v2073, %v2110
    %v2112 = vsub.f32 %v2074, %v2110
    %v2113 = vsub.f32 %v2075, %v2110
    %v2114 = vsub.f32 %v2076, %v2110
    %v2115 = vsub.f32 %v2077, %v2110
    %v2116 = vsub.f32 %v2078, %v2110
    %v2117 = vsub.f32 %v2079, %v2110
    %v2118 = vsub.f32 %v2080, %v2110
    %v2119 = vsub.f32 %v2081, %v2110
    %v2120 = vsub.f32 %v2082, %v2110
    %v2121 = vsub.f32 %v2083, %v2110
    %v2122 = vsub.f32 %v2084, %v2110
    %v2123 = vsub.f32 %v2085, %v2110
    %v2124 = vsub.f32 %v2086, %v2110
    %v2125 = vsub.f32 %v2087, %v2110
    %v2126 = vsub.f32 %v2088, %v2110
    %v2127 = vmul.f32 %v2111, %v167
    %v2128 = vmul.f32 %v2112, %v168
    %v2129 = vmul.f32 %v2113, %v169
    %v2130 = vmul.f32 %v2114, %v170
    %v2131 = vmul.f32 %v2115, %v171
    %v2132 = vmul.f32 %v2116, %v172
    %v2133 = vmul.f32 %v2117, %v173
    %v2134 = vmul.f32 %v2118, %v174
    %v2135 = vmul.f32 %v2119, %v175
    %v2136 = vmul.f32 %v2120, %v176
    %v2137 = vmul.f32 %v2121, %v177
    %v2138 = vmul.f32 %v2122, %v178
    %v2139 = vmul.f32 %v2123, %v179
    %v2140 = vmul.f32 %v2124, %v180
    %v2141 = vmul.f32 %v2125, %v181
    %v2142 = vmul.f32 %v2126, %v182
    %v2143 = vmul.f32 %v2127, %v2127
    %v2144 = vmul.f32 %v2128, %v2128
    %v2145 = vmul.f32 %v2129, %v2129
    %v2146 = vmul.f32 %v2130, %v2130
    %v2147 = vmul.f32 %v2131, %v2131
    %v2148 = vmul.f32 %v2132, %v2132
    %v2149 = vmul.f32 %v2133, %v2133
    %v2150 = vmul.f32 %v2134, %v2134
    %v2151 = vmul.f32 %v2135, %v2135
    %v2152 = vmul.f32 %v2136, %v2136
    %v2153 = vmul.f32 %v2137, %v2137
    %v2154 = vmul.f32 %v2138, %v2138
    %v2155 = vmul.f32 %v2139, %v2139
    %v2156 = vmul.f32 %v2140, %v2140
    %v2157 = vmul.f32 %v2141, %v2141
    %v2158 = vmul.f32 %v2142, %v2142
    %v2159 = vadd.f32 %v2143, %v2144
    %v2160 = vadd.f32 %v2159, %v2145
    %v2161 = vadd.f32 %v2160, %v2146
    %v2162 = vadd.f32 %v2161, %v2147
    %v2163 = vadd.f32 %v2162, %v2148
    %v2164 = vadd.f32 %v2163, %v2149
    %v2165 = vadd.f32 %v2164, %v2150
    %v2166 = vadd.f32 %v2165, %v2151
    %v2167 = vadd.f32 %v2166, %v2152
    %v2168 = vadd.f32 %v2167, %v2153
    %v2169 = vadd.f32 %v2168, %v2154
    %v2170 = vadd.f32 %v2169, %v2155
    %v2171 = vadd.f32 %v2170, %v2156
    %v2172 = vadd.f32 %v2171, %v2157
    %v2173 = vadd.f32 %v2172, %v2158
    %v2174 = vrot.slane %v2173, 4
    %v2175 = vadd.f32 %v2173, %v2174
    %v2176 = vrot.slane %v2175, 2
    %v2177 = vadd.f32 %v2175, %v2176
    %v2178 = vrot.slane %v2177, 1
    %v2179 = vadd.f32 %v2177, %v2178
    %v2180 = vmul.f32 %v2179, 0.015625
    %v2181 = vadd.f32 %v2180, 1e-05
    %v2182 = vrsqrt.pop %v2181
    %v2183 = vmul.f32 %v2111, %v2182
    %v2184 = vmul.f32 %v2112, %v2182
    %v2185 = vmul.f32 %v2113, %v2182
    %v2186 = vmul.f32 %v2114, %v2182
    %v2187 = vmul.f32 %v2115, %v2182
    %v2188 = vmul.f32 %v2116, %v2182
    %v2189 = vmul.f32 %v2117, %v2182
    %v2190 = vmul.f32 %v2118, %v2182
    %v2191 = vmul.f32 %v2119, %v2182
    %v2192 = vmul.f32 %v2120, %v2182
    %v2193 = vmul.f32 %v2121, %v2182
    %v2194 = vmul.f32 %v2122, %v2182
    %v2195 = vmul.f32 %v2123, %v2182
    %v2196 = vmul.f32 %v2124, %v2182
    %v2197 = vmul.f32 %v2125, %v2182
    %v2198 = vmul.f32 %v2126, %v2182
    %s2199 = scalar_lea.vmem %s4, 3
    %v2200 = vld [vmem:[%s2199] sm:$0x1]
    %v2202 = vlaneseq
    %v2203 = vshrl.u32 %v2202, 7
    %v2204 = vsub.s32 0, %v2203
    %v2205 = vrot.slane %v2200, %v2204
    %v2207 = vmul.f32 %v2183, %v2205
    %v2208 = vmul.f32 %v2184, %v2205
    %v2209 = vmul.f32 %v2185, %v2205
    %v2210 = vmul.f32 %v2186, %v2205
    %v2211 = vmul.f32 %v2187, %v2205
    %v2212 = vmul.f32 %v2188, %v2205
    %v2213 = vmul.f32 %v2189, %v2205
    %v2214 = vmul.f32 %v2190, %v2205
    %v2215 = vmul.f32 %v2191, %v2205
    %v2216 = vmul.f32 %v2192, %v2205
    %v2217 = vmul.f32 %v2193, %v2205
    %v2218 = vmul.f32 %v2194, %v2205
    %v2219 = vmul.f32 %v2195, %v2205
    %v2220 = vmul.f32 %v2196, %v2205
    %v2221 = vmul.f32 %v2197, %v2205
    %v2222 = vmul.f32 %v2198, %v2205
    %s2223 = scalar_lea.vmem %s5, 3
    %v2224 = vld [vmem:[%s2223] sm:$0x1]
    %v2226 = vlaneseq
    %v2227 = vshrl.u32 %v2226, 7
    %v2228 = vsub.s32 0, %v2227
    %v2229 = vrot.slane %v2224, %v2228
    %v2231 = vadd.f32 %v2207, %v2229
    %v2232 = vadd.f32 %v2208, %v2229
    %v2233 = vadd.f32 %v2209, %v2229
    %v2234 = vadd.f32 %v2210, %v2229
    %v2235 = vadd.f32 %v2211, %v2229
    %v2236 = vadd.f32 %v2212, %v2229
    %v2237 = vadd.f32 %v2213, %v2229
    %v2238 = vadd.f32 %v2214, %v2229
    %v2239 = vadd.f32 %v2215, %v2229
    %v2240 = vadd.f32 %v2216, %v2229
    %v2241 = vadd.f32 %v2217, %v2229
    %v2242 = vadd.f32 %v2218, %v2229
    %v2243 = vadd.f32 %v2219, %v2229
    %v2244 = vadd.f32 %v2220, %v2229
    %v2245 = vadd.f32 %v2221, %v2229
    %v2246 = vadd.f32 %v2222, %v2229
    %s2247 = scalar_lea.vmem [#allocation7], 256
    %v2248 = vld [vmem:[%s2247] sm:$0xf]
    %v2249 = vld [vmem:[%s2247 + $0x4] sm:$0xf]
    %v2250 = vld [vmem:[%s2247 + $0x8] sm:$0xf]
    %v2251 = vld [vmem:[%s2247 + $0xc] sm:$0xf]
    %v2252 = vld [vmem:[%s2247 + $0x10] sm:$0xf]
    %v2253 = vld [vmem:[%s2247 + $0x14] sm:$0xf]
    %v2254 = vld [vmem:[%s2247 + $0x18] sm:$0xf]
    %v2255 = vld [vmem:[%s2247 + $0x1c] sm:$0xf]
    %v2256 = vld [vmem:[%s2247 + $0x20] sm:$0xf]
    %v2257 = vld [vmem:[%s2247 + $0x24] sm:$0xf]
    %v2258 = vld [vmem:[%s2247 + $0x28] sm:$0xf]
    %v2259 = vld [vmem:[%s2247 + $0x2c] sm:$0xf]
    %v2260 = vld [vmem:[%s2247 + $0x30] sm:$0xf]
    %v2261 = vld [vmem:[%s2247 + $0x34] sm:$0xf]
    %v2262 = vld [vmem:[%s2247 + $0x38] sm:$0xf]
    %v2263 = vld [vmem:[%s2247 + $0x3c] sm:$0xf]
    %v2264 = vpack.c.bf16 %v2232, %v2231
    %v2265 = vpack.c.bf16 %v2234, %v2233
    %v2266 = vpack.c.bf16 %v2236, %v2235
    %v2267 = vpack.c.bf16 %v2238, %v2237
    %v2268 = vpack.c.bf16 %v2240, %v2239
    %v2269 = vpack.c.bf16 %v2242, %v2241
    %v2270 = vpack.c.bf16 %v2244, %v2243
    %v2271 = vpack.c.bf16 %v2246, %v2245
    %v2288 = vunpack.c.l.b16 %v2248
    %v2289 = vunpack.c.l.b16 %v2249
    %v2290 = vunpack.c.l.b16 %v2250
    %v2291 = vunpack.c.l.b16 %v2251
    %v2292 = vunpack.c.l.b16 %v2252
    %v2293 = vunpack.c.l.b16 %v2253
    %v2294 = vunpack.c.l.b16 %v2254
    %v2295 = vunpack.c.l.b16 %v2255
    %v2296 = vunpack.c.l.b16 %v2256
    %v2297 = vunpack.c.l.b16 %v2257
    %v2298 = vunpack.c.l.b16 %v2258
    %v2299 = vunpack.c.l.b16 %v2259
    %v2300 = vunpack.c.l.b16 %v2260
    %v2301 = vunpack.c.l.b16 %v2261
    %v2302 = vunpack.c.l.b16 %v2262
    %v2303 = vunpack.c.l.b16 %v2263
    %v2304 = vpack.c.b16 %v2289, %v2288
    %v2305 = vpack.c.b16 %v2291, %v2290
    %v2306 = vpack.c.b16 %v2293, %v2292
    %v2307 = vpack.c.b16 %v2295, %v2294
    %v2308 = vpack.c.b16 %v2297, %v2296
    %v2309 = vpack.c.b16 %v2299, %v2298
    %v2310 = vpack.c.b16 %v2301, %v2300
    %v2311 = vpack.c.b16 %v2303, %v2302
    %2320 = vmatprep.subr.bf16.mxu0 0
    %2321 = vmatpush1.bf16.msra.mxu0 %v2304
    %2322 = vmatprep.subr.bf16.mxu0 0
    %2323 = vmatpush1.bf16.msra.mxu0 %v2305
    %2324 = vmatprep.subr.bf16.mxu0 0
    %2325 = vmatpush1.bf16.msra.mxu0 %v2306
    %2326 = vmatprep.subr.bf16.mxu0 0
    %2327 = vmatpush1.bf16.msra.mxu0 %v2307
    %2328 = vmatprep.subr.bf16.mxu0 0
    %2329 = vmatpush1.bf16.msra.mxu0 %v2308
    %2330 = vmatprep.subr.bf16.mxu0 0
    %2331 = vmatpush1.bf16.msra.mxu0 %v2309
    %2332 = vmatprep.subr.bf16.mxu0 0
    %2333 = vmatpush1.bf16.msra.mxu0 %v2310
    %2334 = vmatprep.subr.bf16.mxu0 0
    %2335 = vmatpush1.bf16.msra.mxu0 %v2311
    %2336 = vmatprep.subr.bf16.mxu0 0
    %2337 = vmatpush1.bf16.msra.mxu0 0
    %2338 = vmatprep.subr.bf16.mxu0 0
    %2339 = vmatpush1.bf16.msra.mxu0 0
    %2340 = vmatprep.subr.bf16.mxu0 0
    %2341 = vmatpush1.bf16.msra.mxu0 0
    %2342 = vmatprep.subr.bf16.mxu0 0
    %2343 = vmatpush1.bf16.msra.mxu0 0
    %2344 = vmatprep.subr.bf16.mxu0 0
    %2345 = vmatpush1.bf16.msra.mxu0 0
    %2346 = vmatprep.subr.bf16.mxu0 0
    %2347 = vmatpush1.bf16.msra.mxu0 0
    %2348 = vmatprep.subr.bf16.mxu0 0
    %2349 = vmatpush1.bf16.msra.mxu0 0
    %2350 = vmatprep.subr.bf16.mxu0 0
    %2351 = vmatpush1.bf16.msra.mxu0 0
    %2352 = vmatprep.mubr.bf16.mxu0 0
    %2353 = vmatmul.mubr.bf16.gmra.mrb[0].mxu0 %v2264
    %v2354 = vpop.f32.mrb[0].mxu0
    %v2355 = vadd.f32 0.0, %v2354
    %v2356 = vpop.f32.mrb[0].mxu0
    %v2357 = vpop.f32.mrb[0].mxu0
    %v2358 = vadd.f32 0.0, %v2357
    %v2359 = vpop.f32.mrb[0].mxu0
    %2360 = vmatprep.mubr.bf16.mxu0 0
    %2361 = vmatmul.mubr.bf16.gmra.mrb[0].mxu0 %v2265
    %v2362 = vpop.f32.mrb[0].mxu0
    %v2363 = vadd.f32 0.0, %v2362
    %v2364 = vpop.f32.mrb[0].mxu0
    %v2365 = vpop.f32.mrb[0].mxu0
    %v2366 = vadd.f32 0.0, %v2365
    %v2367 = vpop.f32.mrb[0].mxu0
    %2368 = vmatprep.mubr.bf16.mxu0 0
    %2369 = vmatmul.mubr.bf16.gmra.mrb[0].mxu0 %v2266
    %v2370 = vpop.f32.mrb[0].mxu0
    %v2371 = vadd.f32 0.0, %v2370
    %v2372 = vpop.f32.mrb[0].mxu0
    %v2373 = vpop.f32.mrb[0].mxu0
    %v2374 = vadd.f32 0.0, %v2373
    %v2375 = vpop.f32.mrb[0].mxu0
    %2376 = vmatprep.mubr.bf16.mxu0 0
    %2377 = vmatmul.mubr.bf16.gmra.mrb[0].mxu0 %v2267
    %v2378 = vpop.f32.mrb[0].mxu0
    %v2379 = vadd.f32 0.0, %v2378
    %v2380 = vpop.f32.mrb[0].mxu0
    %v2381 = vpop.f32.mrb[0].mxu0
    %v2382 = vadd.f32 0.0, %v2381
    %v2383 = vpop.f32.mrb[0].mxu0
    %2384 = vmatprep.mubr.bf16.mxu0 0
    %2385 = vmatmul.mubr.bf16.gmra.mrb[0].mxu0 %v2268
    %v2386 = vpop.f32.mrb[0].mxu0
    %v2387 = vadd.f32 0.0, %v2386
    %v2388 = vpop.f32.mrb[0].mxu0
    %v2389 = vpop.f32.mrb[0].mxu0
    %v2390 = vadd.f32 0.0, %v2389
    %v2391 = vpop.f32.mrb[0].mxu0
    %2392 = vmatprep.mubr.bf16.mxu0 0
    %2393 = vmatmul.mubr.bf16.gmra.mrb[0].mxu0 %v2269
    %v2394 = vpop.f32.mrb[0].mxu0
    %v2395 = vadd.f32 0.0, %v2394
    %v2396 = vpop.f32.mrb[0].mxu0
    %v2397 = vpop.f32.mrb[0].mxu0
    %v2398 = vadd.f32 0.0, %v2397
    %v2399 = vpop.f32.mrb[0].mxu0
    %2400 = vmatprep.mubr.bf16.mxu0 0
    %2401 = vmatmul.mubr.bf16.gmra.mrb[0].mxu0 %v2270
    %v2402 = vpop.f32.mrb[0].mxu0
    %v2403 = vadd.f32 0.0, %v2402
    %v2404 = vpop.f32.mrb[0].mxu0
    %v2405 = vpop.f32.mrb[0].mxu0
    %v2406 = vadd.f32 0.0, %v2405
    %v2407 = vpop.f32.mrb[0].mxu0
    %2408 = vmatprep.mubr.bf16.mxu0 0
    %2409 = vmatmul.mubr.bf16.gmra.mrb[0].mxu0 %v2271
    %v2410 = vpop.f32.mrb[0].mxu0
    %v2411 = vadd.f32 0.0, %v2410
    %v2412 = vpop.f32.mrb[0].mxu0
    %v2413 = vpop.f32.mrb[0].mxu0
    %v2414 = vadd.f32 0.0, %v2413
    %v2415 = vpop.f32.mrb[0].mxu0
    %2416 = vdwg.mxu0
    %v2417 = vpack.c.bf16 %v2358, %v2355
    %v2418 = vpack.c.bf16 %v2366, %v2363
    %v2419 = vpack.c.bf16 %v2374, %v2371
    %v2420 = vpack.c.bf16 %v2382, %v2379
    %v2421 = vpack.c.bf16 %v2390, %v2387
    %v2422 = vpack.c.bf16 %v2398, %v2395
    %v2423 = vpack.c.bf16 %v2406, %v2403
    %v2424 = vpack.c.bf16 %v2414, %v2411
    %s2425 = scalar_lea.vmem %s3, 4
    %v2426 = vld [vmem:[%s2425] sm:$0x1]
    %v2428 = vlaneseq
    %v2429 = vshrl.u32 %v2428, 7
    %v2430 = vsub.s32 0, %v2429
    %v2431 = vrot.slane %v2426, %v2430
    %2433 = vmatprep.subr.bf16.mxu0 0
    %2434 = vmatpush1.bf16.msra.mxu0 %v2417
    %2435 = vmatprep.subr.bf16.mxu0 0
    %2436 = vmatpush1.bf16.msra.mxu0 %v2418
    %2437 = vmatprep.subr.bf16.mxu0 0
    %2438 = vmatpush1.bf16.msra.mxu0 %v2419
    %2439 = vmatprep.subr.bf16.mxu0 0
    %2440 = vmatpush1.bf16.msra.mxu0 %v2420
    %2441 = vmatprep.subr.bf16.mxu0 0
    %2442 = vmatpush1.bf16.msra.mxu0 %v2421
    %2443 = vmatprep.subr.bf16.mxu0 0
    %2444 = vmatpush1.bf16.msra.mxu0 %v2422
    %2445 = vmatprep.subr.bf16.mxu0 0
    %2446 = vmatpush1.bf16.msra.mxu0 %v2423
    %2447 = vmatprep.subr.bf16.mxu0 0
    %2448 = vmatpush1.bf16.msra.mxu0 %v2424
    %2449 = vmatprep.subr.bf16.mxu0 0
    %2450 = vmatpush1.bf16.msra.mxu0 0
    %2451 = vmatprep.subr.bf16.mxu0 0
    %2452 = vmatpush1.bf16.msra.mxu0 0
    %2453 = vmatprep.subr.bf16.mxu0 0
    %2454 = vmatpush1.bf16.msra.mxu0 0
    %2455 = vmatprep.subr.bf16.mxu0 0
    %2456 = vmatpush1.bf16.msra.mxu0 0
    %2457 = vmatprep.subr.bf16.mxu0 0
    %2458 = vmatpush1.bf16.msra.mxu0 0
    %2459 = vmatprep.subr.bf16.mxu0 0
    %2460 = vmatpush1.bf16.msra.mxu0 0
    %2461 = vmatprep.subr.bf16.mxu0 0
    %2462 = vmatpush1.bf16.msra.mxu0 0
    %2463 = vmatprep.subr.bf16.mxu0 0
    %2464 = vmatpush1.bf16.msra.mxu0 0
    %2465 = vmatprep.mubr.bf16.mxu0 0
    %2466 = vmatmul.mubr.bf16.gmra.mrb[0].mxu0 %v399
    %v2467 = vpop.f32.mrb[0].mxu0
    %v2468 = vadd.f32 %v2431, %v2467
    %v2469 = vpop.f32.mrb[0].mxu0
    %v2470 = vpop.f32.mrb[0].mxu0
    %v2471 = vadd.f32 %v2431, %v2470
    %v2472 = vpop.f32.mrb[0].mxu0
    %2473 = vmatprep.mubr.bf16.mxu0 0
    %2474 = vmatmul.mubr.bf16.gmra.mrb[0].mxu0 %v400
    %v2475 = vpop.f32.mrb[0].mxu0
    %v2476 = vadd.f32 %v2431, %v2475
    %v2477 = vpop.f32.mrb[0].mxu0
    %v2478 = vpop.f32.mrb[0].mxu0
    %v2479 = vadd.f32 %v2431, %v2478
    %v2480 = vpop.f32.mrb[0].mxu0
    %2481 = vmatprep.mubr.bf16.mxu0 0
    %2482 = vmatmul.mubr.bf16.gmra.mrb[0].mxu0 %v401
    %v2483 = vpop.f32.mrb[0].mxu0
    %v2484 = vadd.f32 %v2431, %v2483
    %v2485 = vpop.f32.mrb[0].mxu0
    %v2486 = vpop.f32.mrb[0].mxu0
    %v2487 = vadd.f32 %v2431, %v2486
    %v2488 = vpop.f32.mrb[0].mxu0
    %2489 = vmatprep.mubr.bf16.mxu0 0
    %2490 = vmatmul.mubr.bf16.gmra.mrb[0].mxu0 %v402
    %v2491 = vpop.f32.mrb[0].mxu0
    %v2492 = vadd.f32 %v2431, %v2491
    %v2493 = vpop.f32.mrb[0].mxu0
    %v2494 = vpop.f32.mrb[0].mxu0
    %v2495 = vadd.f32 %v2431, %v2494
    %v2496 = vpop.f32.mrb[0].mxu0
    %2497 = vmatprep.mubr.bf16.mxu0 0
    %2498 = vmatmul.mubr.bf16.gmra.mrb[0].mxu0 %v403
    %v2499 = vpop.f32.mrb[0].mxu0
    %v2500 = vadd.f32 %v2431, %v2499
    %v2501 = vpop.f32.mrb[0].mxu0
    %v2502 = vpop.f32.mrb[0].mxu0
    %v2503 = vadd.f32 %v2431, %v2502
    %v2504 = vpop.f32.mrb[0].mxu0
    %2505 = vmatprep.mubr.bf16.mxu0 0
    %2506 = vmatmul.mubr.bf16.gmra.mrb[0].mxu0 %v404
    %v2507 = vpop.f32.mrb[0].mxu0
    %v2508 = vadd.f32 %v2431, %v2507
    %v2509 = vpop.f32.mrb[0].mxu0
    %v2510 = vpop.f32.mrb[0].mxu0
    %v2511 = vadd.f32 %v2431, %v2510
    %v2512 = vpop.f32.mrb[0].mxu0
    %2513 = vmatprep.mubr.bf16.mxu0 0
    %2514 = vmatmul.mubr.bf16.gmra.mrb[0].mxu0 %v405
    %v2515 = vpop.f32.mrb[0].mxu0
    %v2516 = vadd.f32 %v2431, %v2515
    %v2517 = vpop.f32.mrb[0].mxu0
    %v2518 = vpop.f32.mrb[0].mxu0
    %v2519 = vadd.f32 %v2431, %v2518
    %v2520 = vpop.f32.mrb[0].mxu0
    %2521 = vmatprep.mubr.bf16.mxu0 0
    %2522 = vmatmul.mubr.bf16.gmra.mrb[0].mxu0 %v406
    %v2523 = vpop.f32.mrb[0].mxu0
    %v2524 = vadd.f32 %v2431, %v2523
    %v2525 = vpop.f32.mrb[0].mxu0
    %v2526 = vpop.f32.mrb[0].mxu0
    %v2527 = vadd.f32 %v2431, %v2526
    %v2528 = vpop.f32.mrb[0].mxu0
    %2529 = vdwg.mxu0
    %v2530 = vmul.f32 %v2468, %v167
    %v2531 = vmul.f32 %v2471, %v168
    %v2532 = vmul.f32 %v2476, %v169
    %v2533 = vmul.f32 %v2479, %v170
    %v2534 = vmul.f32 %v2484, %v171
    %v2535 = vmul.f32 %v2487, %v172
    %v2536 = vmul.f32 %v2492, %v173
    %v2537 = vmul.f32 %v2495, %v174
    %v2538 = vmul.f32 %v2500, %v175
    %v2539 = vmul.f32 %v2503, %v176
    %v2540 = vmul.f32 %v2508, %v177
    %v2541 = vmul.f32 %v2511, %v178
    %v2542 = vmul.f32 %v2516, %v179
    %v2543 = vmul.f32 %v2519, %v180
    %v2544 = vmul.f32 %v2524, %v181
    %v2545 = vmul.f32 %v2527, %v182
    %v2546 = vadd.f32 %v2530, %v2531
    %v2547 = vadd.f32 %v2546, %v2532
    %v2548 = vadd.f32 %v2547, %v2533
    %v2549 = vadd.f32 %v2548, %v2534
    %v2550 = vadd.f32 %v2549, %v2535
    %v2551 = vadd.f32 %v2550, %v2536
    %v2552 = vadd.f32 %v2551, %v2537
    %v2553 = vadd.f32 %v2552, %v2538
    %v2554 = vadd.f32 %v2553, %v2539
    %v2555 = vadd.f32 %v2554, %v2540
    %v2556 = vadd.f32 %v2555, %v2541
    %v2557 = vadd.f32 %v2556, %v2542
    %v2558 = vadd.f32 %v2557, %v2543
    %v2559 = vadd.f32 %v2558, %v2544
    %v2560 = vadd.f32 %v2559, %v2545
    %v2561 = vrot.slane %v2560, 4
    %v2562 = vadd.f32 %v2560, %v2561
    %v2563 = vrot.slane %v2562, 2
    %v2564 = vadd.f32 %v2562, %v2563
    %v2565 = vrot.slane %v2564, 1
    %v2566 = vadd.f32 %v2564, %v2565
    %v2567 = vmul.f32 %v2566, 0.015625
    %v2568 = vsub.f32 %v2530, %v2567
    %v2569 = vsub.f32 %v2531, %v2567
    %v2570 = vsub.f32 %v2532, %v2567
    %v2571 = vsub.f32 %v2533, %v2567
    %v2572 = vsub.f32 %v2534, %v2567
    %v2573 = vsub.f32 %v2535, %v2567
    %v2574 = vsub.f32 %v2536, %v2567
    %v2575 = vsub.f32 %v2537, %v2567
    %v2576 = vsub.f32 %v2538, %v2567
    %v2577 = vsub.f32 %v2539, %v2567
    %v2578 = vsub.f32 %v2540, %v2567
    %v2579 = vsub.f32 %v2541, %v2567
    %v2580 = vsub.f32 %v2542, %v2567
    %v2581 = vsub.f32 %v2543, %v2567
    %v2582 = vsub.f32 %v2544, %v2567
    %v2583 = vsub.f32 %v2545, %v2567
    %v2584 = vmul.f32 %v2568, %v167
    %v2585 = vmul.f32 %v2569, %v168
    %v2586 = vmul.f32 %v2570, %v169
    %v2587 = vmul.f32 %v2571, %v170
    %v2588 = vmul.f32 %v2572, %v171
    %v2589 = vmul.f32 %v2573, %v172
    %v2590 = vmul.f32 %v2574, %v173
    %v2591 = vmul.f32 %v2575, %v174
    %v2592 = vmul.f32 %v2576, %v175
    %v2593 = vmul.f32 %v2577, %v176
    %v2594 = vmul.f32 %v2578, %v177
    %v2595 = vmul.f32 %v2579, %v178
    %v2596 = vmul.f32 %v2580, %v179
    %v2597 = vmul.f32 %v2581, %v180
    %v2598 = vmul.f32 %v2582, %v181
    %v2599 = vmul.f32 %v2583, %v182
    %v2600 = vmul.f32 %v2584, %v2584
    %v2601 = vmul.f32 %v2585, %v2585
    %v2602 = vmul.f32 %v2586, %v2586
    %v2603 = vmul.f32 %v2587, %v2587
    %v2604 = vmul.f32 %v2588, %v2588
    %v2605 = vmul.f32 %v2589, %v2589
    %v2606 = vmul.f32 %v2590, %v2590
    %v2607 = vmul.f32 %v2591, %v2591
    %v2608 = vmul.f32 %v2592, %v2592
    %v2609 = vmul.f32 %v2593, %v2593
    %v2610 = vmul.f32 %v2594, %v2594
    %v2611 = vmul.f32 %v2595, %v2595
    %v2612 = vmul.f32 %v2596, %v2596
    %v2613 = vmul.f32 %v2597, %v2597
    %v2614 = vmul.f32 %v2598, %v2598
    %v2615 = vmul.f32 %v2599, %v2599
    %v2616 = vadd.f32 %v2600, %v2601
    %v2617 = vadd.f32 %v2616, %v2602
    %v2618 = vadd.f32 %v2617, %v2603
    %v2619 = vadd.f32 %v2618, %v2604
    %v2620 = vadd.f32 %v2619, %v2605
    %v2621 = vadd.f32 %v2620, %v2606
    %v2622 = vadd.f32 %v2621, %v2607
    %v2623 = vadd.f32 %v2622, %v2608
    %v2624 = vadd.f32 %v2623, %v2609
    %v2625 = vadd.f32 %v2624, %v2610
    %v2626 = vadd.f32 %v2625, %v2611
    %v2627 = vadd.f32 %v2626, %v2612
    %v2628 = vadd.f32 %v2627, %v2613
    %v2629 = vadd.f32 %v2628, %v2614
    %v2630 = vadd.f32 %v2629, %v2615
    %v2631 = vrot.slane %v2630, 4
    %v2632 = vadd.f32 %v2630, %v2631
    %v2633 = vrot.slane %v2632, 2
    %v2634 = vadd.f32 %v2632, %v2633
    %v2635 = vrot.slane %v2634, 1
    %v2636 = vadd.f32 %v2634, %v2635
    %v2637 = vmul.f32 %v2636, 0.015625
    %v2638 = vadd.f32 %v2637, 1e-05
    %v2639 = vrsqrt.pop %v2638
    %v2640 = vmul.f32 %v2568, %v2639
    %v2641 = vmul.f32 %v2569, %v2639
    %v2642 = vmul.f32 %v2570, %v2639
    %v2643 = vmul.f32 %v2571, %v2639
    %v2644 = vmul.f32 %v2572, %v2639
    %v2645 = vmul.f32 %v2573, %v2639
    %v2646 = vmul.f32 %v2574, %v2639
    %v2647 = vmul.f32 %v2575, %v2639
    %v2648 = vmul.f32 %v2576, %v2639
    %v2649 = vmul.f32 %v2577, %v2639
    %v2650 = vmul.f32 %v2578, %v2639
    %v2651 = vmul.f32 %v2579, %v2639
    %v2652 = vmul.f32 %v2580, %v2639
    %v2653 = vmul.f32 %v2581, %v2639
    %v2654 = vmul.f32 %v2582, %v2639
    %v2655 = vmul.f32 %v2583, %v2639
    %s2656 = scalar_lea.vmem %s4, 4
    %v2657 = vld [vmem:[%s2656] sm:$0x1]
    %v2659 = vlaneseq
    %v2660 = vshrl.u32 %v2659, 7
    %v2661 = vsub.s32 0, %v2660
    %v2662 = vrot.slane %v2657, %v2661
    %v2664 = vmul.f32 %v2640, %v2662
    %v2665 = vmul.f32 %v2641, %v2662
    %v2666 = vmul.f32 %v2642, %v2662
    %v2667 = vmul.f32 %v2643, %v2662
    %v2668 = vmul.f32 %v2644, %v2662
    %v2669 = vmul.f32 %v2645, %v2662
    %v2670 = vmul.f32 %v2646, %v2662
    %v2671 = vmul.f32 %v2647, %v2662
    %v2672 = vmul.f32 %v2648, %v2662
    %v2673 = vmul.f32 %v2649, %v2662
    %v2674 = vmul.f32 %v2650, %v2662
    %v2675 = vmul.f32 %v2651, %v2662
    %v2676 = vmul.f32 %v2652, %v2662
    %v2677 = vmul.f32 %v2653, %v2662
    %v2678 = vmul.f32 %v2654, %v2662
    %v2679 = vmul.f32 %v2655, %v2662
    %s2680 = scalar_lea.vmem %s5, 4
    %v2681 = vld [vmem:[%s2680] sm:$0x1]
    %v2683 = vlaneseq
    %v2684 = vshrl.u32 %v2683, 7
    %v2685 = vsub.s32 0, %v2684
    %v2686 = vrot.slane %v2681, %v2685
    %v2688 = vadd.f32 %v2664, %v2686
    %v2689 = vadd.f32 %v2665, %v2686
    %v2690 = vadd.f32 %v2666, %v2686
    %v2691 = vadd.f32 %v2667, %v2686
    %v2692 = vadd.f32 %v2668, %v2686
    %v2693 = vadd.f32 %v2669, %v2686
    %v2694 = vadd.f32 %v2670, %v2686
    %v2695 = vadd.f32 %v2671, %v2686
    %v2696 = vadd.f32 %v2672, %v2686
    %v2697 = vadd.f32 %v2673, %v2686
    %v2698 = vadd.f32 %v2674, %v2686
    %v2699 = vadd.f32 %v2675, %v2686
    %v2700 = vadd.f32 %v2676, %v2686
    %v2701 = vadd.f32 %v2677, %v2686
    %v2702 = vadd.f32 %v2678, %v2686
    %v2703 = vadd.f32 %v2679, %v2686
    %v2704 = vpack.c.bf16 %v2689, %v2688
    %v2705 = vpack.c.bf16 %v2691, %v2690
    %v2706 = vpack.c.bf16 %v2693, %v2692
    %v2707 = vpack.c.bf16 %v2695, %v2694
    %v2708 = vpack.c.bf16 %v2697, %v2696
    %v2709 = vpack.c.bf16 %v2699, %v2698
    %v2710 = vpack.c.bf16 %v2701, %v2700
    %v2711 = vpack.c.bf16 %v2703, %v2702
    %v2712 = vld [vmem:[#allocation8] sm:$0xf]
    %v2713 = vld [vmem:[#allocation8 + $0x4] sm:$0xf]
    %v2714 = vld [vmem:[#allocation8 + $0x8] sm:$0xf]
    %v2715 = vld [vmem:[#allocation8 + $0xc] sm:$0xf]
    %v2716 = vld [vmem:[#allocation8 + $0x10] sm:$0xf]
    %v2717 = vld [vmem:[#allocation8 + $0x14] sm:$0xf]
    %v2718 = vld [vmem:[#allocation8 + $0x18] sm:$0xf]
    %v2719 = vld [vmem:[#allocation8 + $0x1c] sm:$0xf]
    %v2720 = vld [vmem:[#allocation8 + $0x20] sm:$0xf]
    %v2721 = vld [vmem:[#allocation8 + $0x24] sm:$0xf]
    %v2722 = vld [vmem:[#allocation8 + $0x28] sm:$0xf]
    %v2723 = vld [vmem:[#allocation8 + $0x2c] sm:$0xf]
    %v2724 = vld [vmem:[#allocation8 + $0x30] sm:$0xf]
    %v2725 = vld [vmem:[#allocation8 + $0x34] sm:$0xf]
    %v2726 = vld [vmem:[#allocation8 + $0x38] sm:$0xf]
    %v2727 = vld [vmem:[#allocation8 + $0x3c] sm:$0xf]
    %v2728 = vld [vmem:[%s7] sm:$0x1]
    %v2730 = vlaneseq
    %v2731 = vshrl.u32 %v2730, 7
    %v2732 = vsub.s32 0, %v2731
    %v2733 = vrot.slane %v2728, %v2732
    %v2751 = vunpack.c.l.b16 %v2712
    %v2752 = vunpack.c.l.b16 %v2713
    %v2753 = vunpack.c.l.b16 %v2714
    %v2754 = vunpack.c.l.b16 %v2715
    %v2755 = vunpack.c.l.b16 %v2716
    %v2756 = vunpack.c.l.b16 %v2717
    %v2757 = vunpack.c.l.b16 %v2718
    %v2758 = vunpack.c.l.b16 %v2719
    %v2759 = vunpack.c.l.b16 %v2720
    %v2760 = vunpack.c.l.b16 %v2721
    %v2761 = vunpack.c.l.b16 %v2722
    %v2762 = vunpack.c.l.b16 %v2723
    %v2763 = vunpack.c.l.b16 %v2724
    %v2764 = vunpack.c.l.b16 %v2725
    %v2765 = vunpack.c.l.b16 %v2726
    %v2766 = vunpack.c.l.b16 %v2727
    %v2767 = vpack.c.b16 %v2752, %v2751
    %v2768 = vpack.c.b16 %v2754, %v2753
    %v2769 = vpack.c.b16 %v2756, %v2755
    %v2770 = vpack.c.b16 %v2758, %v2757
    %v2771 = vpack.c.b16 %v2760, %v2759
    %v2772 = vpack.c.b16 %v2762, %v2761
    %v2773 = vpack.c.b16 %v2764, %v2763
    %v2774 = vpack.c.b16 %v2766, %v2765
    %2783 = vmatprep.subr.bf16.mxu0 0
    %2784 = vmatpush1.bf16.msra.mxu0 %v2767
    %2785 = vmatprep.subr.bf16.mxu0 0
    %2786 = vmatpush1.bf16.msra.mxu0 %v2768
    %2787 = vmatprep.subr.bf16.mxu0 0
    %2788 = vmatpush1.bf16.msra.mxu0 %v2769
    %2789 = vmatprep.subr.bf16.mxu0 0
    %2790 = vmatpush1.bf16.msra.mxu0 %v2770
    %2791 = vmatprep.subr.bf16.mxu0 0
    %2792 = vmatpush1.bf16.msra.mxu0 %v2771
    %2793 = vmatprep.subr.bf16.mxu0 0
    %2794 = vmatpush1.bf16.msra.mxu0 %v2772
    %2795 = vmatprep.subr.bf16.mxu0 0
    %2796 = vmatpush1.bf16.msra.mxu0 %v2773
    %2797 = vmatprep.subr.bf16.mxu0 0
    %2798 = vmatpush1.bf16.msra.mxu0 %v2774
    %2799 = vmatprep.subr.bf16.mxu0 0
    %2800 = vmatpush1.bf16.msra.mxu0 0
    %2801 = vmatprep.subr.bf16.mxu0 0
    %2802 = vmatpush1.bf16.msra.mxu0 0
    %2803 = vmatprep.subr.bf16.mxu0 0
    %2804 = vmatpush1.bf16.msra.mxu0 0
    %2805 = vmatprep.subr.bf16.mxu0 0
    %2806 = vmatpush1.bf16.msra.mxu0 0
    %2807 = vmatprep.subr.bf16.mxu0 0
    %2808 = vmatpush1.bf16.msra.mxu0 0
    %2809 = vmatprep.subr.bf16.mxu0 0
    %2810 = vmatpush1.bf16.msra.mxu0 0
    %2811 = vmatprep.subr.bf16.mxu0 0
    %2812 = vmatpush1.bf16.msra.mxu0 0
    %2813 = vmatprep.subr.bf16.mxu0 0
    %2814 = vmatpush1.bf16.msra.mxu0 0
    %2815 = vmatprep.mubr.bf16.mxu0 0
    %2816 = vmatmul.mubr.bf16.gmra.mrb[0].mxu0 %v2704
    %v2817 = vpop.f32.mrb[0].mxu0
    %v2818 = vadd.f32 %v2733, %v2817
    %v2819 = vpop.f32.mrb[0].mxu0
    %v2820 = vpop.f32.mrb[0].mxu0
    %v2821 = vadd.f32 %v2733, %v2820
    %v2822 = vpop.f32.mrb[0].mxu0
    %2823 = vmatprep.mubr.bf16.mxu0 0
    %2824 = vmatmul.mubr.bf16.gmra.mrb[0].mxu0 %v2705
    %v2825 = vpop.f32.mrb[0].mxu0
    %v2826 = vadd.f32 %v2733, %v2825
    %v2827 = vpop.f32.mrb[0].mxu0
    %v2828 = vpop.f32.mrb[0].mxu0
    %v2829 = vadd.f32 %v2733, %v2828
    %v2830 = vpop.f32.mrb[0].mxu0
    %2831 = vmatprep.mubr.bf16.mxu0 0
    %2832 = vmatmul.mubr.bf16.gmra.mrb[0].mxu0 %v2706
    %v2833 = vpop.f32.mrb[0].mxu0
    %v2834 = vadd.f32 %v2733, %v2833
    %v2835 = vpop.f32.mrb[0].mxu0
    %v2836 = vpop.f32.mrb[0].mxu0
    %v2837 = vadd.f32 %v2733, %v2836
    %v2838 = vpop.f32.mrb[0].mxu0
    %2839 = vmatprep.mubr.bf16.mxu0 0
    %2840 = vmatmul.mubr.bf16.gmra.mrb[0].mxu0 %v2707
    %v2841 = vpop.f32.mrb[0].mxu0
    %v2842 = vadd.f32 %v2733, %v2841
    %v2843 = vpop.f32.mrb[0].mxu0
    %v2844 = vpop.f32.mrb[0].mxu0
    %v2845 = vadd.f32 %v2733, %v2844
    %v2846 = vpop.f32.mrb[0].mxu0
    %2847 = vmatprep.mubr.bf16.mxu0 0
    %2848 = vmatmul.mubr.bf16.gmra.mrb[0].mxu0 %v2708
    %v2849 = vpop.f32.mrb[0].mxu0
    %v2850 = vadd.f32 %v2733, %v2849
    %v2851 = vpop.f32.mrb[0].mxu0
    %v2852 = vpop.f32.mrb[0].mxu0
    %v2853 = vadd.f32 %v2733, %v2852
    %v2854 = vpop.f32.mrb[0].mxu0
    %2855 = vmatprep.mubr.bf16.mxu0 0
    %2856 = vmatmul.mubr.bf16.gmra.mrb[0].mxu0 %v2709
    %v2857 = vpop.f32.mrb[0].mxu0
    %v2858 = vadd.f32 %v2733, %v2857
    %v2859 = vpop.f32.mrb[0].mxu0
    %v2860 = vpop.f32.mrb[0].mxu0
    %v2861 = vadd.f32 %v2733, %v2860
    %v2862 = vpop.f32.mrb[0].mxu0
    %2863 = vmatprep.mubr.bf16.mxu0 0
    %2864 = vmatmul.mubr.bf16.gmra.mrb[0].mxu0 %v2710
    %v2865 = vpop.f32.mrb[0].mxu0
    %v2866 = vadd.f32 %v2733, %v2865
    %v2867 = vpop.f32.mrb[0].mxu0
    %v2868 = vpop.f32.mrb[0].mxu0
    %v2869 = vadd.f32 %v2733, %v2868
    %v2870 = vpop.f32.mrb[0].mxu0
    %2871 = vmatprep.mubr.bf16.mxu0 0
    %2872 = vmatmul.mubr.bf16.gmra.mrb[0].mxu0 %v2711
    %v2873 = vpop.f32.mrb[0].mxu0
    %v2874 = vadd.f32 %v2733, %v2873
    %v2875 = vpop.f32.mrb[0].mxu0
    %v2876 = vpop.f32.mrb[0].mxu0
    %v2877 = vadd.f32 %v2733, %v2876
    %v2878 = vpop.f32.mrb[0].mxu0
    %2879 = vdwg.mxu0
    %2880 = vst [vmem:[#allocation10] sm:$0xff] %v2818
    %2881 = vst [vmem:[#allocation10 + $0x8] sm:$0xff] %v2821
    %2882 = vst [vmem:[#allocation10 + $0x10] sm:$0xff] %v2826
    %2883 = vst [vmem:[#allocation10 + $0x18] sm:$0xff] %v2829
    %2884 = vst [vmem:[#allocation10 + $0x20] sm:$0xff] %v2834
    %2885 = vst [vmem:[#allocation10 + $0x28] sm:$0xff] %v2837
    %2886 = vst [vmem:[#allocation10 + $0x30] sm:$0xff] %v2842
    %2887 = vst [vmem:[#allocation10 + $0x38] sm:$0xff] %v2845
    %2888 = vst [vmem:[#allocation10 + $0x40] sm:$0xff] %v2850
    %2889 = vst [vmem:[#allocation10 + $0x48] sm:$0xff] %v2853
    %2890 = vst [vmem:[#allocation10 + $0x50] sm:$0xff] %v2858
    %2891 = vst [vmem:[#allocation10 + $0x58] sm:$0xff] %v2861
    %2892 = vst [vmem:[#allocation10 + $0x60] sm:$0xff] %v2866
    %2893 = vst [vmem:[#allocation10 + $0x68] sm:$0xff] %v2869
    %2894 = vst [vmem:[#allocation10 + $0x70] sm:$0xff] %v2874
    %2895 = vst [vmem:[#allocation10 + $0x78] sm:$0xff] %v2877
    // Predicated region
    $region50: #{tpu_custom_call.1} parent=1 // pred_check
      _
    $region51: #{tpu_custom_call.1} parent=1 // pred_check_branch
      %2897 = sbr.rel (0) target = $region53
    $region52: #{tpu_custom_call.1} parent=1 // pred_region
      %s2899 = ssub.s32 2048, 2048
      %2900 = vsyncadd [#allocation4], %s2899
      %s2901 = sshll.u32 [#allocation10], 4
      %s2902 = int_to_ptr.vmem [resolvable:$true] %s2901
      %2907 = dma.vmem_to_hbm [thread:$0]  %s2902, 2048, %s8, [#allocation4], 128, 128, 8
    $region53: #{tpu_custom_call.1} parent=1 // pred_fallthru
      _
    // Predicated region
    $region54: #{tpu_custom_call.1} parent=1 // pred_check
      _
    $region55: #{tpu_custom_call.1} parent=1 // pred_check_branch
      %2909 = sbr.rel (0) target = $region57
    $region56: #{tpu_custom_call.1} parent=1 // pred_region
      %2910 = dma.done [#allocation4], 2048
    $region57: #{tpu_custom_call.1} parent=1 // pred_fallthru
      _
    %2911 = vsyncpa [#allocation3], 1
    %2912 = vsyncpa [#allocation6], 1
    %2913 = vsyncpa [#allocation9], 1
    %2914 = vsyncpa [#allocation4], 1

</llo_original>
